<compile_context>
chip_gen: v7x
topology: tpu7x:2x2x1
jax: 0.10.0
libtpu: 0.0.40
codegen_flags: <defaults>
</compile_context>

<pallas_src>
import functools
import math

import jax
import jax.numpy as jnp
from jax.experimental import pallas as pl
from jax.experimental.pallas import tpu as pltpu


# ----------------------------------------------------------------------------
# generation-aware VMEM budget + Buffered(1) capability probe
# ----------------------------------------------------------------------------
def _vmem_limit_bytes():
    cap = 64 * 1024 * 1024
    try:
        info = pltpu.get_tpu_info()
        cap = int(getattr(info, "vmem_capacity_bytes", cap))
    except Exception:
        pass
    # ~48 MiB on v7x (64 MiB physical), ~96 MiB on v5e/v6e (128 MiB physical)
    return max(32 * 1024 * 1024, min(cap * 3 // 4, 96 * 1024 * 1024))


_VMEM_LIMIT = _vmem_limit_bytes()


def _probe_buffered1():
    """Check that pipeline_mode=pl.Buffered(1) lowers on this jax/libtpu."""
    try:
        def k(x_ref, o_ref):
            o_ref[...] = x_ref[...]

        f = pl.pallas_call(
            k,
            out_shape=jax.ShapeDtypeStruct((8, 128), jnp.float32),
            grid=(1,),
            in_specs=[pl.BlockSpec((8, 128), lambda i: (0, 0),
                                   pipeline_mode=pl.Buffered(1))],
            out_specs=pl.BlockSpec((8, 128), lambda i: (0, 0)),
        )
        jax.block_until_ready(f(jnp.zeros((8, 128), jnp.float32)))
        return True
    except Exception:
        return False


_BUFFERED1_OK = _probe_buffered1()


def _const_spec(shape):
    """BlockSpec for a grid-invariant (resident) operand; single-buffered if
    the runtime supports pipeline_mode=pl.Buffered(1)."""
    index_map = lambda *_: (0,) * len(shape)
    if _BUFFERED1_OK:
        return pl.BlockSpec(shape, index_map, pipeline_mode=pl.Buffered(1))
    return pl.BlockSpec(shape, index_map)


# ----------------------------------------------------------------------------
# shared in-kernel helpers
# ----------------------------------------------------------------------------
def _layer_norm(r, g, b):
    mean = jnp.mean(r, axis=-1, keepdims=True)
    var = jnp.mean((r - mean) ** 2, axis=-1, keepdims=True)
    return (r - mean) * jax.lax.rsqrt(var + 1e-5) * g + b


# ----------------------------------------------------------------------------
# Fused attention sublayer:  LN(x_q + MHA(x_q, x_kv, x_kv, mask))
# ----------------------------------------------------------------------------
def _attn_sublayer_kernel(xq_ref, xkv_ref,
                          wq_ref, bq_ref, wkv_ref, bkv_ref,
                          wo_ref, bo_ref, kmask_ref, qmask_ref,
                          g_ref, beta_ref, o_ref, attn_ref,
                          *, n_heads, causal):
    xq = xq_ref[0]                       # (tq, D) bf16  (also the residual)
    xkv = xkv_ref[0]                     # (Lk, D) bf16
    tq, D = xq.shape
    Lk = xkv.shape[0]
    dh = D // n_heads
    scale_inv = 1.0 / math.sqrt(dh)

    # projections: Q from the q-tile, fused K|V from the full kv sequence
    q = jnp.dot(xq, wq_ref[...], preferred_element_type=jnp.float32) + bq_ref[...]
    kv = jnp.dot(xkv, wkv_ref[...], preferred_element_type=jnp.float32) + bkv_ref[...]
    q = q * scale_inv                    # fold 1/sqrt(dh) into q (O(tq*D))
    k = kv[:, :D]
    v = kv[:, D:]

    # build keep-mask in-kernel; no (Lq, Lk) mask DMA'd from HBM
    keep = qmask_ref[0] * kmask_ref[0]   # (tq,1)*(1,Lk) -> (tq, Lk)
    if causal:
        q0 = pl.program_id(1) * tq       # global row offset of this q tile
        row = jax.lax.broadcasted_iota(jnp.int32, (tq, Lk), 0) + q0
        col = jax.lax.broadcasted_iota(jnp.int32, (tq, Lk), 1)
        keep = keep * (col <= row).astype(jnp.float32)

    dn = (((1,), (1,)), ((), ()))        # contract last dims: q @ k^T w/o transpose
    for h in range(n_heads):             # per-head results go straight to VMEM scratch
        sl = slice(h * dh, (h + 1) * dh)
        qh = q[:, sl].astype(jnp.bfloat16)
        kh = k[:, sl].astype(jnp.bfloat16)
        vh = v[:, sl].astype(jnp.bfloat16)
        s = jax.lax.dot_general(qh, kh, dn, preferred_element_type=jnp.float32)
        s = jnp.where(keep > 0.0, s, -1e10)          # masked_fill(mask==0,-1e10)
        s = s - jnp.max(s, axis=-1, keepdims=True)
        p = jnp.exp(s)
        p = p * pl.reciprocal(jnp.sum(p, axis=-1, keepdims=True), approx=True)
        attn_ref[:, sl] = jnp.dot(p.astype(jnp.bfloat16), vh,
                                  preferred_element_type=jnp.float32)

    out = jnp.dot(attn_ref[...].astype(jnp.bfloat16), wo_ref[...],
                  preferred_element_type=jnp.float32) + bo_ref[...]

    # fused residual add + LayerNorm (f32 stats), bf16 store
    r = xq.astype(jnp.float32) + out
    o_ref[0] = _layer_norm(r, g_ref[...], beta_ref[...]).astype(o_ref.dtype)


def attn_sublayer(p_mha, p_ln, xq, xkv, kmask, qmask, n_heads, causal, tq=128):
    """xq: (B,Lq,D) (query + residual), xkv: (B,Lk,D); returns LN(xq + MHA)."""
    B, Lq, D = xq.shape
    Lk = xkv.shape[1]
    tq = min(tq, Lq)
    nq = pl.cdiv(Lq, tq)

    wkv = jnp.concatenate([p_mha["wk"]["w"], p_mha["wv"]["w"]], axis=1)
    bkv = jnp.concatenate([p_mha["wk"]["b"], p_mha["wv"]["b"]], axis=0)

    kern = functools.partial(_attn_sublayer_kernel, n_heads=n_heads, causal=causal)
    return pl.pallas_call(
        kern,
        out_shape=jax.ShapeDtypeStruct((B, Lq, D), jnp.bfloat16),
        grid=(B, nq),
        in_specs=[
            pl.BlockSpec((1, tq, D), lambda b, i: (b, i, 0)),   # xq tile
            pl.BlockSpec((1, Lk, D), lambda b, i: (b, 0, 0)),   # full kv seq
            _const_spec((D, D)),        # wq
            _const_spec((1, D)),        # bq
            _const_spec((D, 2 * D)),    # wkv (fused K|V)
            _const_spec((1, 2 * D)),    # bkv
            _const_spec((D, D)),        # wo
            _const_spec((1, D)),        # bo
            pl.BlockSpec((1, 1, Lk), lambda b, i: (b, 0, 0)),   # key keep
            pl.BlockSpec((1, tq, 1), lambda b, i: (b, i, 0)),   # query keep
            _const_spec((1, D)),        # ln gamma
            _const_spec((1, D)),        # ln beta
        ],
        out_specs=pl.BlockSpec((1, tq, D), lambda b, i: (b, i, 0)),
        scratch_shapes=[pltpu.VMEM((tq, D), jnp.float32)],
        compiler_params=pltpu.CompilerParams(
            dimension_semantics=("parallel", "parallel"),
            vmem_limit_bytes=_VMEM_LIMIT),
    )(
        xq.astype(jnp.bfloat16), xkv.astype(jnp.bfloat16),
        p_mha["wq"]["w"].astype(jnp.bfloat16), p_mha["wq"]["b"].reshape(1, D),
        wkv.astype(jnp.bfloat16), bkv.reshape(1, 2 * D),
        p_mha["fc"]["w"].astype(jnp.bfloat16), p_mha["fc"]["b"].reshape(1, D),
        kmask, qmask,
        p_ln["g"].reshape(1, D), p_ln["b"].reshape(1, D),
    )


# ----------------------------------------------------------------------------
# Fused feed-forward sublayer:  LN(x + fc2(relu(fc1(x))))
# ----------------------------------------------------------------------------
def _ffn_sublayer_kernel(x_ref, w1_ref, b1_ref, w2_ref, b2_ref,
                         g_ref, beta_ref, o_ref):
    x = x_ref[...]                                        # (tm, D) bf16
    h = jnp.dot(x, w1_ref[...], preferred_element_type=jnp.float32) + b1_ref[...]
    h = jnp.maximum(h, 0.0)
    y = jnp.dot(h.astype(jnp.bfloat16), w2_ref[...],
                preferred_element_type=jnp.float32) + b2_ref[...]
    r = x.astype(jnp.float32) + y
    o_ref[...] = _layer_norm(r, g_ref[...], beta_ref[...]).astype(o_ref.dtype)


def ffn_sublayer(p_pf, p_ln, x, tm=256):
    B, L, D = x.shape
    PF = p_pf["fc1"]["w"].shape[1]
    M = B * L
    tm = min(tm, M)
    out = pl.pallas_call(
        _ffn_sublayer_kernel,
        out_shape=jax.ShapeDtypeStruct((M, D), jnp.bfloat16),
        grid=(pl.cdiv(M, tm),),
        in_specs=[
            pl.BlockSpec((tm, D), lambda i: (i, 0)),
            _const_spec((D, PF)),
            _const_spec((1, PF)),
            _const_spec((PF, D)),
            _const_spec((1, D)),
            _const_spec((1, D)),
            _const_spec((1, D)),
        ],
        out_specs=pl.BlockSpec((tm, D), lambda i: (i, 0)),
        compiler_params=pltpu.CompilerParams(
            dimension_semantics=("parallel",),
            vmem_limit_bytes=_VMEM_LIMIT),
    )(x.reshape(M, D).astype(jnp.bfloat16),
      p_pf["fc1"]["w"].astype(jnp.bfloat16), p_pf["fc1"]["b"].reshape(1, PF),
      p_pf["fc2"]["w"].astype(jnp.bfloat16), p_pf["fc2"]["b"].reshape(1, D),
      p_ln["g"].reshape(1, D), p_ln["b"].reshape(1, D))
    return out.reshape(B, L, D)


# ----------------------------------------------------------------------------
# Tiled linear (used for the final vocab projection)
# ----------------------------------------------------------------------------
def _linear_kernel(x_ref, w_ref, b_ref, o_ref, acc_ref):
    k = pl.program_id(2)

    @pl.when(k == 0)
    def _():
        acc_ref[...] = jnp.zeros_like(acc_ref)

    acc_ref[...] += jnp.dot(x_ref[...], w_ref[...],
                            preferred_element_type=jnp.float32)

    @pl.when(k == pl.num_programs(2) - 1)
    def _():
        o_ref[...] = acc_ref[...] + b_ref[...]


def linear(x2d, w, b, *, tm=256, tn=512, tk=512):
    M, K = x2d.shape
    N = w.shape[1]
    tm = min(tm, M)
    tn = N if N <= tn else tn                      # lane-dense (512 | full N)
    tk = K if (K <= tk or K % tk != 0) else tk     # avoid padded K accumulation
    return pl.pallas_call(
        _linear_kernel,
        out_shape=jax.ShapeDtypeStruct((M, N), jnp.float32),
        grid=(pl.cdiv(M, tm), pl.cdiv(N, tn), pl.cdiv(K, tk)),
        in_specs=[
            pl.BlockSpec((tm, tk), lambda i, j, k: (i, k)),
            pl.BlockSpec((tk, tn), lambda i, j, k: (k, j)),
            pl.BlockSpec((1, tn), lambda i, j, k: (0, j)),
        ],
        out_specs=pl.BlockSpec((tm, tn), lambda i, j, k: (i, j)),
        scratch_shapes=[pltpu.VMEM((tm, tn), jnp.float32)],
        compiler_params=pltpu.CompilerParams(
            dimension_semantics=("parallel", "parallel", "arbitrary"),
            vmem_limit_bytes=_VMEM_LIMIT),
    )(x2d.astype(jnp.bfloat16), w.astype(jnp.bfloat16), b.reshape(1, N))


# ----------------------------------------------------------------------------
# Model glue (plain JAX: embeddings, compact mask construction)
# ----------------------------------------------------------------------------
def encoder_layer(lp, x, src_kmask, ones_q_src, n_heads):
    x = attn_sublayer(lp["sa"], lp["ln1"], x, x, src_kmask, ones_q_src,
                      n_heads, causal=False)
    x = ffn_sublayer(lp["pf"], lp["ln2"], x)
    return x


def decoder_layer(lp, x, enc, trg_qmask, ones_k_trg, src_kmask, ones_q_trg,
                  n_heads):
    x = attn_sublayer(lp["sa"], lp["ln1"], x, x, ones_k_trg, trg_qmask,
                      n_heads, causal=True)
    x = attn_sublayer(lp["ea"], lp["ln2"], x, enc, src_kmask, ones_q_trg,
                      n_heads, causal=False)
    x = ffn_sublayer(lp["pf"], lp["ln3"], x)
    return x


def encoder_forward(p, src, src_kmask, n_heads):
    B, Ls = src.shape
    D = p["tok_emb"].shape[1]
    pos = jnp.arange(Ls, dtype=jnp.int32)[None, :]
    x = (p["tok_emb"][src] * math.sqrt(D) + p["pos_emb"][pos]).astype(jnp.bfloat16)
    ones_q_src = jnp.ones((B, Ls, 1), jnp.float32)
    for lp in p["layers"]:
        x = encoder_layer(lp, x, src_kmask, ones_q_src, n_heads)
    return x


def decoder_forward(p, trg, enc_src, trg_qmask, src_kmask, n_heads):
    B, Lt = trg.shape
    D = p["tok_emb"].shape[1]
    pos = jnp.arange(Lt, dtype=jnp.int32)[None, :]
    x = (p["tok_emb"][trg] * math.sqrt(D) + p["pos_emb"][pos]).astype(jnp.bfloat16)
    ones_k_trg = jnp.ones((B, 1, Lt), jnp.float32)
    ones_q_trg = jnp.ones((B, Lt, 1), jnp.float32)
    for lp in p["layers"]:
        x = decoder_layer(lp, x, enc_src, trg_qmask, ones_k_trg, src_kmask,
                          ones_q_trg, n_heads)
    out = linear(x.reshape(B * Lt, D), p["fc_out"]["w"], p["fc_out"]["b"])
    return out.reshape(B, Lt, -1)


def make_masks(src, trg, pad_idx):
    # src_mask = (src != pad).unsqueeze(1).unsqueeze(2)  -> key-keep over src
    src_kmask = (src != pad_idx).astype(jnp.float32)[:, None, :]   # (B,1,Ls)
    # trg_pad_mask = (trg != pad).unsqueeze(1).unsqueeze(3) -> query-keep over trg
    # (the causal tril part is generated in-kernel with broadcasted_iota)
    trg_qmask = (trg != pad_idx).astype(jnp.float32)[:, :, None]   # (B,Lt,1)
    return src_kmask, trg_qmask


def transformer_forward(params, src, trg, pad_idx, n_heads):
    src_kmask, trg_qmask = make_masks(src, trg, pad_idx)
    enc_src = encoder_forward(params["encoder"], src, src_kmask, n_heads)
    out = decoder_forward(params["decoder"], trg, enc_src, trg_qmask,
                          src_kmask, n_heads)
    return out


# ----------------------------------------------------------------------------
# Deterministic parameter init
# ----------------------------------------------------------------------------
def init_params(key, input_dim, output_dim, hid_dim, pf_dim, n_layers,
                max_len=64):
    kiter = iter(jax.random.split(key, 256))

    def dense(din, dout):
        return {"w": jax.random.normal(next(kiter), (din, dout), jnp.float32) * 0.02,
                "b": jnp.zeros((dout,), jnp.float32)}

    def lnp():
        return {"g": jnp.ones((hid_dim,), jnp.float32),
                "b": jnp.zeros((hid_dim,), jnp.float32)}

    def mha():
        return {"wq": dense(hid_dim, hid_dim), "wk": dense(hid_dim, hid_dim),
                "wv": dense(hid_dim, hid_dim), "fc": dense(hid_dim, hid_dim)}

    def pf():
        return {"fc1": dense(hid_dim, pf_dim), "fc2": dense(pf_dim, hid_dim)}

    enc_layers = [{"sa": mha(), "pf": pf(), "ln1": lnp(), "ln2": lnp()}
                  for _ in range(n_layers)]
    dec_layers = [{"sa": mha(), "ea": mha(), "pf": pf(),
                   "ln1": lnp(), "ln2": lnp(), "ln3": lnp()}
                  for _ in range(n_layers)]

    encoder = {
        "tok_emb": jax.random.normal(next(kiter), (input_dim, hid_dim), jnp.float32) * 0.02,
        "pos_emb": jax.random.normal(next(kiter), (max_len, hid_dim), jnp.float32) * 0.02,
        "layers": enc_layers,
    }
    decoder = {
        "tok_emb": jax.random.normal(next(kiter), (output_dim, hid_dim), jnp.float32) * 0.02,
        "pos_emb": jax.random.normal(next(kiter), (max_len, hid_dim), jnp.float32) * 0.02,
        "layers": dec_layers,
        "fc_out": dense(hid_dim, output_dim),
    }
    return {"encoder": encoder, "decoder": decoder}


# ----------------------------------------------------------------------------
# Main
# ----------------------------------------------------------------------------
if __name__ == "__main__":
    # TODO(synk): spacy tokenization / torchtext Field vocab is a data pipeline,
    # not compute; token ids are generated synthetically here.
    # TODO(synk): nn.Dropout is omitted (inference-mode forward).
    INPUT_DIM, OUTPUT_DIM = 30, 30
    HID_DIM, PF_DIM = 32, 64
    N_HEADS, N_LAYERS = 4, 2
    PAD_IDX = 1
    B, SRC_LEN, TRG_LEN = 2, 8, 8

    root = jax.random.PRNGKey(0)
    k_param, k_src, k_trg = jax.random.split(root, 3)

    params = init_params(k_param, INPUT_DIM, OUTPUT_DIM, HID_DIM, PF_DIM, N_LAYERS)

    src = jax.random.randint(k_src, (B, SRC_LEN), 2, INPUT_DIM, dtype=jnp.int32)
    trg = jax.random.randint(k_trg, (B, TRG_LEN), 2, OUTPUT_DIM, dtype=jnp.int32)
    # inject padding so both masks are exercised
    src = src.at[1, 6:].set(PAD_IDX)
    trg = trg.at[1, 7:].set(PAD_IDX)

    fwd = jax.jit(functools.partial(transformer_forward,
                                    pad_idx=PAD_IDX, n_heads=N_HEADS))
    out = fwd(params, src, trg)
    out = jax.block_until_ready(out)

    assert out.shape == (B, TRG_LEN, OUTPUT_DIM), out.shape
    assert bool(jnp.all(jnp.isfinite(out)))
    print("KERNEL_OK")
</pallas_src>

<mosaic_0001>
module attributes {stable_mosaic.version = 11 : i64} {
  func.func @k(%arg0: i32, %arg1: memref<8x128xf32, #tpu.memory_space<vmem>>, %arg2: memref<8x128xf32, #tpu.memory_space<vmem>>) attributes {dimension_semantics = [#tpu.dimension_semantics<arbitrary>], iteration_bounds = array<i64: 1>, scalar_prefetch = 0 : i64, scratch_operands = 0 : i64, tpu.core_type = #tpu.core_type<tc>, window_params = [{pipeline_mode = #tpu.pipeline_mode<synchronous>, transform_indices = @transform_0, window_bounds = array<i64: 8, 128>}, {pipeline_mode = #tpu.pipeline_mode<synchronous>, transform_indices = @transform_1, window_bounds = array<i64: 8, 128>}]} {
    %c0 = arith.constant 0 : index
    %c0_0 = arith.constant 0 : index
    %0 = vector.load %arg1[%c0, %c0_0] : memref<8x128xf32, #tpu.memory_space<vmem>>, vector<8x128xf32>
    %c0_1 = arith.constant 0 : index
    %c0_2 = arith.constant 0 : index
    %1 = vector.load %arg2[%c0_1, %c0_2] : memref<8x128xf32, #tpu.memory_space<vmem>>, vector<8x128xf32>
    tpu.vector_store %arg2[%c0_1, %c0_2], %0 {strides = array<i32>} : memref<8x128xf32, #tpu.memory_space<vmem>>, vector<8x128xf32>,
    return
  }
  func.func @transform_0(%arg0: i32) -> (i32, i32) {
    %c0_i32 = arith.constant 0 : i32
    %c0_i32_0 = arith.constant 0 : i32
    %c0_i32_1 = arith.constant 0 : i32
    return %c0_i32, %c0_i32_0 : i32, i32
  }
  func.func @transform_1(%arg0: i32) -> (i32, i32) {
    %c0_i32 = arith.constant 0 : i32
    %c0_i32_0 = arith.constant 0 : i32
    %c0_i32_1 = arith.constant 0 : i32
    return %c0_i32, %c0_i32_0 : i32, i32
  }
}

module attributes {stable_mosaic.version = 11 : i64} {
  func.func @_ffn_sublayer_kernel(%arg0: i32, %arg1: memref<16x32xbf16, #tpu.memory_space<vmem>>, %arg2: memref<32x64xbf16, #tpu.memory_space<vmem>>, %arg3: memref<1x64xf32, #tpu.memory_space<vmem>>, %arg4: memref<64x32xbf16, #tpu.memory_space<vmem>>, %arg5: memref<1x32xf32, #tpu.memory_space<vmem>>, %arg6: memref<1x32xf32, #tpu.memory_space<vmem>>, %arg7: memref<1x32xf32, #tpu.memory_space<vmem>>, %arg8: memref<16x32xbf16, #tpu.memory_space<vmem>>) attributes {dimension_semantics = [#tpu.dimension_semantics<parallel>], iteration_bounds = array<i64: 1>, scalar_prefetch = 0 : i64, scratch_operands = 0 : i64, tpu.core_type = #tpu.core_type<tc>, window_params = [{transform_indices = @transform_0, window_bounds = array<i64: 16, 32>}, {pipeline_mode = #tpu.pipeline_mode<synchronous>, transform_indices = @transform_1, window_bounds = array<i64: 32, 64>}, {pipeline_mode = #tpu.pipeline_mode<synchronous>, transform_indices = @transform_2, window_bounds = array<i64: 1, 64>}, {pipeline_mode = #tpu.pipeline_mode<synchronous>, transform_indices = @transform_3, window_bounds = array<i64: 64, 32>}, {pipeline_mode = #tpu.pipeline_mode<synchronous>, transform_indices = @transform_4, window_bounds = array<i64: 1, 32>}, {pipeline_mode = #tpu.pipeline_mode<synchronous>, transform_indices = @transform_5, window_bounds = array<i64: 1, 32>}, {pipeline_mode = #tpu.pipeline_mode<synchronous>, transform_indices = @transform_6, window_bounds = array<i64: 1, 32>}, {transform_indices = @transform_7, window_bounds = array<i64: 16, 32>}]} {
    %c0 = arith.constant 0 : index
    %c0_0 = arith.constant 0 : index
    %0 = vector.load %arg1[%c0, %c0_0] : memref<16x32xbf16, #tpu.memory_space<vmem>>, vector<16x32xbf16>
    %c0_1 = arith.constant 0 : index
    %c0_2 = arith.constant 0 : index
    %1 = vector.load %arg2[%c0_1, %c0_2] : memref<32x64xbf16, #tpu.memory_space<vmem>>, vector<32x64xbf16>
    %cst = arith.constant dense<0.000000e+00> : vector<16x64xf32>
    %2 = tpu.matmul %0, %1, %cst {dimension_numbers = #tpu.dot_dimension_numbers<[1], [0], [0], [1], [0, 0, 1, 1], [], []>} : vector<16x32xbf16>, vector<32x64xbf16>, vector<16x64xf32> -> vector<16x64xf32>
    %c0_3 = arith.constant 0 : index
    %c0_4 = arith.constant 0 : index
    %3 = vector.load %arg3[%c0_3, %c0_4] : memref<1x64xf32, #tpu.memory_space<vmem>>, vector<1x64xf32>
    %4 = vector.broadcast %3 : vector<1x64xf32> to vector<16x64xf32>
    %5 = arith.addf %2, %4 : vector<16x64xf32>
    %cst_5 = arith.constant 0.000000e+00 : f32
    %6 = vector.broadcast %cst_5 : f32 to vector<16x64xf32>
    %7 = arith.maximumf %5, %6 : vector<16x64xf32>
    %8 = arith.truncf %7 : vector<16x64xf32> to vector<16x64xbf16>
    %c0_6 = arith.constant 0 : index
    %c0_7 = arith.constant 0 : index
    %9 = vector.load %arg4[%c0_6, %c0_7] : memref<64x32xbf16, #tpu.memory_space<vmem>>, vector<64x32xbf16>
    %cst_8 = arith.constant dense<0.000000e+00> : vector<16x32xf32>
    %10 = tpu.matmul %8, %9, %cst_8 {dimension_numbers = #tpu.dot_dimension_numbers<[1], [0], [0], [1], [0, 0, 1, 1], [], []>} : vector<16x64xbf16>, vector<64x32xbf16>, vector<16x32xf32> -> vector<16x32xf32>
    %c0_9 = arith.constant 0 : index
    %c0_10 = arith.constant 0 : index
    %11 = vector.load %arg5[%c0_9, %c0_10] : memref<1x32xf32, #tpu.memory_space<vmem>>, vector<1x32xf32>
    %12 = vector.broadcast %11 : vector<1x32xf32> to vector<16x32xf32>
    %13 = arith.addf %10, %12 : vector<16x32xf32>
    %14 = arith.extf %0 : vector<16x32xbf16> to vector<16x32xf32>
    %15 = arith.addf %14, %13 : vector<16x32xf32>
    %c0_11 = arith.constant 0 : index
    %c0_12 = arith.constant 0 : index
    %16 = vector.load %arg6[%c0_11, %c0_12] : memref<1x32xf32, #tpu.memory_space<vmem>>, vector<1x32xf32>
    %c0_13 = arith.constant 0 : index
    %c0_14 = arith.constant 0 : index
    %17 = vector.load %arg7[%c0_13, %c0_14] : memref<1x32xf32, #tpu.memory_space<vmem>>, vector<1x32xf32>
    %cst_15 = arith.constant dense<0.000000e+00> : vector<16xf32>
    %18 = vector.multi_reduction <add>, %15, %cst_15 [1] : vector<16x32xf32> to vector<16xf32>
    %19 = vector.shape_cast %18 : vector<16xf32> to vector<16x1xf32>
    %cst_16 = arith.constant 3.200000e+01 : f32
    %20 = vector.broadcast %cst_16 : f32 to vector<16x1xf32>
    %21 = arith.divf %19, %20 : vector<16x1xf32>
    %22 = vector.broadcast %21 : vector<16x1xf32> to vector<16x32xf32>
    %23 = arith.subf %15, %22 : vector<16x32xf32>
    %24 = arith.mulf %23, %23 : vector<16x32xf32>
    %cst_17 = arith.constant dense<0.000000e+00> : vector<16xf32>
    %25 = vector.multi_reduction <add>, %24, %cst_17 [1] : vector<16x32xf32> to vector<16xf32>
    %26 = vector.shape_cast %25 : vector<16xf32> to vector<16x1xf32>
    %cst_18 = arith.constant 3.200000e+01 : f32
    %27 = vector.broadcast %cst_18 : f32 to vector<16x1xf32>
    %28 = arith.divf %26, %27 : vector<16x1xf32>
    %29 = vector.broadcast %21 : vector<16x1xf32> to vector<16x32xf32>
    %30 = arith.subf %15, %29 : vector<16x32xf32>
    %cst_19 = arith.constant 9.99999974E-6 : f32
    %31 = vector.broadcast %cst_19 : f32 to vector<16x1xf32>
    %32 = arith.addf %28, %31 : vector<16x1xf32>
    %33 = math.rsqrt %32 : vector<16x1xf32>
    %34 = vector.broadcast %33 : vector<16x1xf32> to vector<16x32xf32>
    %35 = arith.mulf %30, %34 : vector<16x32xf32>
    %36 = vector.broadcast %16 : vector<1x32xf32> to vector<16x32xf32>
    %37 = arith.mulf %35, %36 : vector<16x32xf32>
    %38 = vector.broadcast %17 : vector<1x32xf32> to vector<16x32xf32>
    %39 = arith.addf %37, %38 : vector<16x32xf32>
    %40 = arith.truncf %39 : vector<16x32xf32> to vector<16x32xbf16>
    %c0_20 = arith.constant 0 : index
    %c0_21 = arith.constant 0 : index
    %41 = vector.load %arg8[%c0_20, %c0_21] : memref<16x32xbf16, #tpu.memory_space<vmem>>, vector<16x32xbf16>
    tpu.vector_store %arg8[%c0_20, %c0_21], %40 {strides = array<i32>} : memref<16x32xbf16, #tpu.memory_space<vmem>>, vector<16x32xbf16>,
    return
  }
  func.func @transform_0(%arg0: i32) -> (i32, i32) {
    %c0_i32 = arith.constant 0 : i32
    %c0_i32_0 = arith.constant 0 : i32
    return %arg0, %c0_i32 : i32, i32
  }
  func.func @transform_1(%arg0: i32) -> (i32, i32) {
    %c0_i32 = arith.constant 0 : i32
    %c0_i32_0 = arith.constant 0 : i32
    %c0_i32_1 = arith.constant 0 : i32
    return %c0_i32, %c0_i32_0 : i32, i32
  }
  func.func @transform_2(%arg0: i32) -> (i32, i32) {
    %c0_i32 = arith.constant 0 : i32
    %c0_i32_0 = arith.constant 0 : i32
    %c0_i32_1 = arith.constant 0 : i32
    return %c0_i32, %c0_i32_0 : i32, i32
  }
  func.func @transform_3(%arg0: i32) -> (i32, i32) {
    %c0_i32 = arith.constant 0 : i32
    %c0_i32_0 = arith.constant 0 : i32
    %c0_i32_1 = arith.constant 0 : i32
    return %c0_i32, %c0_i32_0 : i32, i32
  }
  func.func @transform_4(%arg0: i32) -> (i32, i32) {
    %c0_i32 = arith.constant 0 : i32
    %c0_i32_0 = arith.constant 0 : i32
    %c0_i32_1 = arith.constant 0 : i32
    return %c0_i32, %c0_i32_0 : i32, i32
  }
  func.func @transform_5(%arg0: i32) -> (i32, i32) {
    %c0_i32 = arith.constant 0 : i32
    %c0_i32_0 = arith.constant 0 : i32
    %c0_i32_1 = arith.constant 0 : i32
    return %c0_i32, %c0_i32_0 : i32, i32
  }
  func.func @transform_6(%arg0: i32) -> (i32, i32) {
    %c0_i32 = arith.constant 0 : i32
    %c0_i32_0 = arith.constant 0 : i32
    %c0_i32_1 = arith.constant 0 : i32
    return %c0_i32, %c0_i32_0 : i32, i32
  }
  func.func @transform_7(%arg0: i32) -> (i32, i32) {
    %c0_i32 = arith.constant 0 : i32
    %c0_i32_0 = arith.constant 0 : i32
    return %arg0, %c0_i32 : i32, i32
  }
}

module attributes {stable_mosaic.version = 11 : i64} {
  func.func @_attn_sublayer_kernel(%arg0: i32, %arg1: i32, %arg2: memref<1x8x32xbf16, #tpu.memory_space<vmem>>, %arg3: memref<1x8x32xbf16, #tpu.memory_space<vmem>>, %arg4: memref<32x32xbf16, #tpu.memory_space<vmem>>, %arg5: memref<1x32xf32, #tpu.memory_space<vmem>>, %arg6: memref<32x64xbf16, #tpu.memory_space<vmem>>, %arg7: memref<1x64xf32, #tpu.memory_space<vmem>>, %arg8: memref<32x32xbf16, #tpu.memory_space<vmem>>, %arg9: memref<1x32xf32, #tpu.memory_space<vmem>>, %arg10: memref<1x1x8xf32, #tpu.memory_space<vmem>>, %arg11: memref<1x8x1xf32, #tpu.memory_space<vmem>>, %arg12: memref<1x32xf32, #tpu.memory_space<vmem>>, %arg13: memref<1x32xf32, #tpu.memory_space<vmem>>, %arg14: memref<1x8x32xbf16, #tpu.memory_space<vmem>>, %arg15: memref<8x32xf32, #tpu.memory_space<vmem>>) attributes {dimension_semantics = [#tpu.dimension_semantics<parallel>, #tpu.dimension_semantics<parallel>], iteration_bounds = array<i64: 2, 1>, scalar_prefetch = 0 : i64, scratch_operands = 1 : i64, tpu.core_type = #tpu.core_type<tc>, window_params = [{transform_indices = @transform_0, window_bounds = array<i64: 1, 8, 32>}, {transform_indices = @transform_1, window_bounds = array<i64: 1, 8, 32>}, {pipeline_mode = #tpu.pipeline_mode<synchronous>, transform_indices = @transform_2, window_bounds = array<i64: 32, 32>}, {pipeline_mode = #tpu.pipeline_mode<synchronous>, transform_indices = @transform_3, window_bounds = array<i64: 1, 32>}, {pipeline_mode = #tpu.pipeline_mode<synchronous>, transform_indices = @transform_4, window_bounds = array<i64: 32, 64>}, {pipeline_mode = #tpu.pipeline_mode<synchronous>, transform_indices = @transform_5, window_bounds = array<i64: 1, 64>}, {pipeline_mode = #tpu.pipeline_mode<synchronous>, transform_indices = @transform_6, window_bounds = array<i64: 32, 32>}, {pipeline_mode = #tpu.pipeline_mode<synchronous>, transform_indices = @transform_7, window_bounds = array<i64: 1, 32>}, {transform_indices = @transform_8, window_bounds = array<i64: 1, 1, 8>}, {transform_indices = @transform_9, window_bounds = array<i64: 1, 8, 1>}, {pipeline_mode = #tpu.pipeline_mode<synchronous>, transform_indices = @transform_10, window_bounds = array<i64: 1, 32>}, {pipeline_mode = #tpu.pipeline_mode<synchronous>, transform_indices = @transform_11, window_bounds = array<i64: 1, 32>}, {transform_indices = @transform_12, window_bounds = array<i64: 1, 8, 32>}]} {
    %c0 = arith.constant 0 : index
    %c0_0 = arith.constant 0 : index
    %c0_1 = arith.constant 0 : index
    %0 = vector.load %arg2[%c0, %c0_0, %c0_1] : memref<1x8x32xbf16, #tpu.memory_space<vmem>>, vector<1x8x32xbf16>
    %1 = vector.shape_cast %0 : vector<1x8x32xbf16> to vector<8x32xbf16>
    %c0_2 = arith.constant 0 : index
    %c0_3 = arith.constant 0 : index
    %c0_4 = arith.constant 0 : index
    %2 = vector.load %arg3[%c0_2, %c0_3, %c0_4] : memref<1x8x32xbf16, #tpu.memory_space<vmem>>, vector<1x8x32xbf16>
    %3 = vector.shape_cast %2 : vector<1x8x32xbf16> to vector<8x32xbf16>
    %c0_5 = arith.constant 0 : index
    %c0_6 = arith.constant 0 : index
    %4 = vector.load %arg4[%c0_5, %c0_6] : memref<32x32xbf16, #tpu.memory_space<vmem>>, vector<32x32xbf16>
    %cst = arith.constant dense<0.000000e+00> : vector<8x32xf32>
    %5 = tpu.matmul %1, %4, %cst {dimension_numbers = #tpu.dot_dimension_numbers<[1], [0], [0], [1], [0, 0, 1, 1], [], []>} : vector<8x32xbf16>, vector<32x32xbf16>, vector<8x32xf32> -> vector<8x32xf32>
    %c0_7 = arith.constant 0 : index
    %c0_8 = arith.constant 0 : index
    %6 = vector.load %arg5[%c0_7, %c0_8] : memref<1x32xf32, #tpu.memory_space<vmem>>, vector<1x32xf32>
    %7 = vector.broadcast %6 : vector<1x32xf32> to vector<8x32xf32>
    %8 = arith.addf %5, %7 : vector<8x32xf32>
    %c0_9 = arith.constant 0 : index
    %c0_10 = arith.constant 0 : index
    %9 = vector.load %arg6[%c0_9, %c0_10] : memref<32x64xbf16, #tpu.memory_space<vmem>>, vector<32x64xbf16>
    %cst_11 = arith.constant dense<0.000000e+00> : vector<8x64xf32>
    %10 = tpu.matmul %3, %9, %cst_11 {dimension_numbers = #tpu.dot_dimension_numbers<[1], [0], [0], [1], [0, 0, 1, 1], [], []>} : vector<8x32xbf16>, vector<32x64xbf16>, vector<8x64xf32> -> vector<8x64xf32>
    %c0_12 = arith.constant 0 : index
    %c0_13 = arith.constant 0 : index
    %11 = vector.load %arg7[%c0_12, %c0_13] : memref<1x64xf32, #tpu.memory_space<vmem>>, vector<1x64xf32>
    %12 = vector.broadcast %11 : vector<1x64xf32> to vector<8x64xf32>
    %13 = arith.addf %10, %12 : vector<8x64xf32>
    %cst_14 = arith.constant 0.353553385 : f32
    %14 = vector.broadcast %cst_14 : f32 to vector<8x32xf32>
    %15 = arith.mulf %8, %14 : vector<8x32xf32>
    %16 = vector.extract_strided_slice %13 {offsets = [0, 0], sizes = [8, 32], strides = [1, 1]} : vector<8x64xf32> to vector<8x32xf32>
    %17 = vector.extract_strided_slice %13 {offsets = [0, 32], sizes = [8, 32], strides = [1, 1]} : vector<8x64xf32> to vector<8x32xf32>
    %c0_15 = arith.constant 0 : index
    %c0_16 = arith.constant 0 : index
    %c0_17 = arith.constant 0 : index
    %18 = vector.load %arg11[%c0_15, %c0_16, %c0_17] : memref<1x8x1xf32, #tpu.memory_space<vmem>>, vector<1x8x1xf32>
    %19 = vector.shape_cast %18 : vector<1x8x1xf32> to vector<8x1xf32>
    %c0_18 = arith.constant 0 : index
    %c0_19 = arith.constant 0 : index
    %c0_20 = arith.constant 0 : index
    %20 = vector.load %arg10[%c0_18, %c0_19, %c0_20] : memref<1x1x8xf32, #tpu.memory_space<vmem>>, vector<1x1x8xf32>
    %21 = vector.shape_cast %20 : vector<1x1x8xf32> to vector<1x8xf32>
    %22 = vector.broadcast %19 : vector<8x1xf32> to vector<8x8xf32>
    %23 = vector.broadcast %21 : vector<1x8xf32> to vector<8x8xf32>
    %24 = arith.mulf %22, %23 : vector<8x8xf32>
    %c8_i32 = arith.constant 8 : i32
    %25 = arith.muli %arg1, %c8_i32 : i32
    %26 = tpu.iota {dimensions = array<i32: 0>} : vector<8x8xi32>
    %27 = vector.broadcast %25 : i32 to vector<8x8xi32>
    %28 = arith.addi %26, %27 : vector<8x8xi32>
    %29 = tpu.iota {dimensions = array<i32: 1>} : vector<8x8xi32>
    %30 = arith.cmpi sle, %29, %28 : vector<8x8xi32>
    %31 = arith.extui %30 : vector<8x8xi1> to vector<8x8xi32>
    %32 = arith.sitofp %31 : vector<8x8xi32> to vector<8x8xf32>
    %33 = arith.mulf %24, %32 : vector<8x8xf32>
    %34 = vector.extract_strided_slice %15 {offsets = [0, 0], sizes = [8, 8], strides = [1, 1]} : vector<8x32xf32> to vector<8x8xf32>
    %35 = arith.truncf %34 : vector<8x8xf32> to vector<8x8xbf16>
    %36 = vector.extract_strided_slice %16 {offsets = [0, 0], sizes = [8, 8], strides = [1, 1]} : vector<8x32xf32> to vector<8x8xf32>
    %37 = arith.truncf %36 : vector<8x8xf32> to vector<8x8xbf16>
    %38 = vector.extract_strided_slice %17 {offsets = [0, 0], sizes = [8, 8], strides = [1, 1]} : vector<8x32xf32> to vector<8x8xf32>
    %39 = arith.truncf %38 : vector<8x8xf32> to vector<8x8xbf16>
    %cst_21 = arith.constant dense<0.000000e+00> : vector<8x8xf32>
    %40 = tpu.matmul %35, %37, %cst_21 {dimension_numbers = #tpu.dot_dimension_numbers<[1], [1], [0], [0], [0, 0, 1, 0], [], []>} : vector<8x8xbf16>, vector<8x8xbf16>, vector<8x8xf32> -> vector<8x8xf32>
    %cst_22 = arith.constant 0.000000e+00 : f32
    %41 = vector.broadcast %cst_22 : f32 to vector<8x8xf32>
    %42 = arith.cmpf ogt, %33, %41 : vector<8x8xf32>
    %cst_23 = arith.constant -1.000000e+10 : f32
    %43 = vector.broadcast %cst_23 : f32 to vector<8x8xf32>
    %44 = arith.select %42, %40, %43 : vector<8x8xi1>, vector<8x8xf32>
    %cst_24 = arith.constant dense<0xFF800000> : vector<8xf32>
    %45 = vector.multi_reduction <maximumf>, %44, %cst_24 [1] : vector<8x8xf32> to vector<8xf32>
    %46 = vector.shape_cast %45 : vector<8xf32> to vector<8x1xf32>
    %47 = vector.broadcast %46 : vector<8x1xf32> to vector<8x8xf32>
    %48 = arith.subf %44, %47 : vector<8x8xf32>
    %49 = math.exp %48 : vector<8x8xf32>
    %cst_25 = arith.constant dense<0.000000e+00> : vector<8xf32>
    %50 = vector.multi_reduction <add>, %49, %cst_25 [1] : vector<8x8xf32> to vector<8xf32>
    %51 = vector.shape_cast %50 : vector<8xf32> to vector<8x1xf32>
    %52 = tpu.reciprocal %51 {approx = true} : vector<8x1xf32> -> vector<8x1xf32>
    %53 = vector.broadcast %52 : vector<8x1xf32> to vector<8x8xf32>
    %54 = arith.mulf %49, %53 : vector<8x8xf32>
    %55 = arith.truncf %54 : vector<8x8xf32> to vector<8x8xbf16>
    %cst_26 = arith.constant dense<0.000000e+00> : vector<8x8xf32>
    %56 = tpu.matmul %55, %39, %cst_26 {dimension_numbers = #tpu.dot_dimension_numbers<[1], [0], [0], [1], [0, 0, 1, 1], [], []>} : vector<8x8xbf16>, vector<8x8xbf16>, vector<8x8xf32> -> vector<8x8xf32>
    %c0_27 = arith.constant 0 : index
    %c0_28 = arith.constant 0 : index
    %57 = vector.load %arg15[%c0_27, %c0_28] : memref<8x32xf32, #tpu.memory_space<vmem>>, vector<8x8xf32>
    tpu.vector_store %arg15[%c0_27, %c0_28], %56 {strides = array<i32>} : memref<8x32xf32, #tpu.memory_space<vmem>>, vector<8x8xf32>,
    %58 = vector.extract_strided_slice %15 {offsets = [0, 8], sizes = [8, 8], strides = [1, 1]} : vector<8x32xf32> to vector<8x8xf32>
    %59 = arith.truncf %58 : vector<8x8xf32> to vector<8x8xbf16>
    %60 = vector.extract_strided_slice %16 {offsets = [0, 8], sizes = [8, 8], strides = [1, 1]} : vector<8x32xf32> to vector<8x8xf32>
    %61 = arith.truncf %60 : vector<8x8xf32> to vector<8x8xbf16>
    %62 = vector.extract_strided_slice %17 {offsets = [0, 8], sizes = [8, 8], strides = [1, 1]} : vector<8x32xf32> to vector<8x8xf32>
    %63 = arith.truncf %62 : vector<8x8xf32> to vector<8x8xbf16>
    %cst_29 = arith.constant dense<0.000000e+00> : vector<8x8xf32>
    %64 = tpu.matmul %59, %61, %cst_29 {dimension_numbers = #tpu.dot_dimension_numbers<[1], [1], [0], [0], [0, 0, 1, 0], [], []>} : vector<8x8xbf16>, vector<8x8xbf16>, vector<8x8xf32> -> vector<8x8xf32>
    %cst_30 = arith.constant 0.000000e+00 : f32
    %65 = vector.broadcast %cst_30 : f32 to vector<8x8xf32>
    %66 = arith.cmpf ogt, %33, %65 : vector<8x8xf32>
    %cst_31 = arith.constant -1.000000e+10 : f32
    %67 = vector.broadcast %cst_31 : f32 to vector<8x8xf32>
    %68 = arith.select %66, %64, %67 : vector<8x8xi1>, vector<8x8xf32>
    %cst_32 = arith.constant dense<0xFF800000> : vector<8xf32>
    %69 = vector.multi_reduction <maximumf>, %68, %cst_32 [1] : vector<8x8xf32> to vector<8xf32>
    %70 = vector.shape_cast %69 : vector<8xf32> to vector<8x1xf32>
    %71 = vector.broadcast %70 : vector<8x1xf32> to vector<8x8xf32>
    %72 = arith.subf %68, %71 : vector<8x8xf32>
    %73 = math.exp %72 : vector<8x8xf32>
    %cst_33 = arith.constant dense<0.000000e+00> : vector<8xf32>
    %74 = vector.multi_reduction <add>, %73, %cst_33 [1] : vector<8x8xf32> to vector<8xf32>
    %75 = vector.shape_cast %74 : vector<8xf32> to vector<8x1xf32>
    %76 = tpu.reciprocal %75 {approx = true} : vector<8x1xf32> -> vector<8x1xf32>
    %77 = vector.broadcast %76 : vector<8x1xf32> to vector<8x8xf32>
    %78 = arith.mulf %73, %77 : vector<8x8xf32>
    %79 = arith.truncf %78 : vector<8x8xf32> to vector<8x8xbf16>
    %cst_34 = arith.constant dense<0.000000e+00> : vector<8x8xf32>
    %80 = tpu.matmul %79, %63, %cst_34 {dimension_numbers = #tpu.dot_dimension_numbers<[1], [0], [0], [1], [0, 0, 1, 1], [], []>} : vector<8x8xbf16>, vector<8x8xbf16>, vector<8x8xf32> -> vector<8x8xf32>
    %c0_35 = arith.constant 0 : index
    %c8 = arith.constant 8 : index
    %81 = vector.load %arg15[%c0_35, %c8] : memref<8x32xf32, #tpu.memory_space<vmem>>, vector<8x8xf32>
    tpu.vector_store %arg15[%c0_35, %c8], %80 {strides = array<i32>} : memref<8x32xf32, #tpu.memory_space<vmem>>, vector<8x8xf32>,
    %82 = vector.extract_strided_slice %15 {offsets = [0, 16], sizes = [8, 8], strides = [1, 1]} : vector<8x32xf32> to vector<8x8xf32>
    %83 = arith.truncf %82 : vector<8x8xf32> to vector<8x8xbf16>
    %84 = vector.extract_strided_slice %16 {offsets = [0, 16], sizes = [8, 8], strides = [1, 1]} : vector<8x32xf32> to vector<8x8xf32>
    %85 = arith.truncf %84 : vector<8x8xf32> to vector<8x8xbf16>
    %86 = vector.extract_strided_slice %17 {offsets = [0, 16], sizes = [8, 8], strides = [1, 1]} : vector<8x32xf32> to vector<8x8xf32>
    %87 = arith.truncf %86 : vector<8x8xf32> to vector<8x8xbf16>
    %cst_36 = arith.constant dense<0.000000e+00> : vector<8x8xf32>
    %88 = tpu.matmul %83, %85, %cst_36 {dimension_numbers = #tpu.dot_dimension_numbers<[1], [1], [0], [0], [0, 0, 1, 0], [], []>} : vector<8x8xbf16>, vector<8x8xbf16>, vector<8x8xf32> -> vector<8x8xf32>
    %cst_37 = arith.constant 0.000000e+00 : f32
    %89 = vector.broadcast %cst_37 : f32 to vector<8x8xf32>
    %90 = arith.cmpf ogt, %33, %89 : vector<8x8xf32>
    %cst_38 = arith.constant -1.000000e+10 : f32
    %91 = vector.broadcast %cst_38 : f32 to vector<8x8xf32>
    %92 = arith.select %90, %88, %91 : vector<8x8xi1>, vector<8x8xf32>
    %cst_39 = arith.constant dense<0xFF800000> : vector<8xf32>
    %93 = vector.multi_reduction <maximumf>, %92, %cst_39 [1] : vector<8x8xf32> to vector<8xf32>
    %94 = vector.shape_cast %93 : vector<8xf32> to vector<8x1xf32>
    %95 = vector.broadcast %94 : vector<8x1xf32> to vector<8x8xf32>
    %96 = arith.subf %92, %95 : vector<8x8xf32>
    %97 = math.exp %96 : vector<8x8xf32>
    %cst_40 = arith.constant dense<0.000000e+00> : vector<8xf32>
    %98 = vector.multi_reduction <add>, %97, %cst_40 [1] : vector<8x8xf32> to vector<8xf32>
    %99 = vector.shape_cast %98 : vector<8xf32> to vector<8x1xf32>
    %100 = tpu.reciprocal %99 {approx = true} : vector<8x1xf32> -> vector<8x1xf32>
    %101 = vector.broadcast %100 : vector<8x1xf32> to vector<8x8xf32>
    %102 = arith.mulf %97, %101 : vector<8x8xf32>
    %103 = arith.truncf %102 : vector<8x8xf32> to vector<8x8xbf16>
    %cst_41 = arith.constant dense<0.000000e+00> : vector<8x8xf32>
    %104 = tpu.matmul %103, %87, %cst_41 {dimension_numbers = #tpu.dot_dimension_numbers<[1], [0], [0], [1], [0, 0, 1, 1], [], []>} : vector<8x8xbf16>, vector<8x8xbf16>, vector<8x8xf32> -> vector<8x8xf32>
    %c0_42 = arith.constant 0 : index
    %c16 = arith.constant 16 : index
    %105 = vector.load %arg15[%c0_42, %c16] : memref<8x32xf32, #tpu.memory_space<vmem>>, vector<8x8xf32>
    tpu.vector_store %arg15[%c0_42, %c16], %104 {strides = array<i32>} : memref<8x32xf32, #tpu.memory_space<vmem>>, vector<8x8xf32>,
    %106 = vector.extract_strided_slice %15 {offsets = [0, 24], sizes = [8, 8], strides = [1, 1]} : vector<8x32xf32> to vector<8x8xf32>
    %107 = arith.truncf %106 : vector<8x8xf32> to vector<8x8xbf16>
    %108 = vector.extract_strided_slice %16 {offsets = [0, 24], sizes = [8, 8], strides = [1, 1]} : vector<8x32xf32> to vector<8x8xf32>
    %109 = arith.truncf %108 : vector<8x8xf32> to vector<8x8xbf16>
    %110 = vector.extract_strided_slice %17 {offsets = [0, 24], sizes = [8, 8], strides = [1, 1]} : vector<8x32xf32> to vector<8x8xf32>
    %111 = arith.truncf %110 : vector<8x8xf32> to vector<8x8xbf16>
    %cst_43 = arith.constant dense<0.000000e+00> : vector<8x8xf32>
    %112 = tpu.matmul %107, %109, %cst_43 {dimension_numbers = #tpu.dot_dimension_numbers<[1], [1], [0], [0], [0, 0, 1, 0], [], []>} : vector<8x8xbf16>, vector<8x8xbf16>, vector<8x8xf32> -> vector<8x8xf32>
    %cst_44 = arith.constant 0.000000e+00 : f32
    %113 = vector.broadcast %cst_44 : f32 to vector<8x8xf32>
    %114 = arith.cmpf ogt, %33, %113 : vector<8x8xf32>
    %cst_45 = arith.constant -1.000000e+10 : f32
    %115 = vector.broadcast %cst_45 : f32 to vector<8x8xf32>
    %116 = arith.select %114, %112, %115 : vector<8x8xi1>, vector<8x8xf32>
    %cst_46 = arith.constant dense<0xFF800000> : vector<8xf32>
    %117 = vector.multi_reduction <maximumf>, %116, %cst_46 [1] : vector<8x8xf32> to vector<8xf32>
    %118 = vector.shape_cast %117 : vector<8xf32> to vector<8x1xf32>
    %119 = vector.broadcast %118 : vector<8x1xf32> to vector<8x8xf32>
    %120 = arith.subf %116, %119 : vector<8x8xf32>
    %121 = math.exp %120 : vector<8x8xf32>
    %cst_47 = arith.constant dense<0.000000e+00> : vector<8xf32>
    %122 = vector.multi_reduction <add>, %121, %cst_47 [1] : vector<8x8xf32> to vector<8xf32>
    %123 = vector.shape_cast %122 : vector<8xf32> to vector<8x1xf32>
    %124 = tpu.reciprocal %123 {approx = true} : vector<8x1xf32> -> vector<8x1xf32>
    %125 = vector.broadcast %124 : vector<8x1xf32> to vector<8x8xf32>
    %126 = arith.mulf %121, %125 : vector<8x8xf32>
    %127 = arith.truncf %126 : vector<8x8xf32> to vector<8x8xbf16>
    %cst_48 = arith.constant dense<0.000000e+00> : vector<8x8xf32>
    %128 = tpu.matmul %127, %111, %cst_48 {dimension_numbers = #tpu.dot_dimension_numbers<[1], [0], [0], [1], [0, 0, 1, 1], [], []>} : vector<8x8xbf16>, vector<8x8xbf16>, vector<8x8xf32> -> vector<8x8xf32>
    %c0_49 = arith.constant 0 : index
    %c24 = arith.constant 24 : index
    %129 = vector.load %arg15[%c0_49, %c24] : memref<8x32xf32, #tpu.memory_space<vmem>>, vector<8x8xf32>
    tpu.vector_store %arg15[%c0_49, %c24], %128 {strides = array<i32>} : memref<8x32xf32, #tpu.memory_space<vmem>>, vector<8x8xf32>,
    %c0_50 = arith.constant 0 : index
    %c0_51 = arith.constant 0 : index
    %130 = vector.load %arg15[%c0_50, %c0_51] : memref<8x32xf32, #tpu.memory_space<vmem>>, vector<8x32xf32>
    %131 = arith.truncf %130 : vector<8x32xf32> to vector<8x32xbf16>
    %c0_52 = arith.constant 0 : index
    %c0_53 = arith.constant 0 : index
    %132 = vector.load %arg8[%c0_52, %c0_53] : memref<32x32xbf16, #tpu.memory_space<vmem>>, vector<32x32xbf16>
    %cst_54 = arith.constant dense<0.000000e+00> : vector<8x32xf32>
    %133 = tpu.matmul %131, %132, %cst_54 {dimension_numbers = #tpu.dot_dimension_numbers<[1], [0], [0], [1], [0, 0, 1, 1], [], []>} : vector<8x32xbf16>, vector<32x32xbf16>, vector<8x32xf32> -> vector<8x32xf32>
    %c0_55 = arith.constant 0 : index
    %c0_56 = arith.constant 0 : index
    %134 = vector.load %arg9[%c0_55, %c0_56] : memref<1x32xf32, #tpu.memory_space<vmem>>, vector<1x32xf32>
    %135 = vector.broadcast %134 : vector<1x32xf32> to vector<8x32xf32>
    %136 = arith.addf %133, %135 : vector<8x32xf32>
    %137 = arith.extf %1 : vector<8x32xbf16> to vector<8x32xf32>
    %138 = arith.addf %137, %136 : vector<8x32xf32>
    %c0_57 = arith.constant 0 : index
    %c0_58 = arith.constant 0 : index
    %139 = vector.load %arg12[%c0_57, %c0_58] : memref<1x32xf32, #tpu.memory_space<vmem>>, vector<1x32xf32>
    %c0_59 = arith.constant 0 : index
    %c0_60 = arith.constant 0 : index
    %140 = vector.load %arg13[%c0_59, %c0_60] : memref<1x32xf32, #tpu.memory_space<vmem>>, vector<1x32xf32>
    %cst_61 = arith.constant dense<0.000000e+00> : vector<8xf32>
    %141 = vector.multi_reduction <add>, %138, %cst_61 [1] : vector<8x32xf32> to vector<8xf32>
    %142 = vector.shape_cast %141 : vector<8xf32> to vector<8x1xf32>
    %cst_62 = arith.constant 3.200000e+01 : f32
    %143 = vector.broadcast %cst_62 : f32 to vector<8x1xf32>
    %144 = arith.divf %142, %143 : vector<8x1xf32>
    %145 = vector.broadcast %144 : vector<8x1xf32> to vector<8x32xf32>
    %146 = arith.subf %138, %145 : vector<8x32xf32>
    %147 = arith.mulf %146, %146 : vector<8x32xf32>
    %cst_63 = arith.constant dense<0.000000e+00> : vector<8xf32>
    %148 = vector.multi_reduction <add>, %147, %cst_63 [1] : vector<8x32xf32> to vector<8xf32>
    %149 = vector.shape_cast %148 : vector<8xf32> to vector<8x1xf32>
    %cst_64 = arith.constant 3.200000e+01 : f32
    %150 = vector.broadcast %cst_64 : f32 to vector<8x1xf32>
    %151 = arith.divf %149, %150 : vector<8x1xf32>
    %152 = vector.broadcast %144 : vector<8x1xf32> to vector<8x32xf32>
    %153 = arith.subf %138, %152 : vector<8x32xf32>
    %cst_65 = arith.constant 9.99999974E-6 : f32
    %154 = vector.broadcast %cst_65 : f32 to vector<8x1xf32>
    %155 = arith.addf %151, %154 : vector<8x1xf32>
    %156 = math.rsqrt %155 : vector<8x1xf32>
    %157 = vector.broadcast %156 : vector<8x1xf32> to vector<8x32xf32>
    %158 = arith.mulf %153, %157 : vector<8x32xf32>
    %159 = vector.broadcast %139 : vector<1x32xf32> to vector<8x32xf32>
    %160 = arith.mulf %158, %159 : vector<8x32xf32>
    %161 = vector.broadcast %140 : vector<1x32xf32> to vector<8x32xf32>
    %162 = arith.addf %160, %161 : vector<8x32xf32>
    %163 = arith.truncf %162 : vector<8x32xf32> to vector<8x32xbf16>
    %c0_66 = arith.constant 0 : index
    %c0_67 = arith.constant 0 : index
    %c0_68 = arith.constant 0 : index
    %164 = vector.load %arg14[%c0_66, %c0_67, %c0_68] : memref<1x8x32xbf16, #tpu.memory_space<vmem>>, vector<1x8x32xbf16>
    %165 = vector.shape_cast %164 : vector<1x8x32xbf16> to vector<8x32xbf16>
    %166 = vector.shape_cast %163 : vector<8x32xbf16> to vector<1x8x32xbf16>
    tpu.vector_store %arg14[%c0_66, %c0_67, %c0_68], %166 {strides = array<i32>} : memref<1x8x32xbf16, #tpu.memory_space<vmem>>, vector<1x8x32xbf16>,
    return
  }
  func.func @transform_0(%arg0: i32, %arg1: i32) -> (i32, i32, i32) {
    %c0_i32 = arith.constant 0 : i32
    %c0_i32_0 = arith.constant 0 : i32
    return %arg0, %arg1, %c0_i32 : i32, i32, i32
  }
  func.func @transform_1(%arg0: i32, %arg1: i32) -> (i32, i32, i32) {
    %c0_i32 = arith.constant 0 : i32
    %c0_i32_0 = arith.constant 0 : i32
    %c0_i32_1 = arith.constant 0 : i32
    return %arg0, %c0_i32, %c0_i32_0 : i32, i32, i32
  }
  func.func @transform_2(%arg0: i32, %arg1: i32) -> (i32, i32) {
    %c0_i32 = arith.constant 0 : i32
    %c0_i32_0 = arith.constant 0 : i32
    %c0_i32_1 = arith.constant 0 : i32
    return %c0_i32, %c0_i32_0 : i32, i32
  }
  func.func @transform_3(%arg0: i32, %arg1: i32) -> (i32, i32) {
    %c0_i32 = arith.constant 0 : i32
    %c0_i32_0 = arith.constant 0 : i32
    %c0_i32_1 = arith.constant 0 : i32
    return %c0_i32, %c0_i32_0 : i32, i32
  }
  func.func @transform_4(%arg0: i32, %arg1: i32) -> (i32, i32) {
    %c0_i32 = arith.constant 0 : i32
    %c0_i32_0 = arith.constant 0 : i32
    %c0_i32_1 = arith.constant 0 : i32
    return %c0_i32, %c0_i32_0 : i32, i32
  }
  func.func @transform_5(%arg0: i32, %arg1: i32) -> (i32, i32) {
    %c0_i32 = arith.constant 0 : i32
    %c0_i32_0 = arith.constant 0 : i32
    %c0_i32_1 = arith.constant 0 : i32
    return %c0_i32, %c0_i32_0 : i32, i32
  }
  func.func @transform_6(%arg0: i32, %arg1: i32) -> (i32, i32) {
    %c0_i32 = arith.constant 0 : i32
    %c0_i32_0 = arith.constant 0 : i32
    %c0_i32_1 = arith.constant 0 : i32
    return %c0_i32, %c0_i32_0 : i32, i32
  }
  func.func @transform_7(%arg0: i32, %arg1: i32) -> (i32, i32) {
    %c0_i32 = arith.constant 0 : i32
    %c0_i32_0 = arith.constant 0 : i32
    %c0_i32_1 = arith.constant 0 : i32
    return %c0_i32, %c0_i32_0 : i32, i32
  }
  func.func @transform_8(%arg0: i32, %arg1: i32) -> (i32, i32, i32) {
    %c0_i32 = arith.constant 0 : i32
    %c0_i32_0 = arith.constant 0 : i32
    %c0_i32_1 = arith.constant 0 : i32
    return %arg0, %c0_i32, %c0_i32_0 : i32, i32, i32
  }
  func.func @transform_9(%arg0: i32, %arg1: i32) -> (i32, i32, i32) {
    %c0_i32 = arith.constant 0 : i32
    %c0_i32_0 = arith.constant 0 : i32
    return %arg0, %arg1, %c0_i32 : i32, i32, i32
  }
  func.func @transform_10(%arg0: i32, %arg1: i32) -> (i32, i32) {
    %c0_i32 = arith.constant 0 : i32
    %c0_i32_0 = arith.constant 0 : i32
    %c0_i32_1 = arith.constant 0 : i32
    return %c0_i32, %c0_i32_0 : i32, i32
  }
  func.func @transform_11(%arg0: i32, %arg1: i32) -> (i32, i32) {
    %c0_i32 = arith.constant 0 : i32
    %c0_i32_0 = arith.constant 0 : i32
    %c0_i32_1 = arith.constant 0 : i32
    return %c0_i32, %c0_i32_0 : i32, i32
  }
  func.func @transform_12(%arg0: i32, %arg1: i32) -> (i32, i32, i32) {
    %c0_i32 = arith.constant 0 : i32
    %c0_i32_0 = arith.constant 0 : i32
    return %arg0, %arg1, %c0_i32 : i32, i32, i32
  }
}

module attributes {stable_mosaic.version = 11 : i64} {
  func.func @_attn_sublayer_kernel(%arg0: i32, %arg1: i32, %arg2: memref<1x8x32xbf16, #tpu.memory_space<vmem>>, %arg3: memref<1x8x32xbf16, #tpu.memory_space<vmem>>, %arg4: memref<32x32xbf16, #tpu.memory_space<vmem>>, %arg5: memref<1x32xf32, #tpu.memory_space<vmem>>, %arg6: memref<32x64xbf16, #tpu.memory_space<vmem>>, %arg7: memref<1x64xf32, #tpu.memory_space<vmem>>, %arg8: memref<32x32xbf16, #tpu.memory_space<vmem>>, %arg9: memref<1x32xf32, #tpu.memory_space<vmem>>, %arg10: memref<1x1x8xf32, #tpu.memory_space<vmem>>, %arg11: memref<1x8x1xf32, #tpu.memory_space<vmem>>, %arg12: memref<1x32xf32, #tpu.memory_space<vmem>>, %arg13: memref<1x32xf32, #tpu.memory_space<vmem>>, %arg14: memref<1x8x32xbf16, #tpu.memory_space<vmem>>, %arg15: memref<8x32xf32, #tpu.memory_space<vmem>>) attributes {dimension_semantics = [#tpu.dimension_semantics<parallel>, #tpu.dimension_semantics<parallel>], iteration_bounds = array<i64: 2, 1>, scalar_prefetch = 0 : i64, scratch_operands = 1 : i64, tpu.core_type = #tpu.core_type<tc>, window_params = [{transform_indices = @transform_0, window_bounds = array<i64: 1, 8, 32>}, {transform_indices = @transform_1, window_bounds = array<i64: 1, 8, 32>}, {pipeline_mode = #tpu.pipeline_mode<synchronous>, transform_indices = @transform_2, window_bounds = array<i64: 32, 32>}, {pipeline_mode = #tpu.pipeline_mode<synchronous>, transform_indices = @transform_3, window_bounds = array<i64: 1, 32>}, {pipeline_mode = #tpu.pipeline_mode<synchronous>, transform_indices = @transform_4, window_bounds = array<i64: 32, 64>}, {pipeline_mode = #tpu.pipeline_mode<synchronous>, transform_indices = @transform_5, window_bounds = array<i64: 1, 64>}, {pipeline_mode = #tpu.pipeline_mode<synchronous>, transform_indices = @transform_6, window_bounds = array<i64: 32, 32>}, {pipeline_mode = #tpu.pipeline_mode<synchronous>, transform_indices = @transform_7, window_bounds = array<i64: 1, 32>}, {transform_indices = @transform_8, window_bounds = array<i64: 1, 1, 8>}, {transform_indices = @transform_9, window_bounds = array<i64: 1, 8, 1>}, {pipeline_mode = #tpu.pipeline_mode<synchronous>, transform_indices = @transform_10, window_bounds = array<i64: 1, 32>}, {pipeline_mode = #tpu.pipeline_mode<synchronous>, transform_indices = @transform_11, window_bounds = array<i64: 1, 32>}, {transform_indices = @transform_12, window_bounds = array<i64: 1, 8, 32>}]} {
    %c0 = arith.constant 0 : index
    %c0_0 = arith.constant 0 : index
    %c0_1 = arith.constant 0 : index
    %0 = vector.load %arg2[%c0, %c0_0, %c0_1] : memref<1x8x32xbf16, #tpu.memory_space<vmem>>, vector<1x8x32xbf16>
    %1 = vector.shape_cast %0 : vector<1x8x32xbf16> to vector<8x32xbf16>
    %c0_2 = arith.constant 0 : index
    %c0_3 = arith.constant 0 : index
    %c0_4 = arith.constant 0 : index
    %2 = vector.load %arg3[%c0_2, %c0_3, %c0_4] : memref<1x8x32xbf16, #tpu.memory_space<vmem>>, vector<1x8x32xbf16>
    %3 = vector.shape_cast %2 : vector<1x8x32xbf16> to vector<8x32xbf16>
    %c0_5 = arith.constant 0 : index
    %c0_6 = arith.constant 0 : index
    %4 = vector.load %arg4[%c0_5, %c0_6] : memref<32x32xbf16, #tpu.memory_space<vmem>>, vector<32x32xbf16>
    %cst = arith.constant dense<0.000000e+00> : vector<8x32xf32>
    %5 = tpu.matmul %1, %4, %cst {dimension_numbers = #tpu.dot_dimension_numbers<[1], [0], [0], [1], [0, 0, 1, 1], [], []>} : vector<8x32xbf16>, vector<32x32xbf16>, vector<8x32xf32> -> vector<8x32xf32>
    %c0_7 = arith.constant 0 : index
    %c0_8 = arith.constant 0 : index
    %6 = vector.load %arg5[%c0_7, %c0_8] : memref<1x32xf32, #tpu.memory_space<vmem>>, vector<1x32xf32>
    %7 = vector.broadcast %6 : vector<1x32xf32> to vector<8x32xf32>
    %8 = arith.addf %5, %7 : vector<8x32xf32>
    %c0_9 = arith.constant 0 : index
    %c0_10 = arith.constant 0 : index
    %9 = vector.load %arg6[%c0_9, %c0_10] : memref<32x64xbf16, #tpu.memory_space<vmem>>, vector<32x64xbf16>
    %cst_11 = arith.constant dense<0.000000e+00> : vector<8x64xf32>
    %10 = tpu.matmul %3, %9, %cst_11 {dimension_numbers = #tpu.dot_dimension_numbers<[1], [0], [0], [1], [0, 0, 1, 1], [], []>} : vector<8x32xbf16>, vector<32x64xbf16>, vector<8x64xf32> -> vector<8x64xf32>
    %c0_12 = arith.constant 0 : index
    %c0_13 = arith.constant 0 : index
    %11 = vector.load %arg7[%c0_12, %c0_13] : memref<1x64xf32, #tpu.memory_space<vmem>>, vector<1x64xf32>
    %12 = vector.broadcast %11 : vector<1x64xf32> to vector<8x64xf32>
    %13 = arith.addf %10, %12 : vector<8x64xf32>
    %cst_14 = arith.constant 0.353553385 : f32
    %14 = vector.broadcast %cst_14 : f32 to vector<8x32xf32>
    %15 = arith.mulf %8, %14 : vector<8x32xf32>
    %16 = vector.extract_strided_slice %13 {offsets = [0, 0], sizes = [8, 32], strides = [1, 1]} : vector<8x64xf32> to vector<8x32xf32>
    %17 = vector.extract_strided_slice %13 {offsets = [0, 32], sizes = [8, 32], strides = [1, 1]} : vector<8x64xf32> to vector<8x32xf32>
    %c0_15 = arith.constant 0 : index
    %c0_16 = arith.constant 0 : index
    %c0_17 = arith.constant 0 : index
    %18 = vector.load %arg11[%c0_15, %c0_16, %c0_17] : memref<1x8x1xf32, #tpu.memory_space<vmem>>, vector<1x8x1xf32>
    %19 = vector.shape_cast %18 : vector<1x8x1xf32> to vector<8x1xf32>
    %c0_18 = arith.constant 0 : index
    %c0_19 = arith.constant 0 : index
    %c0_20 = arith.constant 0 : index
    %20 = vector.load %arg10[%c0_18, %c0_19, %c0_20] : memref<1x1x8xf32, #tpu.memory_space<vmem>>, vector<1x1x8xf32>
    %21 = vector.shape_cast %20 : vector<1x1x8xf32> to vector<1x8xf32>
    %22 = vector.broadcast %19 : vector<8x1xf32> to vector<8x8xf32>
    %23 = vector.broadcast %21 : vector<1x8xf32> to vector<8x8xf32>
    %24 = arith.mulf %22, %23 : vector<8x8xf32>
    %25 = vector.extract_strided_slice %15 {offsets = [0, 0], sizes = [8, 8], strides = [1, 1]} : vector<8x32xf32> to vector<8x8xf32>
    %26 = arith.truncf %25 : vector<8x8xf32> to vector<8x8xbf16>
    %27 = vector.extract_strided_slice %16 {offsets = [0, 0], sizes = [8, 8], strides = [1, 1]} : vector<8x32xf32> to vector<8x8xf32>
    %28 = arith.truncf %27 : vector<8x8xf32> to vector<8x8xbf16>
    %29 = vector.extract_strided_slice %17 {offsets = [0, 0], sizes = [8, 8], strides = [1, 1]} : vector<8x32xf32> to vector<8x8xf32>
    %30 = arith.truncf %29 : vector<8x8xf32> to vector<8x8xbf16>
    %cst_21 = arith.constant dense<0.000000e+00> : vector<8x8xf32>
    %31 = tpu.matmul %26, %28, %cst_21 {dimension_numbers = #tpu.dot_dimension_numbers<[1], [1], [0], [0], [0, 0, 1, 0], [], []>} : vector<8x8xbf16>, vector<8x8xbf16>, vector<8x8xf32> -> vector<8x8xf32>
    %cst_22 = arith.constant 0.000000e+00 : f32
    %32 = vector.broadcast %cst_22 : f32 to vector<8x8xf32>
    %33 = arith.cmpf ogt, %24, %32 : vector<8x8xf32>
    %cst_23 = arith.constant -1.000000e+10 : f32
    %34 = vector.broadcast %cst_23 : f32 to vector<8x8xf32>
    %35 = arith.select %33, %31, %34 : vector<8x8xi1>, vector<8x8xf32>
    %cst_24 = arith.constant dense<0xFF800000> : vector<8xf32>
    %36 = vector.multi_reduction <maximumf>, %35, %cst_24 [1] : vector<8x8xf32> to vector<8xf32>
    %37 = vector.shape_cast %36 : vector<8xf32> to vector<8x1xf32>
    %38 = vector.broadcast %37 : vector<8x1xf32> to vector<8x8xf32>
    %39 = arith.subf %35, %38 : vector<8x8xf32>
    %40 = math.exp %39 : vector<8x8xf32>
    %cst_25 = arith.constant dense<0.000000e+00> : vector<8xf32>
    %41 = vector.multi_reduction <add>, %40, %cst_25 [1] : vector<8x8xf32> to vector<8xf32>
    %42 = vector.shape_cast %41 : vector<8xf32> to vector<8x1xf32>
    %43 = tpu.reciprocal %42 {approx = true} : vector<8x1xf32> -> vector<8x1xf32>
    %44 = vector.broadcast %43 : vector<8x1xf32> to vector<8x8xf32>
    %45 = arith.mulf %40, %44 : vector<8x8xf32>
    %46 = arith.truncf %45 : vector<8x8xf32> to vector<8x8xbf16>
    %cst_26 = arith.constant dense<0.000000e+00> : vector<8x8xf32>
    %47 = tpu.matmul %46, %30, %cst_26 {dimension_numbers = #tpu.dot_dimension_numbers<[1], [0], [0], [1], [0, 0, 1, 1], [], []>} : vector<8x8xbf16>, vector<8x8xbf16>, vector<8x8xf32> -> vector<8x8xf32>
    %c0_27 = arith.constant 0 : index
    %c0_28 = arith.constant 0 : index
    %48 = vector.load %arg15[%c0_27, %c0_28] : memref<8x32xf32, #tpu.memory_space<vmem>>, vector<8x8xf32>
    tpu.vector_store %arg15[%c0_27, %c0_28], %47 {strides = array<i32>} : memref<8x32xf32, #tpu.memory_space<vmem>>, vector<8x8xf32>,
    %49 = vector.extract_strided_slice %15 {offsets = [0, 8], sizes = [8, 8], strides = [1, 1]} : vector<8x32xf32> to vector<8x8xf32>
    %50 = arith.truncf %49 : vector<8x8xf32> to vector<8x8xbf16>
    %51 = vector.extract_strided_slice %16 {offsets = [0, 8], sizes = [8, 8], strides = [1, 1]} : vector<8x32xf32> to vector<8x8xf32>
    %52 = arith.truncf %51 : vector<8x8xf32> to vector<8x8xbf16>
    %53 = vector.extract_strided_slice %17 {offsets = [0, 8], sizes = [8, 8], strides = [1, 1]} : vector<8x32xf32> to vector<8x8xf32>
    %54 = arith.truncf %53 : vector<8x8xf32> to vector<8x8xbf16>
    %cst_29 = arith.constant dense<0.000000e+00> : vector<8x8xf32>
    %55 = tpu.matmul %50, %52, %cst_29 {dimension_numbers = #tpu.dot_dimension_numbers<[1], [1], [0], [0], [0, 0, 1, 0], [], []>} : vector<8x8xbf16>, vector<8x8xbf16>, vector<8x8xf32> -> vector<8x8xf32>
    %cst_30 = arith.constant 0.000000e+00 : f32
    %56 = vector.broadcast %cst_30 : f32 to vector<8x8xf32>
    %57 = arith.cmpf ogt, %24, %56 : vector<8x8xf32>
    %cst_31 = arith.constant -1.000000e+10 : f32
    %58 = vector.broadcast %cst_31 : f32 to vector<8x8xf32>
    %59 = arith.select %57, %55, %58 : vector<8x8xi1>, vector<8x8xf32>
    %cst_32 = arith.constant dense<0xFF800000> : vector<8xf32>
    %60 = vector.multi_reduction <maximumf>, %59, %cst_32 [1] : vector<8x8xf32> to vector<8xf32>
    %61 = vector.shape_cast %60 : vector<8xf32> to vector<8x1xf32>
    %62 = vector.broadcast %61 : vector<8x1xf32> to vector<8x8xf32>
    %63 = arith.subf %59, %62 : vector<8x8xf32>
    %64 = math.exp %63 : vector<8x8xf32>
    %cst_33 = arith.constant dense<0.000000e+00> : vector<8xf32>
    %65 = vector.multi_reduction <add>, %64, %cst_33 [1] : vector<8x8xf32> to vector<8xf32>
    %66 = vector.shape_cast %65 : vector<8xf32> to vector<8x1xf32>
    %67 = tpu.reciprocal %66 {approx = true} : vector<8x1xf32> -> vector<8x1xf32>
    %68 = vector.broadcast %67 : vector<8x1xf32> to vector<8x8xf32>
    %69 = arith.mulf %64, %68 : vector<8x8xf32>
    %70 = arith.truncf %69 : vector<8x8xf32> to vector<8x8xbf16>
    %cst_34 = arith.constant dense<0.000000e+00> : vector<8x8xf32>
    %71 = tpu.matmul %70, %54, %cst_34 {dimension_numbers = #tpu.dot_dimension_numbers<[1], [0], [0], [1], [0, 0, 1, 1], [], []>} : vector<8x8xbf16>, vector<8x8xbf16>, vector<8x8xf32> -> vector<8x8xf32>
    %c0_35 = arith.constant 0 : index
    %c8 = arith.constant 8 : index
    %72 = vector.load %arg15[%c0_35, %c8] : memref<8x32xf32, #tpu.memory_space<vmem>>, vector<8x8xf32>
    tpu.vector_store %arg15[%c0_35, %c8], %71 {strides = array<i32>} : memref<8x32xf32, #tpu.memory_space<vmem>>, vector<8x8xf32>,
    %73 = vector.extract_strided_slice %15 {offsets = [0, 16], sizes = [8, 8], strides = [1, 1]} : vector<8x32xf32> to vector<8x8xf32>
    %74 = arith.truncf %73 : vector<8x8xf32> to vector<8x8xbf16>
    %75 = vector.extract_strided_slice %16 {offsets = [0, 16], sizes = [8, 8], strides = [1, 1]} : vector<8x32xf32> to vector<8x8xf32>
    %76 = arith.truncf %75 : vector<8x8xf32> to vector<8x8xbf16>
    %77 = vector.extract_strided_slice %17 {offsets = [0, 16], sizes = [8, 8], strides = [1, 1]} : vector<8x32xf32> to vector<8x8xf32>
    %78 = arith.truncf %77 : vector<8x8xf32> to vector<8x8xbf16>
    %cst_36 = arith.constant dense<0.000000e+00> : vector<8x8xf32>
    %79 = tpu.matmul %74, %76, %cst_36 {dimension_numbers = #tpu.dot_dimension_numbers<[1], [1], [0], [0], [0, 0, 1, 0], [], []>} : vector<8x8xbf16>, vector<8x8xbf16>, vector<8x8xf32> -> vector<8x8xf32>
    %cst_37 = arith.constant 0.000000e+00 : f32
    %80 = vector.broadcast %cst_37 : f32 to vector<8x8xf32>
    %81 = arith.cmpf ogt, %24, %80 : vector<8x8xf32>
    %cst_38 = arith.constant -1.000000e+10 : f32
    %82 = vector.broadcast %cst_38 : f32 to vector<8x8xf32>
    %83 = arith.select %81, %79, %82 : vector<8x8xi1>, vector<8x8xf32>
    %cst_39 = arith.constant dense<0xFF800000> : vector<8xf32>
    %84 = vector.multi_reduction <maximumf>, %83, %cst_39 [1] : vector<8x8xf32> to vector<8xf32>
    %85 = vector.shape_cast %84 : vector<8xf32> to vector<8x1xf32>
    %86 = vector.broadcast %85 : vector<8x1xf32> to vector<8x8xf32>
    %87 = arith.subf %83, %86 : vector<8x8xf32>
    %88 = math.exp %87 : vector<8x8xf32>
    %cst_40 = arith.constant dense<0.000000e+00> : vector<8xf32>
    %89 = vector.multi_reduction <add>, %88, %cst_40 [1] : vector<8x8xf32> to vector<8xf32>
    %90 = vector.shape_cast %89 : vector<8xf32> to vector<8x1xf32>
    %91 = tpu.reciprocal %90 {approx = true} : vector<8x1xf32> -> vector<8x1xf32>
    %92 = vector.broadcast %91 : vector<8x1xf32> to vector<8x8xf32>
    %93 = arith.mulf %88, %92 : vector<8x8xf32>
    %94 = arith.truncf %93 : vector<8x8xf32> to vector<8x8xbf16>
    %cst_41 = arith.constant dense<0.000000e+00> : vector<8x8xf32>
    %95 = tpu.matmul %94, %78, %cst_41 {dimension_numbers = #tpu.dot_dimension_numbers<[1], [0], [0], [1], [0, 0, 1, 1], [], []>} : vector<8x8xbf16>, vector<8x8xbf16>, vector<8x8xf32> -> vector<8x8xf32>
    %c0_42 = arith.constant 0 : index
    %c16 = arith.constant 16 : index
    %96 = vector.load %arg15[%c0_42, %c16] : memref<8x32xf32, #tpu.memory_space<vmem>>, vector<8x8xf32>
    tpu.vector_store %arg15[%c0_42, %c16], %95 {strides = array<i32>} : memref<8x32xf32, #tpu.memory_space<vmem>>, vector<8x8xf32>,
    %97 = vector.extract_strided_slice %15 {offsets = [0, 24], sizes = [8, 8], strides = [1, 1]} : vector<8x32xf32> to vector<8x8xf32>
    %98 = arith.truncf %97 : vector<8x8xf32> to vector<8x8xbf16>
    %99 = vector.extract_strided_slice %16 {offsets = [0, 24], sizes = [8, 8], strides = [1, 1]} : vector<8x32xf32> to vector<8x8xf32>
    %100 = arith.truncf %99 : vector<8x8xf32> to vector<8x8xbf16>
    %101 = vector.extract_strided_slice %17 {offsets = [0, 24], sizes = [8, 8], strides = [1, 1]} : vector<8x32xf32> to vector<8x8xf32>
    %102 = arith.truncf %101 : vector<8x8xf32> to vector<8x8xbf16>
    %cst_43 = arith.constant dense<0.000000e+00> : vector<8x8xf32>
    %103 = tpu.matmul %98, %100, %cst_43 {dimension_numbers = #tpu.dot_dimension_numbers<[1], [1], [0], [0], [0, 0, 1, 0], [], []>} : vector<8x8xbf16>, vector<8x8xbf16>, vector<8x8xf32> -> vector<8x8xf32>
    %cst_44 = arith.constant 0.000000e+00 : f32
    %104 = vector.broadcast %cst_44 : f32 to vector<8x8xf32>
    %105 = arith.cmpf ogt, %24, %104 : vector<8x8xf32>
    %cst_45 = arith.constant -1.000000e+10 : f32
    %106 = vector.broadcast %cst_45 : f32 to vector<8x8xf32>
    %107 = arith.select %105, %103, %106 : vector<8x8xi1>, vector<8x8xf32>
    %cst_46 = arith.constant dense<0xFF800000> : vector<8xf32>
    %108 = vector.multi_reduction <maximumf>, %107, %cst_46 [1] : vector<8x8xf32> to vector<8xf32>
    %109 = vector.shape_cast %108 : vector<8xf32> to vector<8x1xf32>
    %110 = vector.broadcast %109 : vector<8x1xf32> to vector<8x8xf32>
    %111 = arith.subf %107, %110 : vector<8x8xf32>
    %112 = math.exp %111 : vector<8x8xf32>
    %cst_47 = arith.constant dense<0.000000e+00> : vector<8xf32>
    %113 = vector.multi_reduction <add>, %112, %cst_47 [1] : vector<8x8xf32> to vector<8xf32>
    %114 = vector.shape_cast %113 : vector<8xf32> to vector<8x1xf32>
    %115 = tpu.reciprocal %114 {approx = true} : vector<8x1xf32> -> vector<8x1xf32>
    %116 = vector.broadcast %115 : vector<8x1xf32> to vector<8x8xf32>
    %117 = arith.mulf %112, %116 : vector<8x8xf32>
    %118 = arith.truncf %117 : vector<8x8xf32> to vector<8x8xbf16>
    %cst_48 = arith.constant dense<0.000000e+00> : vector<8x8xf32>
    %119 = tpu.matmul %118, %102, %cst_48 {dimension_numbers = #tpu.dot_dimension_numbers<[1], [0], [0], [1], [0, 0, 1, 1], [], []>} : vector<8x8xbf16>, vector<8x8xbf16>, vector<8x8xf32> -> vector<8x8xf32>
    %c0_49 = arith.constant 0 : index
    %c24 = arith.constant 24 : index
    %120 = vector.load %arg15[%c0_49, %c24] : memref<8x32xf32, #tpu.memory_space<vmem>>, vector<8x8xf32>
    tpu.vector_store %arg15[%c0_49, %c24], %119 {strides = array<i32>} : memref<8x32xf32, #tpu.memory_space<vmem>>, vector<8x8xf32>,
    %c0_50 = arith.constant 0 : index
    %c0_51 = arith.constant 0 : index
    %121 = vector.load %arg15[%c0_50, %c0_51] : memref<8x32xf32, #tpu.memory_space<vmem>>, vector<8x32xf32>
    %122 = arith.truncf %121 : vector<8x32xf32> to vector<8x32xbf16>
    %c0_52 = arith.constant 0 : index
    %c0_53 = arith.constant 0 : index
    %123 = vector.load %arg8[%c0_52, %c0_53] : memref<32x32xbf16, #tpu.memory_space<vmem>>, vector<32x32xbf16>
    %cst_54 = arith.constant dense<0.000000e+00> : vector<8x32xf32>
    %124 = tpu.matmul %122, %123, %cst_54 {dimension_numbers = #tpu.dot_dimension_numbers<[1], [0], [0], [1], [0, 0, 1, 1], [], []>} : vector<8x32xbf16>, vector<32x32xbf16>, vector<8x32xf32> -> vector<8x32xf32>
    %c0_55 = arith.constant 0 : index
    %c0_56 = arith.constant 0 : index
    %125 = vector.load %arg9[%c0_55, %c0_56] : memref<1x32xf32, #tpu.memory_space<vmem>>, vector<1x32xf32>
    %126 = vector.broadcast %125 : vector<1x32xf32> to vector<8x32xf32>
    %127 = arith.addf %124, %126 : vector<8x32xf32>
    %128 = arith.extf %1 : vector<8x32xbf16> to vector<8x32xf32>
    %129 = arith.addf %128, %127 : vector<8x32xf32>
    %c0_57 = arith.constant 0 : index
    %c0_58 = arith.constant 0 : index
    %130 = vector.load %arg12[%c0_57, %c0_58] : memref<1x32xf32, #tpu.memory_space<vmem>>, vector<1x32xf32>
    %c0_59 = arith.constant 0 : index
    %c0_60 = arith.constant 0 : index
    %131 = vector.load %arg13[%c0_59, %c0_60] : memref<1x32xf32, #tpu.memory_space<vmem>>, vector<1x32xf32>
    %cst_61 = arith.constant dense<0.000000e+00> : vector<8xf32>
    %132 = vector.multi_reduction <add>, %129, %cst_61 [1] : vector<8x32xf32> to vector<8xf32>
    %133 = vector.shape_cast %132 : vector<8xf32> to vector<8x1xf32>
    %cst_62 = arith.constant 3.200000e+01 : f32
    %134 = vector.broadcast %cst_62 : f32 to vector<8x1xf32>
    %135 = arith.divf %133, %134 : vector<8x1xf32>
    %136 = vector.broadcast %135 : vector<8x1xf32> to vector<8x32xf32>
    %137 = arith.subf %129, %136 : vector<8x32xf32>
    %138 = arith.mulf %137, %137 : vector<8x32xf32>
    %cst_63 = arith.constant dense<0.000000e+00> : vector<8xf32>
    %139 = vector.multi_reduction <add>, %138, %cst_63 [1] : vector<8x32xf32> to vector<8xf32>
    %140 = vector.shape_cast %139 : vector<8xf32> to vector<8x1xf32>
    %cst_64 = arith.constant 3.200000e+01 : f32
    %141 = vector.broadcast %cst_64 : f32 to vector<8x1xf32>
    %142 = arith.divf %140, %141 : vector<8x1xf32>
    %143 = vector.broadcast %135 : vector<8x1xf32> to vector<8x32xf32>
    %144 = arith.subf %129, %143 : vector<8x32xf32>
    %cst_65 = arith.constant 9.99999974E-6 : f32
    %145 = vector.broadcast %cst_65 : f32 to vector<8x1xf32>
    %146 = arith.addf %142, %145 : vector<8x1xf32>
    %147 = math.rsqrt %146 : vector<8x1xf32>
    %148 = vector.broadcast %147 : vector<8x1xf32> to vector<8x32xf32>
    %149 = arith.mulf %144, %148 : vector<8x32xf32>
    %150 = vector.broadcast %130 : vector<1x32xf32> to vector<8x32xf32>
    %151 = arith.mulf %149, %150 : vector<8x32xf32>
    %152 = vector.broadcast %131 : vector<1x32xf32> to vector<8x32xf32>
    %153 = arith.addf %151, %152 : vector<8x32xf32>
    %154 = arith.truncf %153 : vector<8x32xf32> to vector<8x32xbf16>
    %c0_66 = arith.constant 0 : index
    %c0_67 = arith.constant 0 : index
    %c0_68 = arith.constant 0 : index
    %155 = vector.load %arg14[%c0_66, %c0_67, %c0_68] : memref<1x8x32xbf16, #tpu.memory_space<vmem>>, vector<1x8x32xbf16>
    %156 = vector.shape_cast %155 : vector<1x8x32xbf16> to vector<8x32xbf16>
    %157 = vector.shape_cast %154 : vector<8x32xbf16> to vector<1x8x32xbf16>
    tpu.vector_store %arg14[%c0_66, %c0_67, %c0_68], %157 {strides = array<i32>} : memref<1x8x32xbf16, #tpu.memory_space<vmem>>, vector<1x8x32xbf16>,
    return
  }
  func.func @transform_0(%arg0: i32, %arg1: i32) -> (i32, i32, i32) {
    %c0_i32 = arith.constant 0 : i32
    %c0_i32_0 = arith.constant 0 : i32
    return %arg0, %arg1, %c0_i32 : i32, i32, i32
  }
  func.func @transform_1(%arg0: i32, %arg1: i32) -> (i32, i32, i32) {
    %c0_i32 = arith.constant 0 : i32
    %c0_i32_0 = arith.constant 0 : i32
    %c0_i32_1 = arith.constant 0 : i32
    return %arg0, %c0_i32, %c0_i32_0 : i32, i32, i32
  }
  func.func @transform_2(%arg0: i32, %arg1: i32) -> (i32, i32) {
    %c0_i32 = arith.constant 0 : i32
    %c0_i32_0 = arith.constant 0 : i32
    %c0_i32_1 = arith.constant 0 : i32
    return %c0_i32, %c0_i32_0 : i32, i32
  }
  func.func @transform_3(%arg0: i32, %arg1: i32) -> (i32, i32) {
    %c0_i32 = arith.constant 0 : i32
    %c0_i32_0 = arith.constant 0 : i32
    %c0_i32_1 = arith.constant 0 : i32
    return %c0_i32, %c0_i32_0 : i32, i32
  }
  func.func @transform_4(%arg0: i32, %arg1: i32) -> (i32, i32) {
    %c0_i32 = arith.constant 0 : i32
    %c0_i32_0 = arith.constant 0 : i32
    %c0_i32_1 = arith.constant 0 : i32
    return %c0_i32, %c0_i32_0 : i32, i32
  }
  func.func @transform_5(%arg0: i32, %arg1: i32) -> (i32, i32) {
    %c0_i32 = arith.constant 0 : i32
    %c0_i32_0 = arith.constant 0 : i32
    %c0_i32_1 = arith.constant 0 : i32
    return %c0_i32, %c0_i32_0 : i32, i32
  }
  func.func @transform_6(%arg0: i32, %arg1: i32) -> (i32, i32) {
    %c0_i32 = arith.constant 0 : i32
    %c0_i32_0 = arith.constant 0 : i32
    %c0_i32_1 = arith.constant 0 : i32
    return %c0_i32, %c0_i32_0 : i32, i32
  }
  func.func @transform_7(%arg0: i32, %arg1: i32) -> (i32, i32) {
    %c0_i32 = arith.constant 0 : i32
    %c0_i32_0 = arith.constant 0 : i32
    %c0_i32_1 = arith.constant 0 : i32
    return %c0_i32, %c0_i32_0 : i32, i32
  }
  func.func @transform_8(%arg0: i32, %arg1: i32) -> (i32, i32, i32) {
    %c0_i32 = arith.constant 0 : i32
    %c0_i32_0 = arith.constant 0 : i32
    %c0_i32_1 = arith.constant 0 : i32
    return %arg0, %c0_i32, %c0_i32_0 : i32, i32, i32
  }
  func.func @transform_9(%arg0: i32, %arg1: i32) -> (i32, i32, i32) {
    %c0_i32 = arith.constant 0 : i32
    %c0_i32_0 = arith.constant 0 : i32
    return %arg0, %arg1, %c0_i32 : i32, i32, i32
  }
  func.func @transform_10(%arg0: i32, %arg1: i32) -> (i32, i32) {
    %c0_i32 = arith.constant 0 : i32
    %c0_i32_0 = arith.constant 0 : i32
    %c0_i32_1 = arith.constant 0 : i32
    return %c0_i32, %c0_i32_0 : i32, i32
  }
  func.func @transform_11(%arg0: i32, %arg1: i32) -> (i32, i32) {
    %c0_i32 = arith.constant 0 : i32
    %c0_i32_0 = arith.constant 0 : i32
    %c0_i32_1 = arith.constant 0 : i32
    return %c0_i32, %c0_i32_0 : i32, i32
  }
  func.func @transform_12(%arg0: i32, %arg1: i32) -> (i32, i32, i32) {
    %c0_i32 = arith.constant 0 : i32
    %c0_i32_0 = arith.constant 0 : i32
    return %arg0, %arg1, %c0_i32 : i32, i32, i32
  }
}

module attributes {stable_mosaic.version = 11 : i64} {
  func.func @_linear_kernel(%arg0: i32, %arg1: i32, %arg2: i32, %arg3: memref<16x32xbf16, #tpu.memory_space<vmem>>, %arg4: memref<32x30xbf16, #tpu.memory_space<vmem>>, %arg5: memref<1x30xf32, #tpu.memory_space<vmem>>, %arg6: memref<16x30xf32, #tpu.memory_space<vmem>>, %arg7: memref<16x30xf32, #tpu.memory_space<vmem>>) attributes {dimension_semantics = [#tpu.dimension_semantics<parallel>, #tpu.dimension_semantics<parallel>, #tpu.dimension_semantics<arbitrary>], iteration_bounds = array<i64: 1, 1, 1>, scalar_prefetch = 0 : i64, scratch_operands = 1 : i64, tpu.core_type = #tpu.core_type<tc>, window_params = [{transform_indices = @transform_0, window_bounds = array<i64: 16, 32>}, {transform_indices = @transform_1, window_bounds = array<i64: 32, 30>}, {transform_indices = @transform_2, window_bounds = array<i64: 1, 30>}, {transform_indices = @transform_3, window_bounds = array<i64: 16, 30>}]} {
    %c0_i32 = arith.constant 0 : i32
    %0 = arith.cmpi eq, %arg2, %c0_i32 : i32
    %1 = arith.extui %0 : i1 to i32
    %c0_i32_0 = arith.constant 0 : i32
    %2 = arith.cmpi ne, %1, %c0_i32_0 : i32
    scf.if %2 {
      %cst_10 = arith.constant 0.000000e+00 : f32
      %12 = vector.broadcast %cst_10 : f32 to vector<16x30xf32>
      %c0_11 = arith.constant 0 : index
      %c0_12 = arith.constant 0 : index
      %13 = vector.load %arg7[%c0_11, %c0_12] : memref<16x30xf32, #tpu.memory_space<vmem>>, vector<16x30xf32>
      tpu.vector_store %arg7[%c0_11, %c0_12], %12 {strides = array<i32>} : memref<16x30xf32, #tpu.memory_space<vmem>>, vector<16x30xf32>,
    } else {
    }
    %c0 = arith.constant 0 : index
    %c0_1 = arith.constant 0 : index
    %3 = vector.load %arg7[%c0, %c0_1] : memref<16x30xf32, #tpu.memory_space<vmem>>, vector<16x30xf32>
    %c0_2 = arith.constant 0 : index
    %c0_3 = arith.constant 0 : index
    %4 = vector.load %arg3[%c0_2, %c0_3] : memref<16x32xbf16, #tpu.memory_space<vmem>>, vector<16x32xbf16>
    %c0_4 = arith.constant 0 : index
    %c0_5 = arith.constant 0 : index
    %5 = vector.load %arg4[%c0_4, %c0_5] : memref<32x30xbf16, #tpu.memory_space<vmem>>, vector<32x30xbf16>
    %cst = arith.constant dense<0.000000e+00> : vector<16x30xf32>
    %6 = tpu.matmul %4, %5, %cst {dimension_numbers = #tpu.dot_dimension_numbers<[1], [0], [0], [1], [0, 0, 1, 1], [], []>} : vector<16x32xbf16>, vector<32x30xbf16>, vector<16x30xf32> -> vector<16x30xf32>
    %7 = arith.addf %3, %6 : vector<16x30xf32>
    %c0_6 = arith.constant 0 : index
    %c0_7 = arith.constant 0 : index
    %8 = vector.load %arg7[%c0_6, %c0_7] : memref<16x30xf32, #tpu.memory_space<vmem>>, vector<16x30xf32>
    tpu.vector_store %arg7[%c0_6, %c0_7], %7 {strides = array<i32>} : memref<16x30xf32, #tpu.memory_space<vmem>>, vector<16x30xf32>,
    %c0_i32_8 = arith.constant 0 : i32
    %9 = arith.cmpi eq, %arg2, %c0_i32_8 : i32
    %10 = arith.extui %9 : i1 to i32
    %c0_i32_9 = arith.constant 0 : i32
    %11 = arith.cmpi ne, %10, %c0_i32_9 : i32
    scf.if %11 {
      %c0_10 = arith.constant 0 : index
      %c0_11 = arith.constant 0 : index
      %12 = vector.load %arg7[%c0_10, %c0_11] : memref<16x30xf32, #tpu.memory_space<vmem>>, vector<16x30xf32>
      %c0_12 = arith.constant 0 : index
      %c0_13 = arith.constant 0 : index
      %13 = vector.load %arg5[%c0_12, %c0_13] : memref<1x30xf32, #tpu.memory_space<vmem>>, vector<1x30xf32>
      %14 = vector.broadcast %13 : vector<1x30xf32> to vector<16x30xf32>
      %15 = arith.addf %12, %14 : vector<16x30xf32>
      %c0_14 = arith.constant 0 : index
      %c0_15 = arith.constant 0 : index
      %16 = vector.load %arg6[%c0_14, %c0_15] : memref<16x30xf32, #tpu.memory_space<vmem>>, vector<16x30xf32>
      tpu.vector_store %arg6[%c0_14, %c0_15], %15 {strides = array<i32>} : memref<16x30xf32, #tpu.memory_space<vmem>>, vector<16x30xf32>,
    } else {
    }
    return
  }
  func.func @transform_0(%arg0: i32, %arg1: i32, %arg2: i32) -> (i32, i32) {
    %c0_i32 = arith.constant 0 : i32
    return %arg0, %arg2 : i32, i32
  }
  func.func @transform_1(%arg0: i32, %arg1: i32, %arg2: i32) -> (i32, i32) {
    %c0_i32 = arith.constant 0 : i32
    return %arg2, %arg1 : i32, i32
  }
  func.func @transform_2(%arg0: i32, %arg1: i32, %arg2: i32) -> (i32, i32) {
    %c0_i32 = arith.constant 0 : i32
    %c0_i32_0 = arith.constant 0 : i32
    return %c0_i32, %arg1 : i32, i32
  }
  func.func @transform_3(%arg0: i32, %arg1: i32, %arg2: i32) -> (i32, i32) {
    %c0_i32 = arith.constant 0 : i32
    return %arg0, %arg1 : i32, i32
  }
}

</mosaic_0001>

<llo_original>
// kernel: tpu_custom_call.1
$region0: #{tpu_custom_call.1}
  #allocation0 [shape = 'u32[]', space=smem, size = 0x4, offset = 0x4, fixed_abs, tag = 'smem constant byte address 0x4 - core index']
  #allocation1 [shape = 'u32[144,128]{1,0:T(1,128)}', space=vmem, size = 0x12000, scoped, tag = 'internal scratch']
  %s0 = inlined_call_operand.hbm [shape: f32[8,128], index: 0, kind: input, shape index: {}]
  %s1 = inlined_call_operand.hbm [shape: f32[8,128], index: 1, kind: output, shape index: {}]
  %s2 = sld [smem:[#allocation0]]
  $region18: #{tpu_custom_call.1} parent=0
    _
  %s4 = ssub.s32 1, %s2
  %s5 = scalar_select 0, %s4, %s2
  $region1: #{tpu_custom_call.1} parent=0
    #allocation2 [shape = 'u8[4096]{0}', space=vmem, size = 0x1000, scoped, tag = 'input window, operand 0, single buffered']
    #allocation3 [shape = 's32[1]{0}', space=sflag, size = 0x4, scoped, tag = 'scoped memory for tpu_custom_call.1']
    #allocation4 [shape = 's32[1]{0}', space=sflag, size = 0x4, scoped, tag = 'scoped memory for tpu_custom_call.1']
    #allocation5 [shape = 'u8[4096]{0}', space=vmem, size = 0x1000, scoped, tag = 'output window, operand 0, single buffered']
    %6 = vsyncpa [#allocation3], 0
    %7 = vsyncpa [#allocation4], 0
    // Predicated region
    $region2: #{tpu_custom_call.1} parent=1 // pred_check
      _
    $region3: #{tpu_custom_call.1} parent=1 // pred_check_branch
      %9 = sbr.rel (0) target = $region5
    $region4: #{tpu_custom_call.1} parent=1 // pred_region
      %s11 = ssub.s32 128, 128
      %12 = vsyncadd [#allocation3], %s11
      %s14 = sshll.u32 [#allocation2], 4
      %s15 = int_to_ptr.vmem [resolvable:$true] %s14
      %17 = dma.hbm_to_vmem [thread:$0]  %s0, 128, %s15, [#allocation3]
    $region5: #{tpu_custom_call.1} parent=1 // pred_fallthru
      _
    // Predicated region
    $region6: #{tpu_custom_call.1} parent=1 // pred_check
      _
    $region7: #{tpu_custom_call.1} parent=1 // pred_check_branch
      %19 = sbr.rel (0) target = $region9
    $region8: #{tpu_custom_call.1} parent=1 // pred_region
      %20 = dma.done [#allocation3], 128
    $region9: #{tpu_custom_call.1} parent=1 // pred_fallthru
      _
    %v21 = vld [vmem:[#allocation2] sm:$0xff]
    %22 = vst [vmem:[#allocation5] sm:$0xff] %v21
    // Predicated region
    $region10: #{tpu_custom_call.1} parent=1 // pred_check
      _
    $region11: #{tpu_custom_call.1} parent=1 // pred_check_branch
      %24 = sbr.rel (0) target = $region13
    $region12: #{tpu_custom_call.1} parent=1 // pred_region
      %s26 = ssub.s32 128, 128
      %27 = vsyncadd [#allocation4], %s26
      %s29 = sshll.u32 [#allocation5], 4
      %s30 = int_to_ptr.vmem [resolvable:$true] %s29
      %32 = dma.vmem_to_hbm [thread:$0]  %s30, 128, %s1, [#allocation4]
    $region13: #{tpu_custom_call.1} parent=1 // pred_fallthru
      _
    // Predicated region
    $region14: #{tpu_custom_call.1} parent=1 // pred_check
      _
    $region15: #{tpu_custom_call.1} parent=1 // pred_check_branch
      %34 = sbr.rel (0) target = $region17
    $region16: #{tpu_custom_call.1} parent=1 // pred_region
      %35 = dma.done [#allocation4], 128
    $region17: #{tpu_custom_call.1} parent=1 // pred_fallthru
      _
    %36 = vsyncpa [#allocation3], 1
    %37 = vsyncpa [#allocation4], 1

// kernel: transformer_forward.12
$region0: #{transformer_forward.12}
  #allocation0 [shape = 'u32[]', space=smem, size = 0x4, offset = 0x4, fixed_abs, tag = 'smem constant byte address 0x4 - core index']
  #allocation1 [shape = 'u32[144,128]{1,0:T(1,128)}', space=vmem, size = 0x12000, scoped, tag = 'internal scratch']
  %s0 = inlined_call_operand.vmem [shape: bf16[16,32], index: 0, kind: input, shape index: {}]
  %s1 = inlined_call_operand.vmem [shape: bf16[32,64], index: 1, kind: input, shape index: {}]
  %s2 = inlined_call_operand.vmem [shape: f32[1,64], index: 2, kind: input, shape index: {}]
  %s3 = inlined_call_operand.vmem [shape: bf16[64,32], index: 3, kind: input, shape index: {}]
  %s4 = inlined_call_operand.vmem [shape: f32[1,32], index: 4, kind: input, shape index: {}]
  %s5 = inlined_call_operand.vmem [shape: f32[1,32], index: 5, kind: input, shape index: {}]
  %s6 = inlined_call_operand.vmem [shape: f32[1,32], index: 6, kind: input, shape index: {}]
  %s7 = inlined_call_operand.vmem [shape: bf16[16,32], index: 7, kind: output, shape index: {}]
  %s8 = sld [smem:[#allocation0]]
  $region38: #{transformer_forward.12} parent=0
    _
  %s10 = ssub.s32 1, %s8
  %s11 = scalar_select 0, %s10, %s8
  // Predicated region
  $region2: #{transformer_forward.12} parent=0 // pred_check
    _
  $region3: #{transformer_forward.12} parent=0 // pred_check_branch
    %13 = sbr.rel (0) target = $region5
  $region4: #{transformer_forward.12} parent=0 // pred_region
    _
  $region5: #{transformer_forward.12} parent=0 // pred_fallthru
    _
  // Predicated region
  $region6: #{transformer_forward.12} parent=0 // pred_check
    _
  $region7: #{transformer_forward.12} parent=0 // pred_check_branch
    %15 = sbr.rel (0) target = $region9
  $region8: #{transformer_forward.12} parent=0 // pred_region
    _
  $region9: #{transformer_forward.12} parent=0 // pred_fallthru
    _
  // Predicated region
  $region10: #{transformer_forward.12} parent=0 // pred_check
    _
  $region11: #{transformer_forward.12} parent=0 // pred_check_branch
    %17 = sbr.rel (0) target = $region13
  $region12: #{transformer_forward.12} parent=0 // pred_region
    _
  $region13: #{transformer_forward.12} parent=0 // pred_fallthru
    _
  // Predicated region
  $region14: #{transformer_forward.12} parent=0 // pred_check
    _
  $region15: #{transformer_forward.12} parent=0 // pred_check_branch
    %19 = sbr.rel (0) target = $region17
  $region16: #{transformer_forward.12} parent=0 // pred_region
    _
  $region17: #{transformer_forward.12} parent=0 // pred_fallthru
    _
  // Predicated region
  $region18: #{transformer_forward.12} parent=0 // pred_check
    _
  $region19: #{transformer_forward.12} parent=0 // pred_check_branch
    %21 = sbr.rel (0) target = $region21
  $region20: #{transformer_forward.12} parent=0 // pred_region
    _
  $region21: #{transformer_forward.12} parent=0 // pred_fallthru
    _
  // Predicated region
  $region22: #{transformer_forward.12} parent=0 // pred_check
    _
  $region23: #{transformer_forward.12} parent=0 // pred_check_branch
    %23 = sbr.rel (0) target = $region25
  $region24: #{transformer_forward.12} parent=0 // pred_region
    _
  $region25: #{transformer_forward.12} parent=0 // pred_fallthru
    _
  // Predicated region
  $region26: #{transformer_forward.12} parent=0 // pred_check
    _
  $region27: #{transformer_forward.12} parent=0 // pred_check_branch
    %25 = sbr.rel (0) target = $region29
  $region28: #{transformer_forward.12} parent=0 // pred_region
    _
  $region29: #{transformer_forward.12} parent=0 // pred_fallthru
    _
  %v27 = vld [vmem:[%s0] sm:$0xf]
  %v28 = vld [vmem:[%s0 + $0x4] sm:$0xf]
  %v29 = vld [vmem:[%s1] sm:$0xf]
  %v30 = vld [vmem:[%s1 + $0x4] sm:$0xf]
  %v31 = vld [vmem:[%s1 + $0x8] sm:$0xf]
  %v32 = vld [vmem:[%s1 + $0xc] sm:$0xf]
  %v33 = vld [vmem:[%s2] sm:$0x1]
  %v35 = vlaneseq
  %v36 = vshrl.u32 %v35, 7
  %v37 = vsub.s32 0, %v36
  %v38 = vrot.slane %v33, %v37
  %v42 = vunpack.c.l.b16 %v27
  %v43 = vunpack.c.l.b16 %v28
  %v44 = vpack.c.b16 %v43, %v42
  %v49 = vunpack.c.l.b16 %v29
  %v50 = vunpack.c.l.b16 %v30
  %v51 = vunpack.c.l.b16 %v31
  %v52 = vunpack.c.l.b16 %v32
  %v53 = vpack.c.b16 %v50, %v49
  %v54 = vpack.c.b16 %v52, %v51
  %vm57 = vcmask 261120
  %v59 = vsel %vm57, %v44, 0
  %61 = vmatprep.subr.bf16.mxu0 0
  %62 = vmatpush1.bf16.msra.mxu0 %v53
  %63 = vmatprep.subr.bf16.mxu0 0
  %64 = vmatpush1.bf16.msra.mxu0 %v54
  %65 = vmatprep.subr.bf16.mxu0 0
  %66 = vmatpush1.bf16.msra.mxu0 0
  %67 = vmatprep.subr.bf16.mxu0 0
  %68 = vmatpush1.bf16.msra.mxu0 0
  %69 = vmatprep.subr.bf16.mxu0 0
  %70 = vmatpush1.bf16.msra.mxu0 0
  %71 = vmatprep.subr.bf16.mxu0 0
  %72 = vmatpush1.bf16.msra.mxu0 0
  %73 = vmatprep.subr.bf16.mxu0 0
  %74 = vmatpush1.bf16.msra.mxu0 0
  %75 = vmatprep.subr.bf16.mxu0 0
  %76 = vmatpush1.bf16.msra.mxu0 0
  %77 = vmatprep.subr.bf16.mxu0 0
  %78 = vmatpush1.bf16.msra.mxu0 0
  %79 = vmatprep.subr.bf16.mxu0 0
  %80 = vmatpush1.bf16.msra.mxu0 0
  %81 = vmatprep.subr.bf16.mxu0 0
  %82 = vmatpush1.bf16.msra.mxu0 0
  %83 = vmatprep.subr.bf16.mxu0 0
  %84 = vmatpush1.bf16.msra.mxu0 0
  %85 = vmatprep.subr.bf16.mxu0 0
  %86 = vmatpush1.bf16.msra.mxu0 0
  %87 = vmatprep.subr.bf16.mxu0 0
  %88 = vmatpush1.bf16.msra.mxu0 0
  %89 = vmatprep.subr.bf16.mxu0 0
  %90 = vmatpush1.bf16.msra.mxu0 0
  %91 = vmatprep.subr.bf16.mxu0 0
  %92 = vmatpush1.bf16.msra.mxu0 0
  %93 = vmatprep.mubr.bf16.mxu0 0
  %94 = vmatmul.mubr.bf16.gmra.mrb[0].mxu0 %v59
  %v95 = vpop.f32.mrb[0].mxu0
  %v96 = vadd.f32 %v38, %v95
  %v97 = vpop.f32.mrb[0].mxu0
  %v98 = vpop.f32.mrb[0].mxu0
  %v99 = vadd.f32 %v38, %v98
  %v100 = vpop.f32.mrb[0].mxu0
  %101 = vdwg.mxu0
  %v102 = vmax.f32 %v96, 0.0
  %v103 = vmax.f32 %v99, 0.0
  %v104 = vpack.c.bf16 %v103, %v102
  %v105 = vld [vmem:[%s3] sm:$0xf]
  %v106 = vld [vmem:[%s3 + $0x4] sm:$0xf]
  %v107 = vld [vmem:[%s3 + $0x8] sm:$0xf]
  %v108 = vld [vmem:[%s3 + $0xc] sm:$0xf]
  %v109 = vld [vmem:[%s3 + $0x10] sm:$0xf]
  %v110 = vld [vmem:[%s3 + $0x14] sm:$0xf]
  %v111 = vld [vmem:[%s3 + $0x18] sm:$0xf]
  %v112 = vld [vmem:[%s3 + $0x1c] sm:$0xf]
  %v113 = vld [vmem:[%s4] sm:$0x1]
  %v115 = vlaneseq
  %v116 = vshrl.u32 %v115, 7
  %v117 = vsub.s32 0, %v116
  %v118 = vrot.slane %v113, %v117
  %v128 = vunpack.c.l.b16 %v105
  %v129 = vunpack.c.l.b16 %v106
  %v130 = vunpack.c.l.b16 %v107
  %v131 = vunpack.c.l.b16 %v108
  %v132 = vunpack.c.l.b16 %v109
  %v133 = vunpack.c.l.b16 %v110
  %v134 = vunpack.c.l.b16 %v111
  %v135 = vunpack.c.l.b16 %v112
  %v136 = vpack.c.b16 %v129, %v128
  %v137 = vpack.c.b16 %v131, %v130
  %v138 = vpack.c.b16 %v133, %v132
  %v139 = vpack.c.b16 %v135, %v134
  %vm144 = vcmask 523264
  %v146 = vsel %vm144, %v104, 0
  %148 = vmatprep.subr.bf16.mxu0 0
  %149 = vmatpush1.bf16.msra.mxu0 %v136
  %150 = vmatprep.subr.bf16.mxu0 0
  %151 = vmatpush1.bf16.msra.mxu0 %v137
  %152 = vmatprep.subr.bf16.mxu0 0
  %153 = vmatpush1.bf16.msra.mxu0 %v138
  %154 = vmatprep.subr.bf16.mxu0 0
  %155 = vmatpush1.bf16.msra.mxu0 %v139
  %156 = vmatprep.subr.bf16.mxu0 0
  %157 = vmatpush1.bf16.msra.mxu0 0
  %158 = vmatprep.subr.bf16.mxu0 0
  %159 = vmatpush1.bf16.msra.mxu0 0
  %160 = vmatprep.subr.bf16.mxu0 0
  %161 = vmatpush1.bf16.msra.mxu0 0
  %162 = vmatprep.subr.bf16.mxu0 0
  %163 = vmatpush1.bf16.msra.mxu0 0
  %164 = vmatprep.subr.bf16.mxu0 0
  %165 = vmatpush1.bf16.msra.mxu0 0
  %166 = vmatprep.subr.bf16.mxu0 0
  %167 = vmatpush1.bf16.msra.mxu0 0
  %168 = vmatprep.subr.bf16.mxu0 0
  %169 = vmatpush1.bf16.msra.mxu0 0
  %170 = vmatprep.subr.bf16.mxu0 0
  %171 = vmatpush1.bf16.msra.mxu0 0
  %172 = vmatprep.subr.bf16.mxu0 0
  %173 = vmatpush1.bf16.msra.mxu0 0
  %174 = vmatprep.subr.bf16.mxu0 0
  %175 = vmatpush1.bf16.msra.mxu0 0
  %176 = vmatprep.subr.bf16.mxu0 0
  %177 = vmatpush1.bf16.msra.mxu0 0
  %178 = vmatprep.subr.bf16.mxu0 0
  %179 = vmatpush1.bf16.msra.mxu0 0
  %180 = vmatprep.mubr.bf16.mxu0 0
  %181 = vmatmul.mubr.bf16.gmra.mrb[0].mxu0 %v146
  %v182 = vpop.f32.mrb[0].mxu0
  %v183 = vadd.f32 %v118, %v182
  %v184 = vpop.f32.mrb[0].mxu0
  %v185 = vpop.f32.mrb[0].mxu0
  %v186 = vadd.f32 %v118, %v185
  %v187 = vpop.f32.mrb[0].mxu0
  %188 = vdwg.mxu0
  %v189 = vunpack.c.l.bf16 %v27
  %v190 = vunpack.c.l.bf16 %v28
  %v191 = vadd.f32 %v189, %v183
  %v192 = vadd.f32 %v190, %v186
  %v193 = vld [vmem:[%s5] sm:$0x1]
  %v194 = vld [vmem:[%s6] sm:$0x1]
  %v195 = vsel %vm57, %v191, 0.0
  %196 = vadd.xlane.f32.xlu0 %v195
  %v197 = vpop.xlane.xlu0 %196
  %v198 = vsel %vm57, %v192, 0.0
  %199 = vadd.xlane.f32.xlu0 %v198
  %v200 = vpop.xlane.xlu0 %199
  %v201 = vrcp.pop 32.0
  %v202 = vmul.f32 %v197, %v201
  %v203 = vmul.f32 %v200, %v201
  %v204 = vsub.f32 %v191, %v202
  %v205 = vsub.f32 %v192, %v203
  %v206 = vmul.f32 %v204, %v204
  %v207 = vmul.f32 %v205, %v205
  %v208 = vsel %vm57, %v206, 0.0
  %209 = vadd.xlane.f32.xlu0 %v208
  %v210 = vpop.xlane.xlu0 %209
  %v211 = vsel %vm57, %v207, 0.0
  %212 = vadd.xlane.f32.xlu0 %v211
  %v213 = vpop.xlane.xlu0 %212
  %v214 = vmul.f32 %v210, %v201
  %v215 = vmul.f32 %v213, %v201
  %v216 = vadd.f32 %v214, 1e-05
  %v217 = vadd.f32 %v215, 1e-05
  %v218 = vrsqrt.pop %v216
  %v219 = vrsqrt.pop %v217
  %v220 = vmul.f32 %v204, %v218
  %v221 = vmul.f32 %v205, %v219
  %v223 = vlaneseq
  %v224 = vshrl.u32 %v223, 7
  %v225 = vsub.s32 0, %v224
  %v226 = vrot.slane %v193, %v225
  %v228 = vmul.f32 %v220, %v226
  %v229 = vmul.f32 %v221, %v226
  %v231 = vlaneseq
  %v232 = vshrl.u32 %v231, 7
  %v233 = vsub.s32 0, %v232
  %v234 = vrot.slane %v194, %v233
  %v236 = vadd.f32 %v228, %v234
  %v237 = vadd.f32 %v229, %v234
  %v238 = vpack.c.bf16 %v237, %v236
  %v240 = vunpack.c.l.b16 %v238
  %v241 = vunpack.c.h.b16 %v238
  %v242 = vpack.c.b16 %v240, %v240
  %v243 = vpack.c.b16 %v241, %v241
  %vm246 = vcmask 257024
  %247 = vst.msk [vmem:[%s7] sm:$0xf] %vm246, %v242
  %248 = vst.msk [vmem:[%s7 + $0x4] sm:$0xf] %vm246, %v243
  // Predicated region
  $region30: #{transformer_forward.12} parent=0 // pred_check
    _
  $region31: #{transformer_forward.12} parent=0 // pred_check_branch
    %250 = sbr.rel (0) target = $region33
  $region32: #{transformer_forward.12} parent=0 // pred_region
    _
  $region33: #{transformer_forward.12} parent=0 // pred_fallthru
    _
  // Predicated region
  $region34: #{transformer_forward.12} parent=0 // pred_check
    _
  $region35: #{transformer_forward.12} parent=0 // pred_check_branch
    %252 = sbr.rel (0) target = $region37
  $region36: #{transformer_forward.12} parent=0 // pred_region
    _
  $region37: #{transformer_forward.12} parent=0 // pred_fallthru
    _

// kernel: transformer_forward.21
$region0: #{transformer_forward.21}
  #allocation0 [shape = 'u32[]', space=smem, size = 0x4, offset = 0x4, fixed_abs, tag = 'smem constant byte address 0x4 - core index']
  #allocation1 [shape = 'u32[144,128]{1,0:T(1,128)}', space=vmem, size = 0x12000, scoped, tag = 'internal scratch']
  #allocation2 [shape = 'f32[16,30]{1,0:T(8,128)}', space=vmem, size = 0x2000, scoped, tag = 'scratch operand']
  %s0 = inlined_call_operand.vmem [shape: bf16[16,32], index: 0, kind: input, shape index: {}]
  %s1 = inlined_call_operand.vmem [shape: bf16[32,30], index: 1, kind: input, shape index: {}]
  %s2 = inlined_call_operand.vmem [shape: f32[1,30], index: 2, kind: input, shape index: {}]
  %s3 = inlined_call_operand.hbm [shape: f32[16,30], index: 3, kind: output, shape index: {}]
  %s4 = sld [smem:[#allocation0]]
  $region30: #{transformer_forward.21} parent=0
    _
  %s6 = ssub.s32 1, %s4
  %s7 = scalar_select 0, %s6, %s4
  $region1: #{transformer_forward.21} parent=0
    #allocation3 [shape = 'u8[8192]{0}', space=vmem, size = 0x2000, scoped, tag = 'output window, operand 0, single buffered']
    #allocation4 [shape = 's32[1]{0}', space=sflag, size = 0x4, scoped, tag = 'scoped memory for transformer_forward.21']
    %8 = vsyncpa [#allocation4], 0
    // Predicated region
    $region2: #{transformer_forward.21} parent=1 // pred_check
      _
    $region3: #{transformer_forward.21} parent=1 // pred_check_branch
      %10 = sbr.rel (0) target = $region5
    $region4: #{transformer_forward.21} parent=1 // pred_region
      _
    $region5: #{transformer_forward.21} parent=1 // pred_fallthru
      _
    // Predicated region
    $region6: #{transformer_forward.21} parent=1 // pred_check
      _
    $region7: #{transformer_forward.21} parent=1 // pred_check_branch
      %12 = sbr.rel (0) target = $region9
    $region8: #{transformer_forward.21} parent=1 // pred_region
      _
    $region9: #{transformer_forward.21} parent=1 // pred_fallthru
      _
    // Predicated region
    $region10: #{transformer_forward.21} parent=1 // pred_check
      _
    $region11: #{transformer_forward.21} parent=1 // pred_check_branch
      %14 = sbr.rel (0) target = $region13
    $region12: #{transformer_forward.21} parent=1 // pred_region
      _
    $region13: #{transformer_forward.21} parent=1 // pred_fallthru
      _
    %p16 = scmp.eq.s32.totalorder 0, 0
    // Predicated region
    $region14: #{transformer_forward.21} parent=1 // pred_check
      %p17 = pneg %p16
    $region15: #{transformer_forward.21} parent=1 // pred_check_branch
      %19 = sbr.rel (%p17) target = $region17
    $region16: #{transformer_forward.21} parent=1 // pred_region
      %vm20 = vcmask 244736
      %21 = vst.msk [vmem:[#allocation2] sm:$0xff] %vm20, 0.0
      %22 = vst.msk [vmem:[#allocation2 + $0x8] sm:$0xff] %vm20, 0.0
    $region17: #{transformer_forward.21} parent=1 // pred_fallthru
      _
    %v23 = vld [vmem:[#allocation2] sm:$0xff]
    %v24 = vld [vmem:[#allocation2 + $0x8] sm:$0xff]
    %v25 = vld [vmem:[%s0] sm:$0xf]
    %v26 = vld [vmem:[%s0 + $0x4] sm:$0xf]
    %v27 = vld [vmem:[%s1] sm:$0xf]
    %v28 = vld [vmem:[%s1 + $0x4] sm:$0xf]
    %v29 = vld [vmem:[%s1 + $0x8] sm:$0xf]
    %v30 = vld [vmem:[%s1 + $0xc] sm:$0xf]
    %v33 = vunpack.c.l.b16 %v25
    %v34 = vunpack.c.l.b16 %v26
    %v35 = vpack.c.b16 %v34, %v33
    %v40 = vunpack.c.l.b16 %v27
    %v41 = vunpack.c.l.b16 %v28
    %v42 = vunpack.c.l.b16 %v29
    %v43 = vunpack.c.l.b16 %v30
    %v44 = vpack.c.b16 %v41, %v40
    %v45 = vpack.c.b16 %v43, %v42
    %vm48 = vcmask 261120
    %v50 = vsel %vm48, %v35, 0
    %52 = vmatprep.subr.bf16.mxu0 0
    %53 = vmatpush1.bf16.msra.mxu0 %v44
    %54 = vmatprep.subr.bf16.mxu0 0
    %55 = vmatpush1.bf16.msra.mxu0 %v45
    %56 = vmatprep.subr.bf16.mxu0 0
    %57 = vmatpush1.bf16.msra.mxu0 0
    %58 = vmatprep.subr.bf16.mxu0 0
    %59 = vmatpush1.bf16.msra.mxu0 0
    %60 = vmatprep.subr.bf16.mxu0 0
    %61 = vmatpush1.bf16.msra.mxu0 0
    %62 = vmatprep.subr.bf16.mxu0 0
    %63 = vmatpush1.bf16.msra.mxu0 0
    %64 = vmatprep.subr.bf16.mxu0 0
    %65 = vmatpush1.bf16.msra.mxu0 0
    %66 = vmatprep.subr.bf16.mxu0 0
    %67 = vmatpush1.bf16.msra.mxu0 0
    %68 = vmatprep.subr.bf16.mxu0 0
    %69 = vmatpush1.bf16.msra.mxu0 0
    %70 = vmatprep.subr.bf16.mxu0 0
    %71 = vmatpush1.bf16.msra.mxu0 0
    %72 = vmatprep.subr.bf16.mxu0 0
    %73 = vmatpush1.bf16.msra.mxu0 0
    %74 = vmatprep.subr.bf16.mxu0 0
    %75 = vmatpush1.bf16.msra.mxu0 0
    %76 = vmatprep.subr.bf16.mxu0 0
    %77 = vmatpush1.bf16.msra.mxu0 0
    %78 = vmatprep.subr.bf16.mxu0 0
    %79 = vmatpush1.bf16.msra.mxu0 0
    %80 = vmatprep.subr.bf16.mxu0 0
    %81 = vmatpush1.bf16.msra.mxu0 0
    %82 = vmatprep.subr.bf16.mxu0 0
    %83 = vmatpush1.bf16.msra.mxu0 0
    %84 = vmatprep.mubr.bf16.mxu0 0
    %85 = vmatmul.mubr.bf16.gmra.mrb[0].mxu0 %v50
    %v86 = vpop.f32.mrb[0].mxu0
    %v87 = vadd.f32 0.0, %v86
    %v88 = vpop.f32.mrb[0].mxu0
    %v89 = vpop.f32.mrb[0].mxu0
    %v90 = vadd.f32 0.0, %v89
    %v91 = vpop.f32.mrb[0].mxu0
    %92 = vdwg.mxu0
    %v93 = vadd.f32 %v23, %v87
    %v94 = vadd.f32 %v24, %v90
    %vm95 = vcmask 244736
    %96 = vst.msk [vmem:[#allocation2] sm:$0xff] %vm95, %v93
    %97 = vst.msk [vmem:[#allocation2 + $0x8] sm:$0xff] %vm95, %v94
    // Predicated region
    $region18: #{transformer_forward.21} parent=1 // pred_check
      %p98 = pneg %p16
    $region19: #{transformer_forward.21} parent=1 // pred_check_branch
      %100 = sbr.rel (%p98) target = $region21
    $region20: #{transformer_forward.21} parent=1 // pred_region
      %v101 = vld [vmem:[#allocation2] sm:$0xff]
      %v102 = vld [vmem:[#allocation2 + $0x8] sm:$0xff]
      %v103 = vld [vmem:[%s2] sm:$0x1]
      %v105 = vlaneseq
      %v106 = vshrl.u32 %v105, 7
      %v107 = vsub.s32 0, %v106
      %v108 = vrot.slane %v103, %v107
      %v110 = vadd.f32 %v101, %v108
      %v111 = vadd.f32 %v102, %v108
      %112 = vst.msk [vmem:[#allocation3] sm:$0xff] %vm95, %v110
      %113 = vst.msk [vmem:[#allocation3 + $0x8] sm:$0xff] %vm95, %v111
    $region21: #{transformer_forward.21} parent=1 // pred_fallthru
      _
    // Predicated region
    $region22: #{transformer_forward.21} parent=1 // pred_check
      _
    $region23: #{transformer_forward.21} parent=1 // pred_check_branch
      %115 = sbr.rel (0) target = $region25
    $region24: #{transformer_forward.21} parent=1 // pred_region
      %s117 = ssub.s32 256, 256
      %118 = vsyncadd [#allocation4], %s117
      %s119 = sshll.u32 [#allocation3], 4
      %s120 = int_to_ptr.vmem [resolvable:$true] %s119
      %125 = dma.vmem_to_hbm [thread:$0]  %s120, 256, %s3, [#allocation4], 128, 128, 8
    $region25: #{transformer_forward.21} parent=1 // pred_fallthru
      _
    // Predicated region
    $region26: #{transformer_forward.21} parent=1 // pred_check
      _
    $region27: #{transformer_forward.21} parent=1 // pred_check_branch
      %127 = sbr.rel (0) target = $region29
    $region28: #{transformer_forward.21} parent=1 // pred_region
      %128 = dma.done [#allocation4], 256
    $region29: #{transformer_forward.21} parent=1 // pred_fallthru
      _
    %129 = vsyncpa [#allocation4], 1

// kernel: transformer_forward.11
$region0: #{transformer_forward.11}
  #allocation0 [shape = 'u32[]', space=smem, size = 0x4, offset = 0x4, fixed_abs, tag = 'smem constant byte address 0x4 - core index']
  #allocation1 [shape = 'u32[144,128]{1,0:T(1,128)}', space=vmem, size = 0x12000, scoped, tag = 'internal scratch']
  #allocation2 [shape = 'f32[8,32]{1,0:T(8,128)}', space=vmem, size = 0x1000, scoped, tag = 'scratch operand']
  %s0 = inlined_call_operand.vmem [shape: bf16[2,8,32], index: 0, kind: input, shape index: {}, may-alias: {0,1}]
  %s1 = inlined_call_operand.vmem [shape: bf16[2,8,32], index: 1, kind: input, shape index: {}, may-alias: {0,1}]
  %s2 = inlined_call_operand.vmem [shape: bf16[32,32], index: 2, kind: input, shape index: {}]
  %s3 = inlined_call_operand.vmem [shape: f32[1,32], index: 3, kind: input, shape index: {}]
  %s4 = inlined_call_operand.vmem [shape: bf16[32,64], index: 4, kind: input, shape index: {}]
  %s5 = inlined_call_operand.vmem [shape: f32[1,64], index: 5, kind: input, shape index: {}]
  %s6 = inlined_call_operand.vmem [shape: bf16[32,32], index: 6, kind: input, shape index: {}]
  %s7 = inlined_call_operand.vmem [shape: f32[1,32], index: 7, kind: input, shape index: {}]
  %s8 = inlined_call_operand.vmem [shape: f32[2,1,8], index: 8, kind: input, shape index: {}]
  %s9 = inlined_call_operand.vmem [shape: f32[2,8,1], index: 9, kind: input, shape index: {}]
  %s10 = inlined_call_operand.vmem [shape: f32[1,32], index: 10, kind: input, shape index: {}]
  %s11 = inlined_call_operand.vmem [shape: f32[1,32], index: 11, kind: input, shape index: {}]
  %s12 = inlined_call_operand.vmem [shape: bf16[2,8,32], index: 12, kind: output, shape index: {}]
  %s13 = sld [smem:[#allocation0]]
  $region81: #{transformer_forward.11} parent=0
    _
  %s15 = ssub.s32 1, %s13
  %s16 = scalar_select 0, %s15, %s13
  loop: start=0, step=1, limit=4
  $region2: #{transformer_forward.11} parent=0 // loop_pre_header
    _
  $region3: #{transformer_forward.11} parent=0 // loop_header
    %s18 = sphi 0, %s22
    %p19 = scmp.ge.s32.totalorder %s18, 4
    %s25 = sphi 0, %s37
    %s26 = sphi 0, %s33
    %s27 = sphi 0, %s25
    %s28 = sphi 0, %s26
    %s29 = sphi 0, %s27
    %s30 = sphi 0, %s28
    %s42 = sphi 0, %s44
    %s45 = sphi 0, %s42
    %s46 = sphi 0, %s45
    %s62 = sphi 0, %s46
    %s68 = sphi 0, %s70
    %s71 = sphi 0, %s68
    %s72 = sphi 0, %s71
    %s88 = sphi 0, %s72
    %s92 = sphi 0, %s92
    %s94 = sphi 0, %s92
    %s95 = sphi 0, %s94
    %s109 = sphi 0, %s95
    %s113 = sphi 0, %s113
    %s115 = sphi 0, %s113
    %s116 = sphi 0, %s115
    %s130 = sphi 0, %s116
    %s134 = sphi 0, %s134
    %s136 = sphi 0, %s134
    %s137 = sphi 0, %s136
    %s151 = sphi 0, %s137
    %s155 = sphi 0, %s155
    %s157 = sphi 0, %s155
    %s158 = sphi 0, %s157
    %s172 = sphi 0, %s158
    %s176 = sphi 0, %s176
    %s178 = sphi 0, %s176
    %s179 = sphi 0, %s178
    %s193 = sphi 0, %s179
    %s197 = sphi 0, %s197
    %s199 = sphi 0, %s197
    %s200 = sphi 0, %s199
    %s214 = sphi 0, %s200
    %s220 = sphi 0, %s222
    %s223 = sphi 0, %s220
    %s224 = sphi 0, %s223
    %s240 = sphi 0, %s224
    %s248 = sphi 0, %s250
    %s251 = sphi 0, %s248
    %s252 = sphi 0, %s251
    %s268 = sphi 0, %s252
    %s272 = sphi 0, %s272
    %s274 = sphi 0, %s272
    %s275 = sphi 0, %s274
    %s289 = sphi 0, %s275
    %s293 = sphi 0, %s293
    %s295 = sphi 0, %s293
    %s296 = sphi 0, %s295
    %s310 = sphi 0, %s296
    %s318 = sphi 0, %s320
    %s321 = sphi 0, %s318
    %s322 = sphi 0, %s321
    %s338 = sphi 0, %s322
  $region4: #{transformer_forward.11} parent=0 // loop_header_branch
    %21 = sbr.rel (%p19) target = $region8
  $region5: #{transformer_forward.11} parent=0 // loop_body
    %s23 = ssub.s32 %s18, 1
    %s24 = ssub.s32 %s18, 2
    %s31 = sadd.s32 1, %s26
    %p32 = scmp.ge.s32.totalorder %s31, 1
    %s33 = scalar_select %p32, 0, %s31
    %s34 = sadd.s32 1, %s25
    %s35 = scalar_select %p32, %s34, %s25
    %p36 = scmp.ge.s32.totalorder %s35, 2
    %s37 = scalar_select %p36, 0, %s35
    %s38 = ssub.s32 %s25, %s37
    %s39 = ssub.s32 %s26, %s33
    %s40 = sor.u32 %s38, %s39
    %p41 = scmp.eq.s32.totalorder %s40, 0
    %s43 = sadd.s32 %s42, 1
    %s44 = scalar_select %p41, %s42, %s43
    %p47 = pneg %p41
    %p48 = scmp.eq.s32.totalorder %s18, 1
    %p49 = por %p47, %p48
    %p50 = scmp.ne.s32.totalorder %s42, %s45
    %p51 = scmp.eq.s32.totalorder %s18, 0
    %p52 = por %p50, %p51
    %p53 = scmp.ne.s32.totalorder %s42, %s45
    %p54 = scmp.eq.s32.totalorder %s23, 1
    %p55 = por %p53, %p54
    %p56 = scmp.ne.s32.totalorder %s45, %s46
    %p57 = scmp.eq.s32.totalorder %s23, 0
    %p58 = por %p56, %p57
    %p59 = scmp.ne.s32.totalorder %s45, %s46
    %p60 = scmp.eq.s32.totalorder %s24, 1
    %p61 = por %p59, %p60
    %p63 = scmp.ne.s32.totalorder %s46, %s62
    %p64 = scmp.eq.s32.totalorder %s24, 0
    %p65 = por %p63, %p64
    %s66 = ssub.s32 %s25, %s37
    %p67 = scmp.eq.s32.totalorder %s66, 0
    %s69 = sadd.s32 %s68, 1
    %s70 = scalar_select %p67, %s68, %s69
    %p73 = pneg %p67
    %p74 = scmp.eq.s32.totalorder %s18, 1
    %p75 = por %p73, %p74
    %p76 = scmp.ne.s32.totalorder %s68, %s71
    %p77 = scmp.eq.s32.totalorder %s18, 0
    %p78 = por %p76, %p77
    %p79 = scmp.ne.s32.totalorder %s68, %s71
    %p80 = scmp.eq.s32.totalorder %s23, 1
    %p81 = por %p79, %p80
    %p82 = scmp.ne.s32.totalorder %s71, %s72
    %p83 = scmp.eq.s32.totalorder %s23, 0
    %p84 = por %p82, %p83
    %p85 = scmp.ne.s32.totalorder %s71, %s72
    %p86 = scmp.eq.s32.totalorder %s24, 1
    %p87 = por %p85, %p86
    %p89 = scmp.ne.s32.totalorder %s72, %s88
    %p90 = scmp.eq.s32.totalorder %s24, 0
    %p91 = por %p89, %p90
    %s93 = sadd.s32 %s92, 1
    %p96 = scmp.eq.s32.totalorder %s18, 1
    %p97 = scmp.ne.s32.totalorder %s92, %s94
    %p98 = scmp.eq.s32.totalorder %s18, 0
    %p99 = por %p97, %p98
    %p100 = scmp.ne.s32.totalorder %s92, %s94
    %p101 = scmp.eq.s32.totalorder %s23, 1
    %p102 = por %p100, %p101
    %p103 = scmp.ne.s32.totalorder %s94, %s95
    %p104 = scmp.eq.s32.totalorder %s23, 0
    %p105 = por %p103, %p104
    %p106 = scmp.ne.s32.totalorder %s94, %s95
    %p107 = scmp.eq.s32.totalorder %s24, 1
    %p108 = por %p106, %p107
    %p110 = scmp.ne.s32.totalorder %s95, %s109
    %p111 = scmp.eq.s32.totalorder %s24, 0
    %p112 = por %p110, %p111
    %s114 = sadd.s32 %s113, 1
    %p117 = scmp.eq.s32.totalorder %s18, 1
    %p118 = scmp.ne.s32.totalorder %s113, %s115
    %p119 = scmp.eq.s32.totalorder %s18, 0
    %p120 = por %p118, %p119
    %p121 = scmp.ne.s32.totalorder %s113, %s115
    %p122 = scmp.eq.s32.totalorder %s23, 1
    %p123 = por %p121, %p122
    %p124 = scmp.ne.s32.totalorder %s115, %s116
    %p125 = scmp.eq.s32.totalorder %s23, 0
    %p126 = por %p124, %p125
    %p127 = scmp.ne.s32.totalorder %s115, %s116
    %p128 = scmp.eq.s32.totalorder %s24, 1
    %p129 = por %p127, %p128
    %p131 = scmp.ne.s32.totalorder %s116, %s130
    %p132 = scmp.eq.s32.totalorder %s24, 0
    %p133 = por %p131, %p132
    %s135 = sadd.s32 %s134, 1
    %p138 = scmp.eq.s32.totalorder %s18, 1
    %p139 = scmp.ne.s32.totalorder %s134, %s136
    %p140 = scmp.eq.s32.totalorder %s18, 0
    %p141 = por %p139, %p140
    %p142 = scmp.ne.s32.totalorder %s134, %s136
    %p143 = scmp.eq.s32.totalorder %s23, 1
    %p144 = por %p142, %p143
    %p145 = scmp.ne.s32.totalorder %s136, %s137
    %p146 = scmp.eq.s32.totalorder %s23, 0
    %p147 = por %p145, %p146
    %p148 = scmp.ne.s32.totalorder %s136, %s137
    %p149 = scmp.eq.s32.totalorder %s24, 1
    %p150 = por %p148, %p149
    %p152 = scmp.ne.s32.totalorder %s137, %s151
    %p153 = scmp.eq.s32.totalorder %s24, 0
    %p154 = por %p152, %p153
    %s156 = sadd.s32 %s155, 1
    %p159 = scmp.eq.s32.totalorder %s18, 1
    %p160 = scmp.ne.s32.totalorder %s155, %s157
    %p161 = scmp.eq.s32.totalorder %s18, 0
    %p162 = por %p160, %p161
    %p163 = scmp.ne.s32.totalorder %s155, %s157
    %p164 = scmp.eq.s32.totalorder %s23, 1
    %p165 = por %p163, %p164
    %p166 = scmp.ne.s32.totalorder %s157, %s158
    %p167 = scmp.eq.s32.totalorder %s23, 0
    %p168 = por %p166, %p167
    %p169 = scmp.ne.s32.totalorder %s157, %s158
    %p170 = scmp.eq.s32.totalorder %s24, 1
    %p171 = por %p169, %p170
    %p173 = scmp.ne.s32.totalorder %s158, %s172
    %p174 = scmp.eq.s32.totalorder %s24, 0
    %p175 = por %p173, %p174
    %s177 = sadd.s32 %s176, 1
    %p180 = scmp.eq.s32.totalorder %s18, 1
    %p181 = scmp.ne.s32.totalorder %s176, %s178
    %p182 = scmp.eq.s32.totalorder %s18, 0
    %p183 = por %p181, %p182
    %p184 = scmp.ne.s32.totalorder %s176, %s178
    %p185 = scmp.eq.s32.totalorder %s23, 1
    %p186 = por %p184, %p185
    %p187 = scmp.ne.s32.totalorder %s178, %s179
    %p188 = scmp.eq.s32.totalorder %s23, 0
    %p189 = por %p187, %p188
    %p190 = scmp.ne.s32.totalorder %s178, %s179
    %p191 = scmp.eq.s32.totalorder %s24, 1
    %p192 = por %p190, %p191
    %p194 = scmp.ne.s32.totalorder %s179, %s193
    %p195 = scmp.eq.s32.totalorder %s24, 0
    %p196 = por %p194, %p195
    %s198 = sadd.s32 %s197, 1
    %p201 = scmp.eq.s32.totalorder %s18, 1
    %p202 = scmp.ne.s32.totalorder %s197, %s199
    %p203 = scmp.eq.s32.totalorder %s18, 0
    %p204 = por %p202, %p203
    %p205 = scmp.ne.s32.totalorder %s197, %s199
    %p206 = scmp.eq.s32.totalorder %s23, 1
    %p207 = por %p205, %p206
    %p208 = scmp.ne.s32.totalorder %s199, %s200
    %p209 = scmp.eq.s32.totalorder %s23, 0
    %p210 = por %p208, %p209
    %p211 = scmp.ne.s32.totalorder %s199, %s200
    %p212 = scmp.eq.s32.totalorder %s24, 1
    %p213 = por %p211, %p212
    %p215 = scmp.ne.s32.totalorder %s200, %s214
    %p216 = scmp.eq.s32.totalorder %s24, 0
    %p217 = por %p215, %p216
    %s218 = ssub.s32 %s25, %s37
    %p219 = scmp.eq.s32.totalorder %s218, 0
    %s221 = sadd.s32 %s220, 1
    %s222 = scalar_select %p219, %s220, %s221
    %p225 = pneg %p219
    %p226 = scmp.eq.s32.totalorder %s18, 1
    %p227 = por %p225, %p226
    %p228 = scmp.ne.s32.totalorder %s220, %s223
    %p229 = scmp.eq.s32.totalorder %s18, 0
    %p230 = por %p228, %p229
    %p231 = scmp.ne.s32.totalorder %s220, %s223
    %p232 = scmp.eq.s32.totalorder %s23, 1
    %p233 = por %p231, %p232
    %p234 = scmp.ne.s32.totalorder %s223, %s224
    %p235 = scmp.eq.s32.totalorder %s23, 0
    %p236 = por %p234, %p235
    %p237 = scmp.ne.s32.totalorder %s223, %s224
    %p238 = scmp.eq.s32.totalorder %s24, 1
    %p239 = por %p237, %p238
    %p241 = scmp.ne.s32.totalorder %s224, %s240
    %p242 = scmp.eq.s32.totalorder %s24, 0
    %p243 = por %p241, %p242
    %s244 = ssub.s32 %s25, %s37
    %s245 = ssub.s32 %s26, %s33
    %s246 = sor.u32 %s244, %s245
    %p247 = scmp.eq.s32.totalorder %s246, 0
    %s249 = sadd.s32 %s248, 1
    %s250 = scalar_select %p247, %s248, %s249
    %p253 = pneg %p247
    %p254 = scmp.eq.s32.totalorder %s18, 1
    %p255 = por %p253, %p254
    %p256 = scmp.ne.s32.totalorder %s248, %s251
    %p257 = scmp.eq.s32.totalorder %s18, 0
    %p258 = por %p256, %p257
    %p259 = scmp.ne.s32.totalorder %s248, %s251
    %p260 = scmp.eq.s32.totalorder %s23, 1
    %p261 = por %p259, %p260
    %p262 = scmp.ne.s32.totalorder %s251, %s252
    %p263 = scmp.eq.s32.totalorder %s23, 0
    %p264 = por %p262, %p263
    %p265 = scmp.ne.s32.totalorder %s251, %s252
    %p266 = scmp.eq.s32.totalorder %s24, 1
    %p267 = por %p265, %p266
    %p269 = scmp.ne.s32.totalorder %s252, %s268
    %p270 = scmp.eq.s32.totalorder %s24, 0
    %p271 = por %p269, %p270
    %s273 = sadd.s32 %s272, 1
    %p276 = scmp.eq.s32.totalorder %s18, 1
    %p277 = scmp.ne.s32.totalorder %s272, %s274
    %p278 = scmp.eq.s32.totalorder %s18, 0
    %p279 = por %p277, %p278
    %p280 = scmp.ne.s32.totalorder %s272, %s274
    %p281 = scmp.eq.s32.totalorder %s23, 1
    %p282 = por %p280, %p281
    %p283 = scmp.ne.s32.totalorder %s274, %s275
    %p284 = scmp.eq.s32.totalorder %s23, 0
    %p285 = por %p283, %p284
    %p286 = scmp.ne.s32.totalorder %s274, %s275
    %p287 = scmp.eq.s32.totalorder %s24, 1
    %p288 = por %p286, %p287
    %p290 = scmp.ne.s32.totalorder %s275, %s289
    %p291 = scmp.eq.s32.totalorder %s24, 0
    %p292 = por %p290, %p291
    %s294 = sadd.s32 %s293, 1
    %p297 = scmp.eq.s32.totalorder %s18, 1
    %p298 = scmp.ne.s32.totalorder %s293, %s295
    %p299 = scmp.eq.s32.totalorder %s18, 0
    %p300 = por %p298, %p299
    %p301 = scmp.ne.s32.totalorder %s293, %s295
    %p302 = scmp.eq.s32.totalorder %s23, 1
    %p303 = por %p301, %p302
    %p304 = scmp.ne.s32.totalorder %s295, %s296
    %p305 = scmp.eq.s32.totalorder %s23, 0
    %p306 = por %p304, %p305
    %p307 = scmp.ne.s32.totalorder %s295, %s296
    %p308 = scmp.eq.s32.totalorder %s24, 1
    %p309 = por %p307, %p308
    %p311 = scmp.ne.s32.totalorder %s296, %s310
    %p312 = scmp.eq.s32.totalorder %s24, 0
    %p313 = por %p311, %p312
    %s314 = ssub.s32 %s25, %s37
    %s315 = ssub.s32 %s26, %s33
    %s316 = sor.u32 %s314, %s315
    %p317 = scmp.eq.s32.totalorder %s316, 0
    %s319 = sadd.s32 %s318, 1
    %s320 = scalar_select %p317, %s318, %s319
    %p323 = pneg %p317
    %p324 = scmp.eq.s32.totalorder %s18, 1
    %p325 = por %p323, %p324
    %p326 = scmp.ne.s32.totalorder %s318, %s321
    %p327 = scmp.eq.s32.totalorder %s18, 0
    %p328 = por %p326, %p327
    %p329 = scmp.ne.s32.totalorder %s318, %s321
    %p330 = scmp.eq.s32.totalorder %s23, 1
    %p331 = por %p329, %p330
    %p332 = scmp.ne.s32.totalorder %s321, %s322
    %p333 = scmp.eq.s32.totalorder %s23, 0
    %p334 = por %p332, %p333
    %p335 = scmp.ne.s32.totalorder %s321, %s322
    %p336 = scmp.eq.s32.totalorder %s24, 1
    %p337 = por %p335, %p336
    %p339 = scmp.ne.s32.totalorder %s322, %s338
    %p340 = scmp.eq.s32.totalorder %s24, 0
    %p341 = por %p339, %p340
    %p342 = scmp.le.s32.totalorder 1, %s18
    %p343 = scmp.lt.s32.totalorder %s18, 3
    %p344 = pnand %p342, %p343
    %p345 = pneg %p344
    // Predicated region
    $region9: #{transformer_forward.11} parent=5 // pred_check
      _
    $region10: #{transformer_forward.11} parent=5 // pred_check_branch
      %347 = sbr.rel (%p344) target = $region12
    $region11: #{transformer_forward.11} parent=5 // pred_region
      %s348 = ssub.s32 %s18, 1
      // Predicated region
      $region13: #{transformer_forward.11} parent=11 // pred_check
        %p349 = pneg %p105
      $region14: #{transformer_forward.11} parent=11 // pred_check_branch
        %351 = sbr.rel (%p349) target = $region16
      $region15: #{transformer_forward.11} parent=11 // pred_region
        _
      $region16: #{transformer_forward.11} parent=11 // pred_fallthru
        _
      // Predicated region
      $region17: #{transformer_forward.11} parent=11 // pred_check
        %p352 = pneg %p126
      $region18: #{transformer_forward.11} parent=11 // pred_check_branch
        %354 = sbr.rel (%p352) target = $region20
      $region19: #{transformer_forward.11} parent=11 // pred_region
        _
      $region20: #{transformer_forward.11} parent=11 // pred_fallthru
        _
      // Predicated region
      $region21: #{transformer_forward.11} parent=11 // pred_check
        %p355 = pneg %p147
      $region22: #{transformer_forward.11} parent=11 // pred_check_branch
        %357 = sbr.rel (%p355) target = $region24
      $region23: #{transformer_forward.11} parent=11 // pred_region
        _
      $region24: #{transformer_forward.11} parent=11 // pred_fallthru
        _
      // Predicated region
      $region25: #{transformer_forward.11} parent=11 // pred_check
        %p358 = pneg %p168
      $region26: #{transformer_forward.11} parent=11 // pred_check_branch
        %360 = sbr.rel (%p358) target = $region28
      $region27: #{transformer_forward.11} parent=11 // pred_region
        _
      $region28: #{transformer_forward.11} parent=11 // pred_fallthru
        _
      // Predicated region
      $region29: #{transformer_forward.11} parent=11 // pred_check
        %p361 = pneg %p189
      $region30: #{transformer_forward.11} parent=11 // pred_check_branch
        %363 = sbr.rel (%p361) target = $region32
      $region31: #{transformer_forward.11} parent=11 // pred_region
        _
      $region32: #{transformer_forward.11} parent=11 // pred_fallthru
        _
      // Predicated region
      $region33: #{transformer_forward.11} parent=11 // pred_check
        %p364 = pneg %p210
      $region34: #{transformer_forward.11} parent=11 // pred_check_branch
        %366 = sbr.rel (%p364) target = $region36
      $region35: #{transformer_forward.11} parent=11 // pred_region
        _
      $region36: #{transformer_forward.11} parent=11 // pred_fallthru
        _
      // Predicated region
      $region37: #{transformer_forward.11} parent=11 // pred_check
        %p367 = pneg %p285
      $region38: #{transformer_forward.11} parent=11 // pred_check_branch
        %369 = sbr.rel (%p367) target = $region40
      $region39: #{transformer_forward.11} parent=11 // pred_region
        _
      $region40: #{transformer_forward.11} parent=11 // pred_fallthru
        _
      // Predicated region
      $region41: #{transformer_forward.11} parent=11 // pred_check
        %p370 = pneg %p306
      $region42: #{transformer_forward.11} parent=11 // pred_check_branch
        %372 = sbr.rel (%p370) target = $region44
      $region43: #{transformer_forward.11} parent=11 // pred_region
        _
      $region44: #{transformer_forward.11} parent=11 // pred_fallthru
        _
    $region12: #{transformer_forward.11} parent=5 // pred_fallthru
      _
    %p373 = scmp.lt.s32.totalorder %s18, 2
    // Predicated region
    $region45: #{transformer_forward.11} parent=5 // pred_check
      %p374 = pneg %p373
    $region46: #{transformer_forward.11} parent=5 // pred_check_branch
      %376 = sbr.rel (%p374) target = $region48
    $region47: #{transformer_forward.11} parent=5 // pred_region
      // Predicated region
      $region49: #{transformer_forward.11} parent=47 // pred_check
        %p377 = pneg %p52
      $region50: #{transformer_forward.11} parent=47 // pred_check_branch
        %379 = sbr.rel (%p377) target = $region52
      $region51: #{transformer_forward.11} parent=47 // pred_region
        %p380 = scmp.lt.s32.totalorder %s25, 1
        %s381 = scalar_select %p380, %s25, 1
        %p382 = scmp.lt.s32.totalorder %s26, 0
        %s383 = scalar_select %p382, %s26, 0
        %s384 = sadd.s32 %s383, %s381
        %s385 = smul.addr %s384, 4
        %s386 = scalar_lea.vmem %s0, %s385
      $region52: #{transformer_forward.11} parent=47 // pred_fallthru
        _
      // Predicated region
      $region53: #{transformer_forward.11} parent=47 // pred_check
        %p387 = pneg %p78
      $region54: #{transformer_forward.11} parent=47 // pred_check_branch
        %389 = sbr.rel (%p387) target = $region56
      $region55: #{transformer_forward.11} parent=47 // pred_region
        %p390 = scmp.lt.s32.totalorder %s25, 1
        %s391 = scalar_select %p390, %s25, 1
        %s392 = smul.addr %s391, 4
        %s393 = scalar_lea.vmem %s1, %s392
      $region56: #{transformer_forward.11} parent=47 // pred_fallthru
        _
      // Predicated region
      $region57: #{transformer_forward.11} parent=47 // pred_check
        %p394 = pneg %p230
      $region58: #{transformer_forward.11} parent=47 // pred_check_branch
        %396 = sbr.rel (%p394) target = $region60
      $region59: #{transformer_forward.11} parent=47 // pred_region
        %p397 = scmp.lt.s32.totalorder %s25, 1
        %s398 = scalar_select %p397, %s25, 1
        %s399 = scalar_lea.vmem %s8, %s398
      $region60: #{transformer_forward.11} parent=47 // pred_fallthru
        _
      // Predicated region
      $region61: #{transformer_forward.11} parent=47 // pred_check
        %p400 = pneg %p258
      $region62: #{transformer_forward.11} parent=47 // pred_check_branch
        %402 = sbr.rel (%p400) target = $region64
      $region63: #{transformer_forward.11} parent=47 // pred_region
        %p403 = scmp.lt.s32.totalorder %s25, 1
        %s404 = scalar_select %p403, %s25, 1
        %p405 = scmp.lt.s32.totalorder %s26, 0
        %s406 = scalar_select %p405, %s26, 0
        %s407 = sadd.s32 %s406, %s404
        %s408 = smul.addr %s407, 8
        %s409 = scalar_lea.vmem %s9, %s408
      $region64: #{transformer_forward.11} parent=47 // pred_fallthru
        _
    $region48: #{transformer_forward.11} parent=5 // pred_fallthru
      _
    %p410 = scmp.le.s32.totalorder 1, %s18
    %p411 = scmp.lt.s32.totalorder %s18, 3
    %p412 = pnand %p410, %p411
    %p413 = pneg %p412
    // Predicated region
    $region65: #{transformer_forward.11} parent=5 // pred_check
      _
    $region66: #{transformer_forward.11} parent=5 // pred_check_branch
      %415 = sbr.rel (%p412) target = $region68
    $region67: #{transformer_forward.11} parent=5 // pred_region
      %s416 = ssub.s32 %s18, 1
      %p417 = scmp.lt.s32.totalorder %s27, 1
      %s418 = scalar_select %p417, %s27, 1
      %p419 = scmp.lt.s32.totalorder %s28, 0
      %s420 = scalar_select %p419, %s28, 0
      %s421 = sadd.s32 %s420, %s418
      %s422 = smul.addr %s421, 4
      %s423 = scalar_lea.vmem %s0, %s422
      %p424 = pneg %p58
      %p425 = pneg %p55
      %p426 = scmp.lt.s32.totalorder %s27, 1
      %s427 = scalar_select %p426, %s27, 1
      %s428 = smul.addr %s427, 4
      %s429 = scalar_lea.vmem %s1, %s428
      %p430 = pneg %p84
      %p431 = pneg %p81
      %p432 = pneg %p105
      %p433 = pneg %p102
      %p434 = pneg %p126
      %p435 = pneg %p123
      %p436 = pneg %p147
      %p437 = pneg %p144
      %p438 = pneg %p168
      %p439 = pneg %p165
      %p440 = pneg %p189
      %p441 = pneg %p186
      %p442 = pneg %p210
      %p443 = pneg %p207
      %p444 = scmp.lt.s32.totalorder %s27, 1
      %s445 = scalar_select %p444, %s27, 1
      %s446 = scalar_lea.vmem %s8, %s445
      %p447 = pneg %p236
      %p448 = pneg %p233
      %p449 = scmp.lt.s32.totalorder %s27, 1
      %s450 = scalar_select %p449, %s27, 1
      %p451 = scmp.lt.s32.totalorder %s28, 0
      %s452 = scalar_select %p451, %s28, 0
      %s453 = sadd.s32 %s452, %s450
      %s454 = smul.addr %s453, 8
      %s455 = scalar_lea.vmem %s9, %s454
      %p456 = pneg %p264
      %p457 = pneg %p261
      %p458 = pneg %p285
      %p459 = pneg %p282
      %p460 = pneg %p306
      %p461 = pneg %p303
      %p462 = pneg %p334
      %p463 = pneg %p331
      %p464 = scmp.lt.s32.totalorder %s27, 1
      %s465 = scalar_select %p464, %s27, 1
      %p466 = scmp.lt.s32.totalorder %s28, 0
      %s467 = scalar_select %p466, %s28, 0
      %s468 = sadd.s32 %s467, %s465
      %s469 = smul.addr %s468, 4
      %s470 = scalar_lea.vmem %s12, %s469
      %p471 = scmp.lt.s32.totalorder %s27, 1
      %s472 = scalar_select %p471, %s27, 1
      %p473 = scmp.lt.s32.totalorder %s28, 0
      %s474 = scalar_select %p473, %s28, 0
      %s475 = sadd.s32 %s474, %s472
      %s476 = smul.addr %s475, 4
      %s477 = scalar_lea.vmem %s0, %s476
      %p478 = scmp.lt.s32.totalorder %s27, 1
      %s479 = scalar_select %p478, %s27, 1
      %s480 = smul.addr %s479, 4
      %s481 = scalar_lea.vmem %s1, %s480
      %p482 = scmp.lt.s32.totalorder %s27, 1
      %s483 = scalar_select %p482, %s27, 1
      %s484 = scalar_lea.vmem %s8, %s483
      %p485 = scmp.lt.s32.totalorder %s27, 1
      %s486 = scalar_select %p485, %s27, 1
      %p487 = scmp.lt.s32.totalorder %s28, 0
      %s488 = scalar_select %p487, %s28, 0
      %s489 = sadd.s32 %s488, %s486
      %s490 = smul.addr %s489, 8
      %s491 = scalar_lea.vmem %s9, %s490
      %p492 = scmp.lt.s32.totalorder %s27, 1
      %s493 = scalar_select %p492, %s27, 1
      %p494 = scmp.lt.s32.totalorder %s28, 0
      %s495 = scalar_select %p494, %s28, 0
      %s496 = sadd.s32 %s495, %s493
      %s497 = smul.addr %s496, 4
      %s498 = scalar_lea.vmem %s12, %s497
      %v500 = vld [vmem:[%s477] sm:$0xf]
      %v501 = vld [vmem:[%s481] sm:$0xf]
      %v502 = vld [vmem:[%s2] sm:$0xf]
      %v503 = vld [vmem:[%s2 + $0x4] sm:$0xf]
      %v504 = vld [vmem:[%s2 + $0x8] sm:$0xf]
      %v505 = vld [vmem:[%s2 + $0xc] sm:$0xf]
      %v506 = vld [vmem:[%s3] sm:$0x1]
      %v508 = vlaneseq
      %v509 = vshrl.u32 %v508, 7
      %v510 = vsub.s32 0, %v509
      %v511 = vrot.slane %v506, %v510
      %v517 = vunpack.c.l.b16 %v502
      %v518 = vunpack.c.l.b16 %v503
      %v519 = vunpack.c.l.b16 %v504
      %v520 = vunpack.c.l.b16 %v505
      %v521 = vpack.c.b16 %v518, %v517
      %v522 = vpack.c.b16 %v520, %v519
      %vm525 = vcmask 261120
      %v527 = vsel %vm525, %v500, 0
      %529 = vmatprep.subr.bf16.mxu0 0
      %530 = vmatpush1.bf16.msra.mxu0 %v521
      %531 = vmatprep.subr.bf16.mxu0 0
      %532 = vmatpush1.bf16.msra.mxu0 %v522
      %533 = vmatprep.subr.bf16.mxu0 0
      %534 = vmatpush1.bf16.msra.mxu0 0
      %535 = vmatprep.subr.bf16.mxu0 0
      %536 = vmatpush1.bf16.msra.mxu0 0
      %537 = vmatprep.subr.bf16.mxu0 0
      %538 = vmatpush1.bf16.msra.mxu0 0
      %539 = vmatprep.subr.bf16.mxu0 0
      %540 = vmatpush1.bf16.msra.mxu0 0
      %541 = vmatprep.subr.bf16.mxu0 0
      %542 = vmatpush1.bf16.msra.mxu0 0
      %543 = vmatprep.subr.bf16.mxu0 0
      %544 = vmatpush1.bf16.msra.mxu0 0
      %545 = vmatprep.subr.bf16.mxu0 0
      %546 = vmatpush1.bf16.msra.mxu0 0
      %547 = vmatprep.subr.bf16.mxu0 0
      %548 = vmatpush1.bf16.msra.mxu0 0
      %549 = vmatprep.subr.bf16.mxu0 0
      %550 = vmatpush1.bf16.msra.mxu0 0
      %551 = vmatprep.subr.bf16.mxu0 0
      %552 = vmatpush1.bf16.msra.mxu0 0
      %553 = vmatprep.subr.bf16.mxu0 0
      %554 = vmatpush1.bf16.msra.mxu0 0
      %555 = vmatprep.subr.bf16.mxu0 0
      %556 = vmatpush1.bf16.msra.mxu0 0
      %557 = vmatprep.subr.bf16.mxu0 0
      %558 = vmatpush1.bf16.msra.mxu0 0
      %559 = vmatprep.subr.bf16.mxu0 0
      %560 = vmatpush1.bf16.msra.mxu0 0
      %561 = vmatprep.mubr.bf16.mxu0 0
      %562 = vmatmul.mubr.bf16.gmra.mrb[0].mxu0 %v527
      %v563 = vpop.f32.mrb[0].mxu0
      %v564 = vadd.f32 %v511, %v563
      %v565 = vpop.f32.mrb[0].mxu0
      %v566 = vpop.f32.mrb[0].mxu0
      %v567 = vpop.f32.mrb[0].mxu0
      %568 = vdwg.mxu0
      %v569 = vld [vmem:[%s4] sm:$0xf]
      %v570 = vld [vmem:[%s4 + $0x4] sm:$0xf]
      %v571 = vld [vmem:[%s4 + $0x8] sm:$0xf]
      %v572 = vld [vmem:[%s4 + $0xc] sm:$0xf]
      %v573 = vld [vmem:[%s5] sm:$0x1]
      %v575 = vlaneseq
      %v576 = vshrl.u32 %v575, 7
      %v577 = vsub.s32 0, %v576
      %v578 = vrot.slane %v573, %v577
      %v584 = vunpack.c.l.b16 %v569
      %v585 = vunpack.c.l.b16 %v570
      %v586 = vunpack.c.l.b16 %v571
      %v587 = vunpack.c.l.b16 %v572
      %v588 = vpack.c.b16 %v585, %v584
      %v589 = vpack.c.b16 %v587, %v586
      %v593 = vsel %vm525, %v501, 0
      %595 = vmatprep.subr.bf16.mxu0 0
      %596 = vmatpush1.bf16.msra.mxu0 %v588
      %597 = vmatprep.subr.bf16.mxu0 0
      %598 = vmatpush1.bf16.msra.mxu0 %v589
      %599 = vmatprep.subr.bf16.mxu0 0
      %600 = vmatpush1.bf16.msra.mxu0 0
      %601 = vmatprep.subr.bf16.mxu0 0
      %602 = vmatpush1.bf16.msra.mxu0 0
      %603 = vmatprep.subr.bf16.mxu0 0
      %604 = vmatpush1.bf16.msra.mxu0 0
      %605 = vmatprep.subr.bf16.mxu0 0
      %606 = vmatpush1.bf16.msra.mxu0 0
      %607 = vmatprep.subr.bf16.mxu0 0
      %608 = vmatpush1.bf16.msra.mxu0 0
      %609 = vmatprep.subr.bf16.mxu0 0
      %610 = vmatpush1.bf16.msra.mxu0 0
      %611 = vmatprep.subr.bf16.mxu0 0
      %612 = vmatpush1.bf16.msra.mxu0 0
      %613 = vmatprep.subr.bf16.mxu0 0
      %614 = vmatpush1.bf16.msra.mxu0 0
      %615 = vmatprep.subr.bf16.mxu0 0
      %616 = vmatpush1.bf16.msra.mxu0 0
      %617 = vmatprep.subr.bf16.mxu0 0
      %618 = vmatpush1.bf16.msra.mxu0 0
      %619 = vmatprep.subr.bf16.mxu0 0
      %620 = vmatpush1.bf16.msra.mxu0 0
      %621 = vmatprep.subr.bf16.mxu0 0
      %622 = vmatpush1.bf16.msra.mxu0 0
      %623 = vmatprep.subr.bf16.mxu0 0
      %624 = vmatpush1.bf16.msra.mxu0 0
      %625 = vmatprep.subr.bf16.mxu0 0
      %626 = vmatpush1.bf16.msra.mxu0 0
      %627 = vmatprep.mubr.bf16.mxu0 0
      %628 = vmatmul.mubr.bf16.gmra.mrb[0].mxu0 %v593
      %v629 = vpop.f32.mrb[0].mxu0
      %v630 = vadd.f32 %v578, %v629
      %v631 = vpop.f32.mrb[0].mxu0
      %v632 = vpop.f32.mrb[0].mxu0
      %v633 = vpop.f32.mrb[0].mxu0
      %634 = vdwg.mxu0
      %v635 = vmul.f32 %v564, 0.35355338
      %v636 = vld [vmem:[%s491] sm:$0xff]
      %v637 = vld [vmem:[%s484] sm:$0x1]
      %639 = vset.pattern.permute.xlu0 0
      %640 = vperm.xlu0 %639, %v636
      %v641 = vpop.permute.xlu0 %640
      %v644 = vlaneseq
      %v645 = vshrl.u32 %v644, 7
      %v646 = vsub.s32 0, %v645
      %v647 = vrot.slane %v637, %v646
      %v649 = vmul.f32 %v641, %v647
      %v650 = vpack.c.bf16 %v635, %v635
      %v651 = vpack.c.bf16 %v630, %v630
      %vm652 = vcmask 64512
      %v654 = vsel %vm652, %v650, 0
      %v657 = vsel %vm652, %v651, 0
      %659 = vmatprep.subr.bf16.mxu0 0
      %660 = vmatpush1.bf16.xpose.msra.mxu0 %v657
      %661 = vmatprep.subr.bf16.mxu0 0
      %662 = vmatpush1.bf16.xpose.msra.mxu0 0
      %663 = vmatprep.subr.bf16.mxu0 0
      %664 = vmatpush1.bf16.xpose.msra.mxu0 0
      %665 = vmatprep.subr.bf16.mxu0 0
      %666 = vmatpush1.bf16.xpose.msra.mxu0 0
      %667 = vmatprep.subr.bf16.mxu0 0
      %668 = vmatpush1.bf16.xpose.msra.mxu0 0
      %669 = vmatprep.subr.bf16.mxu0 0
      %670 = vmatpush1.bf16.xpose.msra.mxu0 0
      %671 = vmatprep.subr.bf16.mxu0 0
      %672 = vmatpush1.bf16.xpose.msra.mxu0 0
      %673 = vmatprep.subr.bf16.mxu0 0
      %674 = vmatpush1.bf16.xpose.msra.mxu0 0
      %675 = vmatprep.subr.bf16.mxu0 0
      %676 = vmatpush1.bf16.xpose.msra.mxu0 0
      %677 = vmatprep.subr.bf16.mxu0 0
      %678 = vmatpush1.bf16.xpose.msra.mxu0 0
      %679 = vmatprep.subr.bf16.mxu0 0
      %680 = vmatpush1.bf16.xpose.msra.mxu0 0
      %681 = vmatprep.subr.bf16.mxu0 0
      %682 = vmatpush1.bf16.xpose.msra.mxu0 0
      %683 = vmatprep.subr.bf16.mxu0 0
      %684 = vmatpush1.bf16.xpose.msra.mxu0 0
      %685 = vmatprep.subr.bf16.mxu0 0
      %686 = vmatpush1.bf16.xpose.msra.mxu0 0
      %687 = vmatprep.subr.bf16.mxu0 0
      %688 = vmatpush1.bf16.xpose.msra.mxu0 0
      %689 = vmatprep.subr.bf16.mxu0 0
      %690 = vmatpush1.bf16.xpose.msra.mxu0 0
      %691 = vmatprep.mubr.bf16.mxu0 0
      %692 = vmatmul.mubr.bf16.gmra.mrb[0].mxu0 %v654
      %v693 = vpop.f32.mrb[0].mxu0
      %v694 = vadd.f32 0.0, %v693
      %v695 = vpop.f32.mrb[0].mxu0
      %v696 = vpop.f32.mrb[0].mxu0
      %v697 = vpop.f32.mrb[0].mxu0
      %698 = vdwg.mxu0
      %vm699 = vcmp.gt.f32.partialorder %v649, 0.0
      %v700 = vsel %vm699, %v694, -1e+10
      %v701 = vsel %vm652, %v700, -inf
      %702 = vmax.xlane.f32.xlu0 %v701
      %v703 = vpop.xlane.xlu0 %702
      %v704 = vsub.f32 %v700, %v703
      %v705 = vmul.f32 %v704, 1.442695
      %v706 = vpow.pop %v705
      %v707 = vsel %vm652, %v706, 0.0
      %708 = vadd.xlane.f32.xlu0 %v707
      %v709 = vpop.xlane.xlu0 %708
      %v710 = vrcp.pop %v709
      %v711 = vmul.f32 %v706, %v710
      %v712 = vpack.c.bf16 %v711, %v711
      %714 = vrot.lane.b32.xlu0 %v651, 96
      %v715 = vpop.permute.xlu0 %714
      %v717 = vsel %vm652, %v712, 0
      %vm719 = vcmask 1043456
      %v721 = vsel %vm719, %v715, 0
      %723 = vmatprep.subr.bf16.mxu0 0
      %724 = vmatpush1.bf16.msra.mxu0 %v721
      %725 = vmatprep.subr.bf16.mxu0 0
      %726 = vmatpush1.bf16.msra.mxu0 0
      %727 = vmatprep.subr.bf16.mxu0 0
      %728 = vmatpush1.bf16.msra.mxu0 0
      %729 = vmatprep.subr.bf16.mxu0 0
      %730 = vmatpush1.bf16.msra.mxu0 0
      %731 = vmatprep.subr.bf16.mxu0 0
      %732 = vmatpush1.bf16.msra.mxu0 0
      %733 = vmatprep.subr.bf16.mxu0 0
      %734 = vmatpush1.bf16.msra.mxu0 0
      %735 = vmatprep.subr.bf16.mxu0 0
      %736 = vmatpush1.bf16.msra.mxu0 0
      %737 = vmatprep.subr.bf16.mxu0 0
      %738 = vmatpush1.bf16.msra.mxu0 0
      %739 = vmatprep.subr.bf16.mxu0 0
      %740 = vmatpush1.bf16.msra.mxu0 0
      %741 = vmatprep.subr.bf16.mxu0 0
      %742 = vmatpush1.bf16.msra.mxu0 0
      %743 = vmatprep.subr.bf16.mxu0 0
      %744 = vmatpush1.bf16.msra.mxu0 0
      %745 = vmatprep.subr.bf16.mxu0 0
      %746 = vmatpush1.bf16.msra.mxu0 0
      %747 = vmatprep.subr.bf16.mxu0 0
      %748 = vmatpush1.bf16.msra.mxu0 0
      %749 = vmatprep.subr.bf16.mxu0 0
      %750 = vmatpush1.bf16.msra.mxu0 0
      %751 = vmatprep.subr.bf16.mxu0 0
      %752 = vmatpush1.bf16.msra.mxu0 0
      %753 = vmatprep.subr.bf16.mxu0 0
      %754 = vmatpush1.bf16.msra.mxu0 0
      %755 = vmatprep.mubr.bf16.mxu0 0
      %756 = vmatmul.mubr.bf16.gmra.mrb[0].mxu0 %v717
      %v757 = vpop.f32.mrb[0].mxu0
      %v758 = vadd.f32 0.0, %v757
      %v759 = vpop.f32.mrb[0].mxu0
      %v760 = vpop.f32.mrb[0].mxu0
      %v761 = vpop.f32.mrb[0].mxu0
      %762 = vdwg.mxu0
      %763 = vst.msk [vmem:[#allocation2] sm:$0xff] %vm652, %v758
      %765 = vrot.lane.b32.xlu0 %v650, 120
      %v766 = vpop.permute.xlu0 %765
      %767 = vrot.lane.b32.xlu0 %v651, 120
      %v768 = vpop.permute.xlu0 %767
      %v770 = vsel %vm652, %v766, 0
      %v773 = vsel %vm652, %v768, 0
      %775 = vmatprep.subr.bf16.mxu0 0
      %776 = vmatpush1.bf16.xpose.msra.mxu0 %v773
      %777 = vmatprep.subr.bf16.mxu0 0
      %778 = vmatpush1.bf16.xpose.msra.mxu0 0
      %779 = vmatprep.subr.bf16.mxu0 0
      %780 = vmatpush1.bf16.xpose.msra.mxu0 0
      %781 = vmatprep.subr.bf16.mxu0 0
      %782 = vmatpush1.bf16.xpose.msra.mxu0 0
      %783 = vmatprep.subr.bf16.mxu0 0
      %784 = vmatpush1.bf16.xpose.msra.mxu0 0
      %785 = vmatprep.subr.bf16.mxu0 0
      %786 = vmatpush1.bf16.xpose.msra.mxu0 0
      %787 = vmatprep.subr.bf16.mxu0 0
      %788 = vmatpush1.bf16.xpose.msra.mxu0 0
      %789 = vmatprep.subr.bf16.mxu0 0
      %790 = vmatpush1.bf16.xpose.msra.mxu0 0
      %791 = vmatprep.subr.bf16.mxu0 0
      %792 = vmatpush1.bf16.xpose.msra.mxu0 0
      %793 = vmatprep.subr.bf16.mxu0 0
      %794 = vmatpush1.bf16.xpose.msra.mxu0 0
      %795 = vmatprep.subr.bf16.mxu0 0
      %796 = vmatpush1.bf16.xpose.msra.mxu0 0
      %797 = vmatprep.subr.bf16.mxu0 0
      %798 = vmatpush1.bf16.xpose.msra.mxu0 0
      %799 = vmatprep.subr.bf16.mxu0 0
      %800 = vmatpush1.bf16.xpose.msra.mxu0 0
      %801 = vmatprep.subr.bf16.mxu0 0
      %802 = vmatpush1.bf16.xpose.msra.mxu0 0
      %803 = vmatprep.subr.bf16.mxu0 0
      %804 = vmatpush1.bf16.xpose.msra.mxu0 0
      %805 = vmatprep.subr.bf16.mxu0 0
      %806 = vmatpush1.bf16.xpose.msra.mxu0 0
      %807 = vmatprep.mubr.bf16.mxu0 0
      %808 = vmatmul.mubr.bf16.gmra.mrb[0].mxu0 %v770
      %v809 = vpop.f32.mrb[0].mxu0
      %v810 = vadd.f32 0.0, %v809
      %v811 = vpop.f32.mrb[0].mxu0
      %v812 = vpop.f32.mrb[0].mxu0
      %v813 = vpop.f32.mrb[0].mxu0
      %814 = vdwg.mxu0
      %v815 = vsel %vm699, %v810, -1e+10
      %v816 = vsel %vm652, %v815, -inf
      %817 = vmax.xlane.f32.xlu0 %v816
      %v818 = vpop.xlane.xlu0 %817
      %v819 = vsub.f32 %v815, %v818
      %v820 = vmul.f32 %v819, 1.442695
      %v821 = vpow.pop %v820
      %v822 = vsel %vm652, %v821, 0.0
      %823 = vadd.xlane.f32.xlu0 %v822
      %v824 = vpop.xlane.xlu0 %823
      %v825 = vrcp.pop %v824
      %v826 = vmul.f32 %v821, %v825
      %v827 = vpack.c.bf16 %v826, %v826
      %828 = vrot.lane.b32.xlu0 %v651, 88
      %v829 = vpop.permute.xlu0 %828
      %v831 = vsel %vm652, %v827, 0
      %v834 = vsel %vm719, %v829, 0
      %836 = vmatprep.subr.bf16.mxu0 0
      %837 = vmatpush1.bf16.msra.mxu0 %v834
      %838 = vmatprep.subr.bf16.mxu0 0
      %839 = vmatpush1.bf16.msra.mxu0 0
      %840 = vmatprep.subr.bf16.mxu0 0
      %841 = vmatpush1.bf16.msra.mxu0 0
      %842 = vmatprep.subr.bf16.mxu0 0
      %843 = vmatpush1.bf16.msra.mxu0 0
      %844 = vmatprep.subr.bf16.mxu0 0
      %845 = vmatpush1.bf16.msra.mxu0 0
      %846 = vmatprep.subr.bf16.mxu0 0
      %847 = vmatpush1.bf16.msra.mxu0 0
      %848 = vmatprep.subr.bf16.mxu0 0
      %849 = vmatpush1.bf16.msra.mxu0 0
      %850 = vmatprep.subr.bf16.mxu0 0
      %851 = vmatpush1.bf16.msra.mxu0 0
      %852 = vmatprep.subr.bf16.mxu0 0
      %853 = vmatpush1.bf16.msra.mxu0 0
      %854 = vmatprep.subr.bf16.mxu0 0
      %855 = vmatpush1.bf16.msra.mxu0 0
      %856 = vmatprep.subr.bf16.mxu0 0
      %857 = vmatpush1.bf16.msra.mxu0 0
      %858 = vmatprep.subr.bf16.mxu0 0
      %859 = vmatpush1.bf16.msra.mxu0 0
      %860 = vmatprep.subr.bf16.mxu0 0
      %861 = vmatpush1.bf16.msra.mxu0 0
      %862 = vmatprep.subr.bf16.mxu0 0
      %863 = vmatpush1.bf16.msra.mxu0 0
      %864 = vmatprep.subr.bf16.mxu0 0
      %865 = vmatpush1.bf16.msra.mxu0 0
      %866 = vmatprep.subr.bf16.mxu0 0
      %867 = vmatpush1.bf16.msra.mxu0 0
      %868 = vmatprep.mubr.bf16.mxu0 0
      %869 = vmatmul.mubr.bf16.gmra.mrb[0].mxu0 %v831
      %v870 = vpop.f32.mrb[0].mxu0
      %v871 = vadd.f32 0.0, %v870
      %v872 = vpop.f32.mrb[0].mxu0
      %v873 = vpop.f32.mrb[0].mxu0
      %v874 = vpop.f32.mrb[0].mxu0
      %875 = vdwg.mxu0
      %877 = vrot.lane.b32.xlu0 %v871, 8
      %v878 = vpop.permute.xlu0 %877
      %vm880 = vcmask 130112
      %881 = vst.msk [vmem:[#allocation2] sm:$0xff] %vm880, %v878
      %882 = vrot.lane.b32.xlu0 %v650, 112
      %v883 = vpop.permute.xlu0 %882
      %884 = vrot.lane.b32.xlu0 %v651, 112
      %v885 = vpop.permute.xlu0 %884
      %v887 = vsel %vm652, %v883, 0
      %v890 = vsel %vm652, %v885, 0
      %892 = vmatprep.subr.bf16.mxu0 0
      %893 = vmatpush1.bf16.xpose.msra.mxu0 %v890
      %894 = vmatprep.subr.bf16.mxu0 0
      %895 = vmatpush1.bf16.xpose.msra.mxu0 0
      %896 = vmatprep.subr.bf16.mxu0 0
      %897 = vmatpush1.bf16.xpose.msra.mxu0 0
      %898 = vmatprep.subr.bf16.mxu0 0
      %899 = vmatpush1.bf16.xpose.msra.mxu0 0
      %900 = vmatprep.subr.bf16.mxu0 0
      %901 = vmatpush1.bf16.xpose.msra.mxu0 0
      %902 = vmatprep.subr.bf16.mxu0 0
      %903 = vmatpush1.bf16.xpose.msra.mxu0 0
      %904 = vmatprep.subr.bf16.mxu0 0
      %905 = vmatpush1.bf16.xpose.msra.mxu0 0
      %906 = vmatprep.subr.bf16.mxu0 0
      %907 = vmatpush1.bf16.xpose.msra.mxu0 0
      %908 = vmatprep.subr.bf16.mxu0 0
      %909 = vmatpush1.bf16.xpose.msra.mxu0 0
      %910 = vmatprep.subr.bf16.mxu0 0
      %911 = vmatpush1.bf16.xpose.msra.mxu0 0
      %912 = vmatprep.subr.bf16.mxu0 0
      %913 = vmatpush1.bf16.xpose.msra.mxu0 0
      %914 = vmatprep.subr.bf16.mxu0 0
      %915 = vmatpush1.bf16.xpose.msra.mxu0 0
      %916 = vmatprep.subr.bf16.mxu0 0
      %917 = vmatpush1.bf16.xpose.msra.mxu0 0
      %918 = vmatprep.subr.bf16.mxu0 0
      %919 = vmatpush1.bf16.xpose.msra.mxu0 0
      %920 = vmatprep.subr.bf16.mxu0 0
      %921 = vmatpush1.bf16.xpose.msra.mxu0 0
      %922 = vmatprep.subr.bf16.mxu0 0
      %923 = vmatpush1.bf16.xpose.msra.mxu0 0
      %924 = vmatprep.mubr.bf16.mxu0 0
      %925 = vmatmul.mubr.bf16.gmra.mrb[0].mxu0 %v887
      %v926 = vpop.f32.mrb[0].mxu0
      %v927 = vadd.f32 0.0, %v926
      %v928 = vpop.f32.mrb[0].mxu0
      %v929 = vpop.f32.mrb[0].mxu0
      %v930 = vpop.f32.mrb[0].mxu0
      %931 = vdwg.mxu0
      %v932 = vsel %vm699, %v927, -1e+10
      %v933 = vsel %vm652, %v932, -inf
      %934 = vmax.xlane.f32.xlu0 %v933
      %v935 = vpop.xlane.xlu0 %934
      %v936 = vsub.f32 %v932, %v935
      %v937 = vmul.f32 %v936, 1.442695
      %v938 = vpow.pop %v937
      %v939 = vsel %vm652, %v938, 0.0
      %940 = vadd.xlane.f32.xlu0 %v939
      %v941 = vpop.xlane.xlu0 %940
      %v942 = vrcp.pop %v941
      %v943 = vmul.f32 %v938, %v942
      %v944 = vpack.c.bf16 %v943, %v943
      %945 = vrot.lane.b32.xlu0 %v651, 80
      %v946 = vpop.permute.xlu0 %945
      %v948 = vsel %vm652, %v944, 0
      %v951 = vsel %vm719, %v946, 0
      %953 = vmatprep.subr.bf16.mxu0 0
      %954 = vmatpush1.bf16.msra.mxu0 %v951
      %955 = vmatprep.subr.bf16.mxu0 0
      %956 = vmatpush1.bf16.msra.mxu0 0
      %957 = vmatprep.subr.bf16.mxu0 0
      %958 = vmatpush1.bf16.msra.mxu0 0
      %959 = vmatprep.subr.bf16.mxu0 0
      %960 = vmatpush1.bf16.msra.mxu0 0
      %961 = vmatprep.subr.bf16.mxu0 0
      %962 = vmatpush1.bf16.msra.mxu0 0
      %963 = vmatprep.subr.bf16.mxu0 0
      %964 = vmatpush1.bf16.msra.mxu0 0
      %965 = vmatprep.subr.bf16.mxu0 0
      %966 = vmatpush1.bf16.msra.mxu0 0
      %967 = vmatprep.subr.bf16.mxu0 0
      %968 = vmatpush1.bf16.msra.mxu0 0
      %969 = vmatprep.subr.bf16.mxu0 0
      %970 = vmatpush1.bf16.msra.mxu0 0
      %971 = vmatprep.subr.bf16.mxu0 0
      %972 = vmatpush1.bf16.msra.mxu0 0
      %973 = vmatprep.subr.bf16.mxu0 0
      %974 = vmatpush1.bf16.msra.mxu0 0
      %975 = vmatprep.subr.bf16.mxu0 0
      %976 = vmatpush1.bf16.msra.mxu0 0
      %977 = vmatprep.subr.bf16.mxu0 0
      %978 = vmatpush1.bf16.msra.mxu0 0
      %979 = vmatprep.subr.bf16.mxu0 0
      %980 = vmatpush1.bf16.msra.mxu0 0
      %981 = vmatprep.subr.bf16.mxu0 0
      %982 = vmatpush1.bf16.msra.mxu0 0
      %983 = vmatprep.subr.bf16.mxu0 0
      %984 = vmatpush1.bf16.msra.mxu0 0
      %985 = vmatprep.mubr.bf16.mxu0 0
      %986 = vmatmul.mubr.bf16.gmra.mrb[0].mxu0 %v948
      %v987 = vpop.f32.mrb[0].mxu0
      %v988 = vadd.f32 0.0, %v987
      %v989 = vpop.f32.mrb[0].mxu0
      %v990 = vpop.f32.mrb[0].mxu0
      %v991 = vpop.f32.mrb[0].mxu0
      %992 = vdwg.mxu0
      %994 = vrot.lane.b32.xlu0 %v988, 16
      %v995 = vpop.permute.xlu0 %994
      %vm997 = vcmask 195712
      %998 = vst.msk [vmem:[#allocation2] sm:$0xff] %vm997, %v995
      %999 = vrot.lane.b32.xlu0 %v650, 104
      %v1000 = vpop.permute.xlu0 %999
      %1001 = vrot.lane.b32.xlu0 %v651, 104
      %v1002 = vpop.permute.xlu0 %1001
      %v1004 = vsel %vm652, %v1000, 0
      %v1007 = vsel %vm652, %v1002, 0
      %1009 = vmatprep.subr.bf16.mxu0 0
      %1010 = vmatpush1.bf16.xpose.msra.mxu0 %v1007
      %1011 = vmatprep.subr.bf16.mxu0 0
      %1012 = vmatpush1.bf16.xpose.msra.mxu0 0
      %1013 = vmatprep.subr.bf16.mxu0 0
      %1014 = vmatpush1.bf16.xpose.msra.mxu0 0
      %1015 = vmatprep.subr.bf16.mxu0 0
      %1016 = vmatpush1.bf16.xpose.msra.mxu0 0
      %1017 = vmatprep.subr.bf16.mxu0 0
      %1018 = vmatpush1.bf16.xpose.msra.mxu0 0
      %1019 = vmatprep.subr.bf16.mxu0 0
      %1020 = vmatpush1.bf16.xpose.msra.mxu0 0
      %1021 = vmatprep.subr.bf16.mxu0 0
      %1022 = vmatpush1.bf16.xpose.msra.mxu0 0
      %1023 = vmatprep.subr.bf16.mxu0 0
      %1024 = vmatpush1.bf16.xpose.msra.mxu0 0
      %1025 = vmatprep.subr.bf16.mxu0 0
      %1026 = vmatpush1.bf16.xpose.msra.mxu0 0
      %1027 = vmatprep.subr.bf16.mxu0 0
      %1028 = vmatpush1.bf16.xpose.msra.mxu0 0
      %1029 = vmatprep.subr.bf16.mxu0 0
      %1030 = vmatpush1.bf16.xpose.msra.mxu0 0
      %1031 = vmatprep.subr.bf16.mxu0 0
      %1032 = vmatpush1.bf16.xpose.msra.mxu0 0
      %1033 = vmatprep.subr.bf16.mxu0 0
      %1034 = vmatpush1.bf16.xpose.msra.mxu0 0
      %1035 = vmatprep.subr.bf16.mxu0 0
      %1036 = vmatpush1.bf16.xpose.msra.mxu0 0
      %1037 = vmatprep.subr.bf16.mxu0 0
      %1038 = vmatpush1.bf16.xpose.msra.mxu0 0
      %1039 = vmatprep.subr.bf16.mxu0 0
      %1040 = vmatpush1.bf16.xpose.msra.mxu0 0
      %1041 = vmatprep.mubr.bf16.mxu0 0
      %1042 = vmatmul.mubr.bf16.gmra.mrb[0].mxu0 %v1004
      %v1043 = vpop.f32.mrb[0].mxu0
      %v1044 = vadd.f32 0.0, %v1043
      %v1045 = vpop.f32.mrb[0].mxu0
      %v1046 = vpop.f32.mrb[0].mxu0
      %v1047 = vpop.f32.mrb[0].mxu0
      %1048 = vdwg.mxu0
      %v1049 = vsel %vm699, %v1044, -1e+10
      %v1050 = vsel %vm652, %v1049, -inf
      %1051 = vmax.xlane.f32.xlu0 %v1050
      %v1052 = vpop.xlane.xlu0 %1051
      %v1053 = vsub.f32 %v1049, %v1052
      %v1054 = vmul.f32 %v1053, 1.442695
      %v1055 = vpow.pop %v1054
      %v1056 = vsel %vm652, %v1055, 0.0
      %1057 = vadd.xlane.f32.xlu0 %v1056
      %v1058 = vpop.xlane.xlu0 %1057
      %v1059 = vrcp.pop %v1058
      %v1060 = vmul.f32 %v1055, %v1059
      %v1061 = vpack.c.bf16 %v1060, %v1060
      %1062 = vrot.lane.b32.xlu0 %v651, 72
      %v1063 = vpop.permute.xlu0 %1062
      %v1065 = vsel %vm652, %v1061, 0
      %v1068 = vsel %vm719, %v1063, 0
      %1070 = vmatprep.subr.bf16.mxu0 0
      %1071 = vmatpush1.bf16.msra.mxu0 %v1068
      %1072 = vmatprep.subr.bf16.mxu0 0
      %1073 = vmatpush1.bf16.msra.mxu0 0
      %1074 = vmatprep.subr.bf16.mxu0 0
      %1075 = vmatpush1.bf16.msra.mxu0 0
      %1076 = vmatprep.subr.bf16.mxu0 0
      %1077 = vmatpush1.bf16.msra.mxu0 0
      %1078 = vmatprep.subr.bf16.mxu0 0
      %1079 = vmatpush1.bf16.msra.mxu0 0
      %1080 = vmatprep.subr.bf16.mxu0 0
      %1081 = vmatpush1.bf16.msra.mxu0 0
      %1082 = vmatprep.subr.bf16.mxu0 0
      %1083 = vmatpush1.bf16.msra.mxu0 0
      %1084 = vmatprep.subr.bf16.mxu0 0
      %1085 = vmatpush1.bf16.msra.mxu0 0
      %1086 = vmatprep.subr.bf16.mxu0 0
      %1087 = vmatpush1.bf16.msra.mxu0 0
      %1088 = vmatprep.subr.bf16.mxu0 0
      %1089 = vmatpush1.bf16.msra.mxu0 0
      %1090 = vmatprep.subr.bf16.mxu0 0
      %1091 = vmatpush1.bf16.msra.mxu0 0
      %1092 = vmatprep.subr.bf16.mxu0 0
      %1093 = vmatpush1.bf16.msra.mxu0 0
      %1094 = vmatprep.subr.bf16.mxu0 0
      %1095 = vmatpush1.bf16.msra.mxu0 0
      %1096 = vmatprep.subr.bf16.mxu0 0
      %1097 = vmatpush1.bf16.msra.mxu0 0
      %1098 = vmatprep.subr.bf16.mxu0 0
      %1099 = vmatpush1.bf16.msra.mxu0 0
      %1100 = vmatprep.subr.bf16.mxu0 0
      %1101 = vmatpush1.bf16.msra.mxu0 0
      %1102 = vmatprep.mubr.bf16.mxu0 0
      %1103 = vmatmul.mubr.bf16.gmra.mrb[0].mxu0 %v1065
      %v1104 = vpop.f32.mrb[0].mxu0
      %v1105 = vadd.f32 0.0, %v1104
      %v1106 = vpop.f32.mrb[0].mxu0
      %v1107 = vpop.f32.mrb[0].mxu0
      %v1108 = vpop.f32.mrb[0].mxu0
      %1109 = vdwg.mxu0
      %1111 = vrot.lane.b32.xlu0 %v1105, 24
      %v1112 = vpop.permute.xlu0 %1111
      %vm1114 = vcmask 261312
      %1115 = vst.msk [vmem:[#allocation2] sm:$0xff] %vm1114, %v1112
      %v1116 = vld [vmem:[#allocation2] sm:$0xff]
      %v1117 = vpack.c.bf16 %v1116, %v1116
      %v1118 = vld [vmem:[%s6] sm:$0xf]
      %v1119 = vld [vmem:[%s6 + $0x4] sm:$0xf]
      %v1120 = vld [vmem:[%s6 + $0x8] sm:$0xf]
      %v1121 = vld [vmem:[%s6 + $0xc] sm:$0xf]
      %v1122 = vld [vmem:[%s7] sm:$0x1]
      %v1124 = vlaneseq
      %v1125 = vshrl.u32 %v1124, 7
      %v1126 = vsub.s32 0, %v1125
      %v1127 = vrot.slane %v1122, %v1126
      %v1133 = vunpack.c.l.b16 %v1118
      %v1134 = vunpack.c.l.b16 %v1119
      %v1135 = vunpack.c.l.b16 %v1120
      %v1136 = vunpack.c.l.b16 %v1121
      %v1137 = vpack.c.b16 %v1134, %v1133
      %v1138 = vpack.c.b16 %v1136, %v1135
      %v1142 = vsel %vm525, %v1117, 0
      %1144 = vmatprep.subr.bf16.mxu0 0
      %1145 = vmatpush1.bf16.msra.mxu0 %v1137
      %1146 = vmatprep.subr.bf16.mxu0 0
      %1147 = vmatpush1.bf16.msra.mxu0 %v1138
      %1148 = vmatprep.subr.bf16.mxu0 0
      %1149 = vmatpush1.bf16.msra.mxu0 0
      %1150 = vmatprep.subr.bf16.mxu0 0
      %1151 = vmatpush1.bf16.msra.mxu0 0
      %1152 = vmatprep.subr.bf16.mxu0 0
      %1153 = vmatpush1.bf16.msra.mxu0 0
      %1154 = vmatprep.subr.bf16.mxu0 0
      %1155 = vmatpush1.bf16.msra.mxu0 0
      %1156 = vmatprep.subr.bf16.mxu0 0
      %1157 = vmatpush1.bf16.msra.mxu0 0
      %1158 = vmatprep.subr.bf16.mxu0 0
      %1159 = vmatpush1.bf16.msra.mxu0 0
      %1160 = vmatprep.subr.bf16.mxu0 0
      %1161 = vmatpush1.bf16.msra.mxu0 0
      %1162 = vmatprep.subr.bf16.mxu0 0
      %1163 = vmatpush1.bf16.msra.mxu0 0
      %1164 = vmatprep.subr.bf16.mxu0 0
      %1165 = vmatpush1.bf16.msra.mxu0 0
      %1166 = vmatprep.subr.bf16.mxu0 0
      %1167 = vmatpush1.bf16.msra.mxu0 0
      %1168 = vmatprep.subr.bf16.mxu0 0
      %1169 = vmatpush1.bf16.msra.mxu0 0
      %1170 = vmatprep.subr.bf16.mxu0 0
      %1171 = vmatpush1.bf16.msra.mxu0 0
      %1172 = vmatprep.subr.bf16.mxu0 0
      %1173 = vmatpush1.bf16.msra.mxu0 0
      %1174 = vmatprep.subr.bf16.mxu0 0
      %1175 = vmatpush1.bf16.msra.mxu0 0
      %1176 = vmatprep.mubr.bf16.mxu0 0
      %1177 = vmatmul.mubr.bf16.gmra.mrb[0].mxu0 %v1142
      %v1178 = vpop.f32.mrb[0].mxu0
      %v1179 = vadd.f32 %v1127, %v1178
      %v1180 = vpop.f32.mrb[0].mxu0
      %v1181 = vpop.f32.mrb[0].mxu0
      %v1182 = vpop.f32.mrb[0].mxu0
      %1183 = vdwg.mxu0
      %v1184 = vunpack.c.l.bf16 %v500
      %v1185 = vadd.f32 %v1184, %v1179
      %v1186 = vld [vmem:[%s10] sm:$0x1]
      %v1187 = vld [vmem:[%s11] sm:$0x1]
      %v1188 = vsel %vm525, %v1185, 0.0
      %1189 = vadd.xlane.f32.xlu0 %v1188
      %v1190 = vpop.xlane.xlu0 %1189
      %v1191 = vrcp.pop 32.0
      %v1192 = vmul.f32 %v1190, %v1191
      %v1193 = vsub.f32 %v1185, %v1192
      %v1194 = vmul.f32 %v1193, %v1193
      %v1195 = vsel %vm525, %v1194, 0.0
      %1196 = vadd.xlane.f32.xlu0 %v1195
      %v1197 = vpop.xlane.xlu0 %1196
      %v1198 = vmul.f32 %v1197, %v1191
      %v1199 = vadd.f32 %v1198, 1e-05
      %v1200 = vrsqrt.pop %v1199
      %v1201 = vmul.f32 %v1193, %v1200
      %v1203 = vlaneseq
      %v1204 = vshrl.u32 %v1203, 7
      %v1205 = vsub.s32 0, %v1204
      %v1206 = vrot.slane %v1186, %v1205
      %v1208 = vmul.f32 %v1201, %v1206
      %v1210 = vlaneseq
      %v1211 = vshrl.u32 %v1210, 7
      %v1212 = vsub.s32 0, %v1211
      %v1213 = vrot.slane %v1187, %v1212
      %v1215 = vadd.f32 %v1208, %v1213
      %v1216 = vpack.c.bf16 %v1215, %v1215
      %vm1217 = vcmask 257024
      %1218 = vst.msk [vmem:[%s498] sm:$0xf] %vm1217, %v1216
      %p1219 = scmp.lt.s32.totalorder %s27, 1
      %s1220 = scalar_select %p1219, %s27, 1
      %p1221 = scmp.lt.s32.totalorder %s28, 0
      %s1222 = scalar_select %p1221, %s28, 0
      %s1223 = sadd.s32 %s1222, %s1220
      %s1224 = smul.addr %s1223, 4
      %s1225 = scalar_lea.vmem %s12, %s1224
      // Predicated region
      $region69: #{transformer_forward.11} parent=67 // pred_check
        %p1226 = pneg %p331
      $region70: #{transformer_forward.11} parent=67 // pred_check_branch
        %1228 = sbr.rel (%p1226) target = $region72
      $region71: #{transformer_forward.11} parent=67 // pred_region
        _
      $region72: #{transformer_forward.11} parent=67 // pred_fallthru
        _
    $region68: #{transformer_forward.11} parent=5 // pred_fallthru
      _
    %p1229 = scmp.le.s32.totalorder 2, %s18
    // Predicated region
    $region73: #{transformer_forward.11} parent=5 // pred_check
      %p1230 = pneg %p1229
    $region74: #{transformer_forward.11} parent=5 // pred_check_branch
      %1232 = sbr.rel (%p1230) target = $region76
    $region75: #{transformer_forward.11} parent=5 // pred_region
      %s1233 = ssub.s32 %s18, 2
      // Predicated region
      $region77: #{transformer_forward.11} parent=75 // pred_check
        %p1234 = pneg %p337
      $region78: #{transformer_forward.11} parent=75 // pred_check_branch
        %1236 = sbr.rel (%p1234) target = $region80
      $region79: #{transformer_forward.11} parent=75 // pred_region
        %p1237 = scmp.lt.s32.totalorder %s29, 1
        %s1238 = scalar_select %p1237, %s29, 1
        %p1239 = scmp.lt.s32.totalorder %s30, 0
        %s1240 = scalar_select %p1239, %s30, 0
        %s1241 = sadd.s32 %s1240, %s1238
        %s1242 = smul.addr %s1241, 4
        %s1243 = scalar_lea.vmem %s12, %s1242
      $region80: #{transformer_forward.11} parent=75 // pred_fallthru
        _
    $region76: #{transformer_forward.11} parent=5 // pred_fallthru
      _
  $region6: #{transformer_forward.11} parent=0 // loop_footer
    %s22 = sadd.s32 1, %s18
  $region7: #{transformer_forward.11} parent=0 // loop_footer_branch
    %17 = sbr.rel target = $region3
  $region8: #{transformer_forward.11} parent=0 // loop_exit
    _

// kernel: transformer_forward.15
$region0: #{transformer_forward.15}
  #allocation0 [shape = 'u32[]', space=smem, size = 0x4, offset = 0x4, fixed_abs, tag = 'smem constant byte address 0x4 - core index']
  #allocation1 [shape = 'u32[144,128]{1,0:T(1,128)}', space=vmem, size = 0x12000, scoped, tag = 'internal scratch']
  #allocation2 [shape = 'f32[8,32]{1,0:T(8,128)}', space=vmem, size = 0x1000, scoped, tag = 'scratch operand']
  %s0 = inlined_call_operand.vmem [shape: bf16[2,8,32], index: 0, kind: input, shape index: {}, may-alias: {0,1}]
  %s1 = inlined_call_operand.vmem [shape: bf16[2,8,32], index: 1, kind: input, shape index: {}, may-alias: {0,1}]
  %s2 = inlined_call_operand.vmem [shape: bf16[32,32], index: 2, kind: input, shape index: {}]
  %s3 = inlined_call_operand.vmem [shape: f32[1,32], index: 3, kind: input, shape index: {}]
  %s4 = inlined_call_operand.vmem [shape: bf16[32,64], index: 4, kind: input, shape index: {}]
  %s5 = inlined_call_operand.vmem [shape: f32[1,64], index: 5, kind: input, shape index: {}]
  %s6 = inlined_call_operand.vmem [shape: bf16[32,32], index: 6, kind: input, shape index: {}]
  %s7 = inlined_call_operand.vmem [shape: f32[1,32], index: 7, kind: input, shape index: {}]
  %s8 = inlined_call_operand.vmem [shape: f32[2,1,8], index: 8, kind: input, shape index: {}]
  %s9 = inlined_call_operand.vmem [shape: f32[2,8,1], index: 9, kind: input, shape index: {}]
  %s10 = inlined_call_operand.vmem [shape: f32[1,32], index: 10, kind: input, shape index: {}]
  %s11 = inlined_call_operand.vmem [shape: f32[1,32], index: 11, kind: input, shape index: {}]
  %s12 = inlined_call_operand.vmem [shape: bf16[2,8,32], index: 12, kind: output, shape index: {}]
  %s13 = sld [smem:[#allocation0]]
  $region81: #{transformer_forward.15} parent=0
    _
  %s15 = ssub.s32 1, %s13
  %s16 = scalar_select 0, %s15, %s13
  loop: start=0, step=1, limit=4
  $region2: #{transformer_forward.15} parent=0 // loop_pre_header
    _
  $region3: #{transformer_forward.15} parent=0 // loop_header
    %s18 = sphi 0, %s22
    %p19 = scmp.ge.s32.totalorder %s18, 4
    %s25 = sphi 0, %s37
    %s26 = sphi 0, %s33
    %s27 = sphi 0, %s25
    %s28 = sphi 0, %s26
    %s29 = sphi 0, %s27
    %s30 = sphi 0, %s28
    %s42 = sphi 0, %s44
    %s45 = sphi 0, %s42
    %s46 = sphi 0, %s45
    %s62 = sphi 0, %s46
    %s68 = sphi 0, %s70
    %s71 = sphi 0, %s68
    %s72 = sphi 0, %s71
    %s88 = sphi 0, %s72
    %s92 = sphi 0, %s92
    %s94 = sphi 0, %s92
    %s95 = sphi 0, %s94
    %s109 = sphi 0, %s95
    %s113 = sphi 0, %s113
    %s115 = sphi 0, %s113
    %s116 = sphi 0, %s115
    %s130 = sphi 0, %s116
    %s134 = sphi 0, %s134
    %s136 = sphi 0, %s134
    %s137 = sphi 0, %s136
    %s151 = sphi 0, %s137
    %s155 = sphi 0, %s155
    %s157 = sphi 0, %s155
    %s158 = sphi 0, %s157
    %s172 = sphi 0, %s158
    %s176 = sphi 0, %s176
    %s178 = sphi 0, %s176
    %s179 = sphi 0, %s178
    %s193 = sphi 0, %s179
    %s197 = sphi 0, %s197
    %s199 = sphi 0, %s197
    %s200 = sphi 0, %s199
    %s214 = sphi 0, %s200
    %s220 = sphi 0, %s222
    %s223 = sphi 0, %s220
    %s224 = sphi 0, %s223
    %s240 = sphi 0, %s224
    %s248 = sphi 0, %s250
    %s251 = sphi 0, %s248
    %s252 = sphi 0, %s251
    %s268 = sphi 0, %s252
    %s272 = sphi 0, %s272
    %s274 = sphi 0, %s272
    %s275 = sphi 0, %s274
    %s289 = sphi 0, %s275
    %s293 = sphi 0, %s293
    %s295 = sphi 0, %s293
    %s296 = sphi 0, %s295
    %s310 = sphi 0, %s296
    %s318 = sphi 0, %s320
    %s321 = sphi 0, %s318
    %s322 = sphi 0, %s321
    %s338 = sphi 0, %s322
  $region4: #{transformer_forward.15} parent=0 // loop_header_branch
    %21 = sbr.rel (%p19) target = $region8
  $region5: #{transformer_forward.15} parent=0 // loop_body
    %s23 = ssub.s32 %s18, 1
    %s24 = ssub.s32 %s18, 2
    %s31 = sadd.s32 1, %s26
    %p32 = scmp.ge.s32.totalorder %s31, 1
    %s33 = scalar_select %p32, 0, %s31
    %s34 = sadd.s32 1, %s25
    %s35 = scalar_select %p32, %s34, %s25
    %p36 = scmp.ge.s32.totalorder %s35, 2
    %s37 = scalar_select %p36, 0, %s35
    %s38 = ssub.s32 %s25, %s37
    %s39 = ssub.s32 %s26, %s33
    %s40 = sor.u32 %s38, %s39
    %p41 = scmp.eq.s32.totalorder %s40, 0
    %s43 = sadd.s32 %s42, 1
    %s44 = scalar_select %p41, %s42, %s43
    %p47 = pneg %p41
    %p48 = scmp.eq.s32.totalorder %s18, 1
    %p49 = por %p47, %p48
    %p50 = scmp.ne.s32.totalorder %s42, %s45
    %p51 = scmp.eq.s32.totalorder %s18, 0
    %p52 = por %p50, %p51
    %p53 = scmp.ne.s32.totalorder %s42, %s45
    %p54 = scmp.eq.s32.totalorder %s23, 1
    %p55 = por %p53, %p54
    %p56 = scmp.ne.s32.totalorder %s45, %s46
    %p57 = scmp.eq.s32.totalorder %s23, 0
    %p58 = por %p56, %p57
    %p59 = scmp.ne.s32.totalorder %s45, %s46
    %p60 = scmp.eq.s32.totalorder %s24, 1
    %p61 = por %p59, %p60
    %p63 = scmp.ne.s32.totalorder %s46, %s62
    %p64 = scmp.eq.s32.totalorder %s24, 0
    %p65 = por %p63, %p64
    %s66 = ssub.s32 %s25, %s37
    %p67 = scmp.eq.s32.totalorder %s66, 0
    %s69 = sadd.s32 %s68, 1
    %s70 = scalar_select %p67, %s68, %s69
    %p73 = pneg %p67
    %p74 = scmp.eq.s32.totalorder %s18, 1
    %p75 = por %p73, %p74
    %p76 = scmp.ne.s32.totalorder %s68, %s71
    %p77 = scmp.eq.s32.totalorder %s18, 0
    %p78 = por %p76, %p77
    %p79 = scmp.ne.s32.totalorder %s68, %s71
    %p80 = scmp.eq.s32.totalorder %s23, 1
    %p81 = por %p79, %p80
    %p82 = scmp.ne.s32.totalorder %s71, %s72
    %p83 = scmp.eq.s32.totalorder %s23, 0
    %p84 = por %p82, %p83
    %p85 = scmp.ne.s32.totalorder %s71, %s72
    %p86 = scmp.eq.s32.totalorder %s24, 1
    %p87 = por %p85, %p86
    %p89 = scmp.ne.s32.totalorder %s72, %s88
    %p90 = scmp.eq.s32.totalorder %s24, 0
    %p91 = por %p89, %p90
    %s93 = sadd.s32 %s92, 1
    %p96 = scmp.eq.s32.totalorder %s18, 1
    %p97 = scmp.ne.s32.totalorder %s92, %s94
    %p98 = scmp.eq.s32.totalorder %s18, 0
    %p99 = por %p97, %p98
    %p100 = scmp.ne.s32.totalorder %s92, %s94
    %p101 = scmp.eq.s32.totalorder %s23, 1
    %p102 = por %p100, %p101
    %p103 = scmp.ne.s32.totalorder %s94, %s95
    %p104 = scmp.eq.s32.totalorder %s23, 0
    %p105 = por %p103, %p104
    %p106 = scmp.ne.s32.totalorder %s94, %s95
    %p107 = scmp.eq.s32.totalorder %s24, 1
    %p108 = por %p106, %p107
    %p110 = scmp.ne.s32.totalorder %s95, %s109
    %p111 = scmp.eq.s32.totalorder %s24, 0
    %p112 = por %p110, %p111
    %s114 = sadd.s32 %s113, 1
    %p117 = scmp.eq.s32.totalorder %s18, 1
    %p118 = scmp.ne.s32.totalorder %s113, %s115
    %p119 = scmp.eq.s32.totalorder %s18, 0
    %p120 = por %p118, %p119
    %p121 = scmp.ne.s32.totalorder %s113, %s115
    %p122 = scmp.eq.s32.totalorder %s23, 1
    %p123 = por %p121, %p122
    %p124 = scmp.ne.s32.totalorder %s115, %s116
    %p125 = scmp.eq.s32.totalorder %s23, 0
    %p126 = por %p124, %p125
    %p127 = scmp.ne.s32.totalorder %s115, %s116
    %p128 = scmp.eq.s32.totalorder %s24, 1
    %p129 = por %p127, %p128
    %p131 = scmp.ne.s32.totalorder %s116, %s130
    %p132 = scmp.eq.s32.totalorder %s24, 0
    %p133 = por %p131, %p132
    %s135 = sadd.s32 %s134, 1
    %p138 = scmp.eq.s32.totalorder %s18, 1
    %p139 = scmp.ne.s32.totalorder %s134, %s136
    %p140 = scmp.eq.s32.totalorder %s18, 0
    %p141 = por %p139, %p140
    %p142 = scmp.ne.s32.totalorder %s134, %s136
    %p143 = scmp.eq.s32.totalorder %s23, 1
    %p144 = por %p142, %p143
    %p145 = scmp.ne.s32.totalorder %s136, %s137
    %p146 = scmp.eq.s32.totalorder %s23, 0
    %p147 = por %p145, %p146
    %p148 = scmp.ne.s32.totalorder %s136, %s137
    %p149 = scmp.eq.s32.totalorder %s24, 1
    %p150 = por %p148, %p149
    %p152 = scmp.ne.s32.totalorder %s137, %s151
    %p153 = scmp.eq.s32.totalorder %s24, 0
    %p154 = por %p152, %p153
    %s156 = sadd.s32 %s155, 1
    %p159 = scmp.eq.s32.totalorder %s18, 1
    %p160 = scmp.ne.s32.totalorder %s155, %s157
    %p161 = scmp.eq.s32.totalorder %s18, 0
    %p162 = por %p160, %p161
    %p163 = scmp.ne.s32.totalorder %s155, %s157
    %p164 = scmp.eq.s32.totalorder %s23, 1
    %p165 = por %p163, %p164
    %p166 = scmp.ne.s32.totalorder %s157, %s158
    %p167 = scmp.eq.s32.totalorder %s23, 0
    %p168 = por %p166, %p167
    %p169 = scmp.ne.s32.totalorder %s157, %s158
    %p170 = scmp.eq.s32.totalorder %s24, 1
    %p171 = por %p169, %p170
    %p173 = scmp.ne.s32.totalorder %s158, %s172
    %p174 = scmp.eq.s32.totalorder %s24, 0
    %p175 = por %p173, %p174
    %s177 = sadd.s32 %s176, 1
    %p180 = scmp.eq.s32.totalorder %s18, 1
    %p181 = scmp.ne.s32.totalorder %s176, %s178
    %p182 = scmp.eq.s32.totalorder %s18, 0
    %p183 = por %p181, %p182
    %p184 = scmp.ne.s32.totalorder %s176, %s178
    %p185 = scmp.eq.s32.totalorder %s23, 1
    %p186 = por %p184, %p185
    %p187 = scmp.ne.s32.totalorder %s178, %s179
    %p188 = scmp.eq.s32.totalorder %s23, 0
    %p189 = por %p187, %p188
    %p190 = scmp.ne.s32.totalorder %s178, %s179
    %p191 = scmp.eq.s32.totalorder %s24, 1
    %p192 = por %p190, %p191
    %p194 = scmp.ne.s32.totalorder %s179, %s193
    %p195 = scmp.eq.s32.totalorder %s24, 0
    %p196 = por %p194, %p195
    %s198 = sadd.s32 %s197, 1
    %p201 = scmp.eq.s32.totalorder %s18, 1
    %p202 = scmp.ne.s32.totalorder %s197, %s199
    %p203 = scmp.eq.s32.totalorder %s18, 0
    %p204 = por %p202, %p203
    %p205 = scmp.ne.s32.totalorder %s197, %s199
    %p206 = scmp.eq.s32.totalorder %s23, 1
    %p207 = por %p205, %p206
    %p208 = scmp.ne.s32.totalorder %s199, %s200
    %p209 = scmp.eq.s32.totalorder %s23, 0
    %p210 = por %p208, %p209
    %p211 = scmp.ne.s32.totalorder %s199, %s200
    %p212 = scmp.eq.s32.totalorder %s24, 1
    %p213 = por %p211, %p212
    %p215 = scmp.ne.s32.totalorder %s200, %s214
    %p216 = scmp.eq.s32.totalorder %s24, 0
    %p217 = por %p215, %p216
    %s218 = ssub.s32 %s25, %s37
    %p219 = scmp.eq.s32.totalorder %s218, 0
    %s221 = sadd.s32 %s220, 1
    %s222 = scalar_select %p219, %s220, %s221
    %p225 = pneg %p219
    %p226 = scmp.eq.s32.totalorder %s18, 1
    %p227 = por %p225, %p226
    %p228 = scmp.ne.s32.totalorder %s220, %s223
    %p229 = scmp.eq.s32.totalorder %s18, 0
    %p230 = por %p228, %p229
    %p231 = scmp.ne.s32.totalorder %s220, %s223
    %p232 = scmp.eq.s32.totalorder %s23, 1
    %p233 = por %p231, %p232
    %p234 = scmp.ne.s32.totalorder %s223, %s224
    %p235 = scmp.eq.s32.totalorder %s23, 0
    %p236 = por %p234, %p235
    %p237 = scmp.ne.s32.totalorder %s223, %s224
    %p238 = scmp.eq.s32.totalorder %s24, 1
    %p239 = por %p237, %p238
    %p241 = scmp.ne.s32.totalorder %s224, %s240
    %p242 = scmp.eq.s32.totalorder %s24, 0
    %p243 = por %p241, %p242
    %s244 = ssub.s32 %s25, %s37
    %s245 = ssub.s32 %s26, %s33
    %s246 = sor.u32 %s244, %s245
    %p247 = scmp.eq.s32.totalorder %s246, 0
    %s249 = sadd.s32 %s248, 1
    %s250 = scalar_select %p247, %s248, %s249
    %p253 = pneg %p247
    %p254 = scmp.eq.s32.totalorder %s18, 1
    %p255 = por %p253, %p254
    %p256 = scmp.ne.s32.totalorder %s248, %s251
    %p257 = scmp.eq.s32.totalorder %s18, 0
    %p258 = por %p256, %p257
    %p259 = scmp.ne.s32.totalorder %s248, %s251
    %p260 = scmp.eq.s32.totalorder %s23, 1
    %p261 = por %p259, %p260
    %p262 = scmp.ne.s32.totalorder %s251, %s252
    %p263 = scmp.eq.s32.totalorder %s23, 0
    %p264 = por %p262, %p263
    %p265 = scmp.ne.s32.totalorder %s251, %s252
    %p266 = scmp.eq.s32.totalorder %s24, 1
    %p267 = por %p265, %p266
    %p269 = scmp.ne.s32.totalorder %s252, %s268
    %p270 = scmp.eq.s32.totalorder %s24, 0
    %p271 = por %p269, %p270
    %s273 = sadd.s32 %s272, 1
    %p276 = scmp.eq.s32.totalorder %s18, 1
    %p277 = scmp.ne.s32.totalorder %s272, %s274
    %p278 = scmp.eq.s32.totalorder %s18, 0
    %p279 = por %p277, %p278
    %p280 = scmp.ne.s32.totalorder %s272, %s274
    %p281 = scmp.eq.s32.totalorder %s23, 1
    %p282 = por %p280, %p281
    %p283 = scmp.ne.s32.totalorder %s274, %s275
    %p284 = scmp.eq.s32.totalorder %s23, 0
    %p285 = por %p283, %p284
    %p286 = scmp.ne.s32.totalorder %s274, %s275
    %p287 = scmp.eq.s32.totalorder %s24, 1
    %p288 = por %p286, %p287
    %p290 = scmp.ne.s32.totalorder %s275, %s289
    %p291 = scmp.eq.s32.totalorder %s24, 0
    %p292 = por %p290, %p291
    %s294 = sadd.s32 %s293, 1
    %p297 = scmp.eq.s32.totalorder %s18, 1
    %p298 = scmp.ne.s32.totalorder %s293, %s295
    %p299 = scmp.eq.s32.totalorder %s18, 0
    %p300 = por %p298, %p299
    %p301 = scmp.ne.s32.totalorder %s293, %s295
    %p302 = scmp.eq.s32.totalorder %s23, 1
    %p303 = por %p301, %p302
    %p304 = scmp.ne.s32.totalorder %s295, %s296
    %p305 = scmp.eq.s32.totalorder %s23, 0
    %p306 = por %p304, %p305
    %p307 = scmp.ne.s32.totalorder %s295, %s296
    %p308 = scmp.eq.s32.totalorder %s24, 1
    %p309 = por %p307, %p308
    %p311 = scmp.ne.s32.totalorder %s296, %s310
    %p312 = scmp.eq.s32.totalorder %s24, 0
    %p313 = por %p311, %p312
    %s314 = ssub.s32 %s25, %s37
    %s315 = ssub.s32 %s26, %s33
    %s316 = sor.u32 %s314, %s315
    %p317 = scmp.eq.s32.totalorder %s316, 0
    %s319 = sadd.s32 %s318, 1
    %s320 = scalar_select %p317, %s318, %s319
    %p323 = pneg %p317
    %p324 = scmp.eq.s32.totalorder %s18, 1
    %p325 = por %p323, %p324
    %p326 = scmp.ne.s32.totalorder %s318, %s321
    %p327 = scmp.eq.s32.totalorder %s18, 0
    %p328 = por %p326, %p327
    %p329 = scmp.ne.s32.totalorder %s318, %s321
    %p330 = scmp.eq.s32.totalorder %s23, 1
    %p331 = por %p329, %p330
    %p332 = scmp.ne.s32.totalorder %s321, %s322
    %p333 = scmp.eq.s32.totalorder %s23, 0
    %p334 = por %p332, %p333
    %p335 = scmp.ne.s32.totalorder %s321, %s322
    %p336 = scmp.eq.s32.totalorder %s24, 1
    %p337 = por %p335, %p336
    %p339 = scmp.ne.s32.totalorder %s322, %s338
    %p340 = scmp.eq.s32.totalorder %s24, 0
    %p341 = por %p339, %p340
    %p342 = scmp.le.s32.totalorder 1, %s18
    %p343 = scmp.lt.s32.totalorder %s18, 3
    %p344 = pnand %p342, %p343
    %p345 = pneg %p344
    // Predicated region
    $region9: #{transformer_forward.15} parent=5 // pred_check
      _
    $region10: #{transformer_forward.15} parent=5 // pred_check_branch
      %347 = sbr.rel (%p344) target = $region12
    $region11: #{transformer_forward.15} parent=5 // pred_region
      %s348 = ssub.s32 %s18, 1
      // Predicated region
      $region13: #{transformer_forward.15} parent=11 // pred_check
        %p349 = pneg %p105
      $region14: #{transformer_forward.15} parent=11 // pred_check_branch
        %351 = sbr.rel (%p349) target = $region16
      $region15: #{transformer_forward.15} parent=11 // pred_region
        _
      $region16: #{transformer_forward.15} parent=11 // pred_fallthru
        _
      // Predicated region
      $region17: #{transformer_forward.15} parent=11 // pred_check
        %p352 = pneg %p126
      $region18: #{transformer_forward.15} parent=11 // pred_check_branch
        %354 = sbr.rel (%p352) target = $region20
      $region19: #{transformer_forward.15} parent=11 // pred_region
        _
      $region20: #{transformer_forward.15} parent=11 // pred_fallthru
        _
      // Predicated region
      $region21: #{transformer_forward.15} parent=11 // pred_check
        %p355 = pneg %p147
      $region22: #{transformer_forward.15} parent=11 // pred_check_branch
        %357 = sbr.rel (%p355) target = $region24
      $region23: #{transformer_forward.15} parent=11 // pred_region
        _
      $region24: #{transformer_forward.15} parent=11 // pred_fallthru
        _
      // Predicated region
      $region25: #{transformer_forward.15} parent=11 // pred_check
        %p358 = pneg %p168
      $region26: #{transformer_forward.15} parent=11 // pred_check_branch
        %360 = sbr.rel (%p358) target = $region28
      $region27: #{transformer_forward.15} parent=11 // pred_region
        _
      $region28: #{transformer_forward.15} parent=11 // pred_fallthru
        _
      // Predicated region
      $region29: #{transformer_forward.15} parent=11 // pred_check
        %p361 = pneg %p189
      $region30: #{transformer_forward.15} parent=11 // pred_check_branch
        %363 = sbr.rel (%p361) target = $region32
      $region31: #{transformer_forward.15} parent=11 // pred_region
        _
      $region32: #{transformer_forward.15} parent=11 // pred_fallthru
        _
      // Predicated region
      $region33: #{transformer_forward.15} parent=11 // pred_check
        %p364 = pneg %p210
      $region34: #{transformer_forward.15} parent=11 // pred_check_branch
        %366 = sbr.rel (%p364) target = $region36
      $region35: #{transformer_forward.15} parent=11 // pred_region
        _
      $region36: #{transformer_forward.15} parent=11 // pred_fallthru
        _
      // Predicated region
      $region37: #{transformer_forward.15} parent=11 // pred_check
        %p367 = pneg %p285
      $region38: #{transformer_forward.15} parent=11 // pred_check_branch
        %369 = sbr.rel (%p367) target = $region40
      $region39: #{transformer_forward.15} parent=11 // pred_region
        _
      $region40: #{transformer_forward.15} parent=11 // pred_fallthru
        _
      // Predicated region
      $region41: #{transformer_forward.15} parent=11 // pred_check
        %p370 = pneg %p306
      $region42: #{transformer_forward.15} parent=11 // pred_check_branch
        %372 = sbr.rel (%p370) target = $region44
      $region43: #{transformer_forward.15} parent=11 // pred_region
        _
      $region44: #{transformer_forward.15} parent=11 // pred_fallthru
        _
    $region12: #{transformer_forward.15} parent=5 // pred_fallthru
      _
    %p373 = scmp.lt.s32.totalorder %s18, 2
    // Predicated region
    $region45: #{transformer_forward.15} parent=5 // pred_check
      %p374 = pneg %p373
    $region46: #{transformer_forward.15} parent=5 // pred_check_branch
      %376 = sbr.rel (%p374) target = $region48
    $region47: #{transformer_forward.15} parent=5 // pred_region
      // Predicated region
      $region49: #{transformer_forward.15} parent=47 // pred_check
        %p377 = pneg %p52
      $region50: #{transformer_forward.15} parent=47 // pred_check_branch
        %379 = sbr.rel (%p377) target = $region52
      $region51: #{transformer_forward.15} parent=47 // pred_region
        %p380 = scmp.lt.s32.totalorder %s25, 1
        %s381 = scalar_select %p380, %s25, 1
        %p382 = scmp.lt.s32.totalorder %s26, 0
        %s383 = scalar_select %p382, %s26, 0
        %s384 = sadd.s32 %s383, %s381
        %s385 = smul.addr %s384, 4
        %s386 = scalar_lea.vmem %s0, %s385
      $region52: #{transformer_forward.15} parent=47 // pred_fallthru
        _
      // Predicated region
      $region53: #{transformer_forward.15} parent=47 // pred_check
        %p387 = pneg %p78
      $region54: #{transformer_forward.15} parent=47 // pred_check_branch
        %389 = sbr.rel (%p387) target = $region56
      $region55: #{transformer_forward.15} parent=47 // pred_region
        %p390 = scmp.lt.s32.totalorder %s25, 1
        %s391 = scalar_select %p390, %s25, 1
        %s392 = smul.addr %s391, 4
        %s393 = scalar_lea.vmem %s1, %s392
      $region56: #{transformer_forward.15} parent=47 // pred_fallthru
        _
      // Predicated region
      $region57: #{transformer_forward.15} parent=47 // pred_check
        %p394 = pneg %p230
      $region58: #{transformer_forward.15} parent=47 // pred_check_branch
        %396 = sbr.rel (%p394) target = $region60
      $region59: #{transformer_forward.15} parent=47 // pred_region
        %p397 = scmp.lt.s32.totalorder %s25, 1
        %s398 = scalar_select %p397, %s25, 1
        %s399 = scalar_lea.vmem %s8, %s398
      $region60: #{transformer_forward.15} parent=47 // pred_fallthru
        _
      // Predicated region
      $region61: #{transformer_forward.15} parent=47 // pred_check
        %p400 = pneg %p258
      $region62: #{transformer_forward.15} parent=47 // pred_check_branch
        %402 = sbr.rel (%p400) target = $region64
      $region63: #{transformer_forward.15} parent=47 // pred_region
        %p403 = scmp.lt.s32.totalorder %s25, 1
        %s404 = scalar_select %p403, %s25, 1
        %p405 = scmp.lt.s32.totalorder %s26, 0
        %s406 = scalar_select %p405, %s26, 0
        %s407 = sadd.s32 %s406, %s404
        %s408 = smul.addr %s407, 8
        %s409 = scalar_lea.vmem %s9, %s408
      $region64: #{transformer_forward.15} parent=47 // pred_fallthru
        _
    $region48: #{transformer_forward.15} parent=5 // pred_fallthru
      _
    %p410 = scmp.le.s32.totalorder 1, %s18
    %p411 = scmp.lt.s32.totalorder %s18, 3
    %p412 = pnand %p410, %p411
    %p413 = pneg %p412
    // Predicated region
    $region65: #{transformer_forward.15} parent=5 // pred_check
      _
    $region66: #{transformer_forward.15} parent=5 // pred_check_branch
      %415 = sbr.rel (%p412) target = $region68
    $region67: #{transformer_forward.15} parent=5 // pred_region
      %s416 = ssub.s32 %s18, 1
      %p417 = scmp.lt.s32.totalorder %s27, 1
      %s418 = scalar_select %p417, %s27, 1
      %p419 = scmp.lt.s32.totalorder %s28, 0
      %s420 = scalar_select %p419, %s28, 0
      %s421 = sadd.s32 %s420, %s418
      %s422 = smul.addr %s421, 4
      %s423 = scalar_lea.vmem %s0, %s422
      %p424 = pneg %p58
      %p425 = pneg %p55
      %p426 = scmp.lt.s32.totalorder %s27, 1
      %s427 = scalar_select %p426, %s27, 1
      %s428 = smul.addr %s427, 4
      %s429 = scalar_lea.vmem %s1, %s428
      %p430 = pneg %p84
      %p431 = pneg %p81
      %p432 = pneg %p105
      %p433 = pneg %p102
      %p434 = pneg %p126
      %p435 = pneg %p123
      %p436 = pneg %p147
      %p437 = pneg %p144
      %p438 = pneg %p168
      %p439 = pneg %p165
      %p440 = pneg %p189
      %p441 = pneg %p186
      %p442 = pneg %p210
      %p443 = pneg %p207
      %p444 = scmp.lt.s32.totalorder %s27, 1
      %s445 = scalar_select %p444, %s27, 1
      %s446 = scalar_lea.vmem %s8, %s445
      %p447 = pneg %p236
      %p448 = pneg %p233
      %p449 = scmp.lt.s32.totalorder %s27, 1
      %s450 = scalar_select %p449, %s27, 1
      %p451 = scmp.lt.s32.totalorder %s28, 0
      %s452 = scalar_select %p451, %s28, 0
      %s453 = sadd.s32 %s452, %s450
      %s454 = smul.addr %s453, 8
      %s455 = scalar_lea.vmem %s9, %s454
      %p456 = pneg %p264
      %p457 = pneg %p261
      %p458 = pneg %p285
      %p459 = pneg %p282
      %p460 = pneg %p306
      %p461 = pneg %p303
      %p462 = pneg %p334
      %p463 = pneg %p331
      %p464 = scmp.lt.s32.totalorder %s27, 1
      %s465 = scalar_select %p464, %s27, 1
      %p466 = scmp.lt.s32.totalorder %s28, 0
      %s467 = scalar_select %p466, %s28, 0
      %s468 = sadd.s32 %s467, %s465
      %s469 = smul.addr %s468, 4
      %s470 = scalar_lea.vmem %s12, %s469
      %p471 = scmp.lt.s32.totalorder %s27, 1
      %s472 = scalar_select %p471, %s27, 1
      %p473 = scmp.lt.s32.totalorder %s28, 0
      %s474 = scalar_select %p473, %s28, 0
      %s475 = sadd.s32 %s474, %s472
      %s476 = smul.addr %s475, 4
      %s477 = scalar_lea.vmem %s0, %s476
      %p478 = scmp.lt.s32.totalorder %s27, 1
      %s479 = scalar_select %p478, %s27, 1
      %s480 = smul.addr %s479, 4
      %s481 = scalar_lea.vmem %s1, %s480
      %p482 = scmp.lt.s32.totalorder %s27, 1
      %s483 = scalar_select %p482, %s27, 1
      %s484 = scalar_lea.vmem %s8, %s483
      %p485 = scmp.lt.s32.totalorder %s27, 1
      %s486 = scalar_select %p485, %s27, 1
      %p487 = scmp.lt.s32.totalorder %s28, 0
      %s488 = scalar_select %p487, %s28, 0
      %s489 = sadd.s32 %s488, %s486
      %s490 = smul.addr %s489, 8
      %s491 = scalar_lea.vmem %s9, %s490
      %p492 = scmp.lt.s32.totalorder %s27, 1
      %s493 = scalar_select %p492, %s27, 1
      %p494 = scmp.lt.s32.totalorder %s28, 0
      %s495 = scalar_select %p494, %s28, 0
      %s496 = sadd.s32 %s495, %s493
      %s497 = smul.addr %s496, 4
      %s498 = scalar_lea.vmem %s12, %s497
      %v500 = vld [vmem:[%s477] sm:$0xf]
      %v501 = vld [vmem:[%s481] sm:$0xf]
      %v502 = vld [vmem:[%s2] sm:$0xf]
      %v503 = vld [vmem:[%s2 + $0x4] sm:$0xf]
      %v504 = vld [vmem:[%s2 + $0x8] sm:$0xf]
      %v505 = vld [vmem:[%s2 + $0xc] sm:$0xf]
      %v506 = vld [vmem:[%s3] sm:$0x1]
      %v508 = vlaneseq
      %v509 = vshrl.u32 %v508, 7
      %v510 = vsub.s32 0, %v509
      %v511 = vrot.slane %v506, %v510
      %v517 = vunpack.c.l.b16 %v502
      %v518 = vunpack.c.l.b16 %v503
      %v519 = vunpack.c.l.b16 %v504
      %v520 = vunpack.c.l.b16 %v505
      %v521 = vpack.c.b16 %v518, %v517
      %v522 = vpack.c.b16 %v520, %v519
      %vm525 = vcmask 261120
      %v527 = vsel %vm525, %v500, 0
      %529 = vmatprep.subr.bf16.mxu0 0
      %530 = vmatpush1.bf16.msra.mxu0 %v521
      %531 = vmatprep.subr.bf16.mxu0 0
      %532 = vmatpush1.bf16.msra.mxu0 %v522
      %533 = vmatprep.subr.bf16.mxu0 0
      %534 = vmatpush1.bf16.msra.mxu0 0
      %535 = vmatprep.subr.bf16.mxu0 0
      %536 = vmatpush1.bf16.msra.mxu0 0
      %537 = vmatprep.subr.bf16.mxu0 0
      %538 = vmatpush1.bf16.msra.mxu0 0
      %539 = vmatprep.subr.bf16.mxu0 0
      %540 = vmatpush1.bf16.msra.mxu0 0
      %541 = vmatprep.subr.bf16.mxu0 0
      %542 = vmatpush1.bf16.msra.mxu0 0
      %543 = vmatprep.subr.bf16.mxu0 0
      %544 = vmatpush1.bf16.msra.mxu0 0
      %545 = vmatprep.subr.bf16.mxu0 0
      %546 = vmatpush1.bf16.msra.mxu0 0
      %547 = vmatprep.subr.bf16.mxu0 0
      %548 = vmatpush1.bf16.msra.mxu0 0
      %549 = vmatprep.subr.bf16.mxu0 0
      %550 = vmatpush1.bf16.msra.mxu0 0
      %551 = vmatprep.subr.bf16.mxu0 0
      %552 = vmatpush1.bf16.msra.mxu0 0
      %553 = vmatprep.subr.bf16.mxu0 0
      %554 = vmatpush1.bf16.msra.mxu0 0
      %555 = vmatprep.subr.bf16.mxu0 0
      %556 = vmatpush1.bf16.msra.mxu0 0
      %557 = vmatprep.subr.bf16.mxu0 0
      %558 = vmatpush1.bf16.msra.mxu0 0
      %559 = vmatprep.subr.bf16.mxu0 0
      %560 = vmatpush1.bf16.msra.mxu0 0
      %561 = vmatprep.mubr.bf16.mxu0 0
      %562 = vmatmul.mubr.bf16.gmra.mrb[0].mxu0 %v527
      %v563 = vpop.f32.mrb[0].mxu0
      %v564 = vadd.f32 %v511, %v563
      %v565 = vpop.f32.mrb[0].mxu0
      %v566 = vpop.f32.mrb[0].mxu0
      %v567 = vpop.f32.mrb[0].mxu0
      %568 = vdwg.mxu0
      %v569 = vld [vmem:[%s4] sm:$0xf]
      %v570 = vld [vmem:[%s4 + $0x4] sm:$0xf]
      %v571 = vld [vmem:[%s4 + $0x8] sm:$0xf]
      %v572 = vld [vmem:[%s4 + $0xc] sm:$0xf]
      %v573 = vld [vmem:[%s5] sm:$0x1]
      %v575 = vlaneseq
      %v576 = vshrl.u32 %v575, 7
      %v577 = vsub.s32 0, %v576
      %v578 = vrot.slane %v573, %v577
      %v584 = vunpack.c.l.b16 %v569
      %v585 = vunpack.c.l.b16 %v570
      %v586 = vunpack.c.l.b16 %v571
      %v587 = vunpack.c.l.b16 %v572
      %v588 = vpack.c.b16 %v585, %v584
      %v589 = vpack.c.b16 %v587, %v586
      %v593 = vsel %vm525, %v501, 0
      %595 = vmatprep.subr.bf16.mxu0 0
      %596 = vmatpush1.bf16.msra.mxu0 %v588
      %597 = vmatprep.subr.bf16.mxu0 0
      %598 = vmatpush1.bf16.msra.mxu0 %v589
      %599 = vmatprep.subr.bf16.mxu0 0
      %600 = vmatpush1.bf16.msra.mxu0 0
      %601 = vmatprep.subr.bf16.mxu0 0
      %602 = vmatpush1.bf16.msra.mxu0 0
      %603 = vmatprep.subr.bf16.mxu0 0
      %604 = vmatpush1.bf16.msra.mxu0 0
      %605 = vmatprep.subr.bf16.mxu0 0
      %606 = vmatpush1.bf16.msra.mxu0 0
      %607 = vmatprep.subr.bf16.mxu0 0
      %608 = vmatpush1.bf16.msra.mxu0 0
      %609 = vmatprep.subr.bf16.mxu0 0
      %610 = vmatpush1.bf16.msra.mxu0 0
      %611 = vmatprep.subr.bf16.mxu0 0
      %612 = vmatpush1.bf16.msra.mxu0 0
      %613 = vmatprep.subr.bf16.mxu0 0
      %614 = vmatpush1.bf16.msra.mxu0 0
      %615 = vmatprep.subr.bf16.mxu0 0
      %616 = vmatpush1.bf16.msra.mxu0 0
      %617 = vmatprep.subr.bf16.mxu0 0
      %618 = vmatpush1.bf16.msra.mxu0 0
      %619 = vmatprep.subr.bf16.mxu0 0
      %620 = vmatpush1.bf16.msra.mxu0 0
      %621 = vmatprep.subr.bf16.mxu0 0
      %622 = vmatpush1.bf16.msra.mxu0 0
      %623 = vmatprep.subr.bf16.mxu0 0
      %624 = vmatpush1.bf16.msra.mxu0 0
      %625 = vmatprep.subr.bf16.mxu0 0
      %626 = vmatpush1.bf16.msra.mxu0 0
      %627 = vmatprep.mubr.bf16.mxu0 0
      %628 = vmatmul.mubr.bf16.gmra.mrb[0].mxu0 %v593
      %v629 = vpop.f32.mrb[0].mxu0
      %v630 = vadd.f32 %v578, %v629
      %v631 = vpop.f32.mrb[0].mxu0
      %v632 = vpop.f32.mrb[0].mxu0
      %v633 = vpop.f32.mrb[0].mxu0
      %634 = vdwg.mxu0
      %v635 = vmul.f32 %v564, 0.35355338
      %v636 = vld [vmem:[%s491] sm:$0xff]
      %v637 = vld [vmem:[%s484] sm:$0x1]
      %639 = vset.pattern.permute.xlu0 0
      %640 = vperm.xlu0 %639, %v636
      %v641 = vpop.permute.xlu0 %640
      %v644 = vlaneseq
      %v645 = vshrl.u32 %v644, 7
      %v646 = vsub.s32 0, %v645
      %v647 = vrot.slane %v637, %v646
      %v649 = vmul.f32 %v641, %v647
      %s650 = smul.u32 %s28, 8
      %v651 = vlaneseq
      %v652 = vshrl.u32 %v651, 7
      %v653 = vstv %s650
      %v654 = vadd.s32 %v652, %v653
      %v655 = vlaneseq
      %v656 = vand.u32 %v655, 127
      %vm657 = vcmp.le.s32.totalorder %v656, %v654
      %v658 = vsel %vm657, 1, 0
      %v659 = vcvt.s32.f32 %v658
      %v660 = vmul.f32 %v649, %v659
      %v661 = vpack.c.bf16 %v635, %v635
      %v662 = vpack.c.bf16 %v630, %v630
      %vm663 = vcmask 64512
      %v665 = vsel %vm663, %v661, 0
      %v668 = vsel %vm663, %v662, 0
      %670 = vmatprep.subr.bf16.mxu0 0
      %671 = vmatpush1.bf16.xpose.msra.mxu0 %v668
      %672 = vmatprep.subr.bf16.mxu0 0
      %673 = vmatpush1.bf16.xpose.msra.mxu0 0
      %674 = vmatprep.subr.bf16.mxu0 0
      %675 = vmatpush1.bf16.xpose.msra.mxu0 0
      %676 = vmatprep.subr.bf16.mxu0 0
      %677 = vmatpush1.bf16.xpose.msra.mxu0 0
      %678 = vmatprep.subr.bf16.mxu0 0
      %679 = vmatpush1.bf16.xpose.msra.mxu0 0
      %680 = vmatprep.subr.bf16.mxu0 0
      %681 = vmatpush1.bf16.xpose.msra.mxu0 0
      %682 = vmatprep.subr.bf16.mxu0 0
      %683 = vmatpush1.bf16.xpose.msra.mxu0 0
      %684 = vmatprep.subr.bf16.mxu0 0
      %685 = vmatpush1.bf16.xpose.msra.mxu0 0
      %686 = vmatprep.subr.bf16.mxu0 0
      %687 = vmatpush1.bf16.xpose.msra.mxu0 0
      %688 = vmatprep.subr.bf16.mxu0 0
      %689 = vmatpush1.bf16.xpose.msra.mxu0 0
      %690 = vmatprep.subr.bf16.mxu0 0
      %691 = vmatpush1.bf16.xpose.msra.mxu0 0
      %692 = vmatprep.subr.bf16.mxu0 0
      %693 = vmatpush1.bf16.xpose.msra.mxu0 0
      %694 = vmatprep.subr.bf16.mxu0 0
      %695 = vmatpush1.bf16.xpose.msra.mxu0 0
      %696 = vmatprep.subr.bf16.mxu0 0
      %697 = vmatpush1.bf16.xpose.msra.mxu0 0
      %698 = vmatprep.subr.bf16.mxu0 0
      %699 = vmatpush1.bf16.xpose.msra.mxu0 0
      %700 = vmatprep.subr.bf16.mxu0 0
      %701 = vmatpush1.bf16.xpose.msra.mxu0 0
      %702 = vmatprep.mubr.bf16.mxu0 0
      %703 = vmatmul.mubr.bf16.gmra.mrb[0].mxu0 %v665
      %v704 = vpop.f32.mrb[0].mxu0
      %v705 = vadd.f32 0.0, %v704
      %v706 = vpop.f32.mrb[0].mxu0
      %v707 = vpop.f32.mrb[0].mxu0
      %v708 = vpop.f32.mrb[0].mxu0
      %709 = vdwg.mxu0
      %vm710 = vcmp.gt.f32.partialorder %v660, 0.0
      %v711 = vsel %vm710, %v705, -1e+10
      %v712 = vsel %vm663, %v711, -inf
      %713 = vmax.xlane.f32.xlu0 %v712
      %v714 = vpop.xlane.xlu0 %713
      %v715 = vsub.f32 %v711, %v714
      %v716 = vmul.f32 %v715, 1.442695
      %v717 = vpow.pop %v716
      %v718 = vsel %vm663, %v717, 0.0
      %719 = vadd.xlane.f32.xlu0 %v718
      %v720 = vpop.xlane.xlu0 %719
      %v721 = vrcp.pop %v720
      %v722 = vmul.f32 %v717, %v721
      %v723 = vpack.c.bf16 %v722, %v722
      %725 = vrot.lane.b32.xlu0 %v662, 96
      %v726 = vpop.permute.xlu0 %725
      %v728 = vsel %vm663, %v723, 0
      %vm730 = vcmask 1043456
      %v732 = vsel %vm730, %v726, 0
      %734 = vmatprep.subr.bf16.mxu0 0
      %735 = vmatpush1.bf16.msra.mxu0 %v732
      %736 = vmatprep.subr.bf16.mxu0 0
      %737 = vmatpush1.bf16.msra.mxu0 0
      %738 = vmatprep.subr.bf16.mxu0 0
      %739 = vmatpush1.bf16.msra.mxu0 0
      %740 = vmatprep.subr.bf16.mxu0 0
      %741 = vmatpush1.bf16.msra.mxu0 0
      %742 = vmatprep.subr.bf16.mxu0 0
      %743 = vmatpush1.bf16.msra.mxu0 0
      %744 = vmatprep.subr.bf16.mxu0 0
      %745 = vmatpush1.bf16.msra.mxu0 0
      %746 = vmatprep.subr.bf16.mxu0 0
      %747 = vmatpush1.bf16.msra.mxu0 0
      %748 = vmatprep.subr.bf16.mxu0 0
      %749 = vmatpush1.bf16.msra.mxu0 0
      %750 = vmatprep.subr.bf16.mxu0 0
      %751 = vmatpush1.bf16.msra.mxu0 0
      %752 = vmatprep.subr.bf16.mxu0 0
      %753 = vmatpush1.bf16.msra.mxu0 0
      %754 = vmatprep.subr.bf16.mxu0 0
      %755 = vmatpush1.bf16.msra.mxu0 0
      %756 = vmatprep.subr.bf16.mxu0 0
      %757 = vmatpush1.bf16.msra.mxu0 0
      %758 = vmatprep.subr.bf16.mxu0 0
      %759 = vmatpush1.bf16.msra.mxu0 0
      %760 = vmatprep.subr.bf16.mxu0 0
      %761 = vmatpush1.bf16.msra.mxu0 0
      %762 = vmatprep.subr.bf16.mxu0 0
      %763 = vmatpush1.bf16.msra.mxu0 0
      %764 = vmatprep.subr.bf16.mxu0 0
      %765 = vmatpush1.bf16.msra.mxu0 0
      %766 = vmatprep.mubr.bf16.mxu0 0
      %767 = vmatmul.mubr.bf16.gmra.mrb[0].mxu0 %v728
      %v768 = vpop.f32.mrb[0].mxu0
      %v769 = vadd.f32 0.0, %v768
      %v770 = vpop.f32.mrb[0].mxu0
      %v771 = vpop.f32.mrb[0].mxu0
      %v772 = vpop.f32.mrb[0].mxu0
      %773 = vdwg.mxu0
      %774 = vst.msk [vmem:[#allocation2] sm:$0xff] %vm663, %v769
      %776 = vrot.lane.b32.xlu0 %v661, 120
      %v777 = vpop.permute.xlu0 %776
      %778 = vrot.lane.b32.xlu0 %v662, 120
      %v779 = vpop.permute.xlu0 %778
      %v781 = vsel %vm663, %v777, 0
      %v784 = vsel %vm663, %v779, 0
      %786 = vmatprep.subr.bf16.mxu0 0
      %787 = vmatpush1.bf16.xpose.msra.mxu0 %v784
      %788 = vmatprep.subr.bf16.mxu0 0
      %789 = vmatpush1.bf16.xpose.msra.mxu0 0
      %790 = vmatprep.subr.bf16.mxu0 0
      %791 = vmatpush1.bf16.xpose.msra.mxu0 0
      %792 = vmatprep.subr.bf16.mxu0 0
      %793 = vmatpush1.bf16.xpose.msra.mxu0 0
      %794 = vmatprep.subr.bf16.mxu0 0
      %795 = vmatpush1.bf16.xpose.msra.mxu0 0
      %796 = vmatprep.subr.bf16.mxu0 0
      %797 = vmatpush1.bf16.xpose.msra.mxu0 0
      %798 = vmatprep.subr.bf16.mxu0 0
      %799 = vmatpush1.bf16.xpose.msra.mxu0 0
      %800 = vmatprep.subr.bf16.mxu0 0
      %801 = vmatpush1.bf16.xpose.msra.mxu0 0
      %802 = vmatprep.subr.bf16.mxu0 0
      %803 = vmatpush1.bf16.xpose.msra.mxu0 0
      %804 = vmatprep.subr.bf16.mxu0 0
      %805 = vmatpush1.bf16.xpose.msra.mxu0 0
      %806 = vmatprep.subr.bf16.mxu0 0
      %807 = vmatpush1.bf16.xpose.msra.mxu0 0
      %808 = vmatprep.subr.bf16.mxu0 0
      %809 = vmatpush1.bf16.xpose.msra.mxu0 0
      %810 = vmatprep.subr.bf16.mxu0 0
      %811 = vmatpush1.bf16.xpose.msra.mxu0 0
      %812 = vmatprep.subr.bf16.mxu0 0
      %813 = vmatpush1.bf16.xpose.msra.mxu0 0
      %814 = vmatprep.subr.bf16.mxu0 0
      %815 = vmatpush1.bf16.xpose.msra.mxu0 0
      %816 = vmatprep.subr.bf16.mxu0 0
      %817 = vmatpush1.bf16.xpose.msra.mxu0 0
      %818 = vmatprep.mubr.bf16.mxu0 0
      %819 = vmatmul.mubr.bf16.gmra.mrb[0].mxu0 %v781
      %v820 = vpop.f32.mrb[0].mxu0
      %v821 = vadd.f32 0.0, %v820
      %v822 = vpop.f32.mrb[0].mxu0
      %v823 = vpop.f32.mrb[0].mxu0
      %v824 = vpop.f32.mrb[0].mxu0
      %825 = vdwg.mxu0
      %v826 = vsel %vm710, %v821, -1e+10
      %v827 = vsel %vm663, %v826, -inf
      %828 = vmax.xlane.f32.xlu0 %v827
      %v829 = vpop.xlane.xlu0 %828
      %v830 = vsub.f32 %v826, %v829
      %v831 = vmul.f32 %v830, 1.442695
      %v832 = vpow.pop %v831
      %v833 = vsel %vm663, %v832, 0.0
      %834 = vadd.xlane.f32.xlu0 %v833
      %v835 = vpop.xlane.xlu0 %834
      %v836 = vrcp.pop %v835
      %v837 = vmul.f32 %v832, %v836
      %v838 = vpack.c.bf16 %v837, %v837
      %839 = vrot.lane.b32.xlu0 %v662, 88
      %v840 = vpop.permute.xlu0 %839
      %v842 = vsel %vm663, %v838, 0
      %v845 = vsel %vm730, %v840, 0
      %847 = vmatprep.subr.bf16.mxu0 0
      %848 = vmatpush1.bf16.msra.mxu0 %v845
      %849 = vmatprep.subr.bf16.mxu0 0
      %850 = vmatpush1.bf16.msra.mxu0 0
      %851 = vmatprep.subr.bf16.mxu0 0
      %852 = vmatpush1.bf16.msra.mxu0 0
      %853 = vmatprep.subr.bf16.mxu0 0
      %854 = vmatpush1.bf16.msra.mxu0 0
      %855 = vmatprep.subr.bf16.mxu0 0
      %856 = vmatpush1.bf16.msra.mxu0 0
      %857 = vmatprep.subr.bf16.mxu0 0
      %858 = vmatpush1.bf16.msra.mxu0 0
      %859 = vmatprep.subr.bf16.mxu0 0
      %860 = vmatpush1.bf16.msra.mxu0 0
      %861 = vmatprep.subr.bf16.mxu0 0
      %862 = vmatpush1.bf16.msra.mxu0 0
      %863 = vmatprep.subr.bf16.mxu0 0
      %864 = vmatpush1.bf16.msra.mxu0 0
      %865 = vmatprep.subr.bf16.mxu0 0
      %866 = vmatpush1.bf16.msra.mxu0 0
      %867 = vmatprep.subr.bf16.mxu0 0
      %868 = vmatpush1.bf16.msra.mxu0 0
      %869 = vmatprep.subr.bf16.mxu0 0
      %870 = vmatpush1.bf16.msra.mxu0 0
      %871 = vmatprep.subr.bf16.mxu0 0
      %872 = vmatpush1.bf16.msra.mxu0 0
      %873 = vmatprep.subr.bf16.mxu0 0
      %874 = vmatpush1.bf16.msra.mxu0 0
      %875 = vmatprep.subr.bf16.mxu0 0
      %876 = vmatpush1.bf16.msra.mxu0 0
      %877 = vmatprep.subr.bf16.mxu0 0
      %878 = vmatpush1.bf16.msra.mxu0 0
      %879 = vmatprep.mubr.bf16.mxu0 0
      %880 = vmatmul.mubr.bf16.gmra.mrb[0].mxu0 %v842
      %v881 = vpop.f32.mrb[0].mxu0
      %v882 = vadd.f32 0.0, %v881
      %v883 = vpop.f32.mrb[0].mxu0
      %v884 = vpop.f32.mrb[0].mxu0
      %v885 = vpop.f32.mrb[0].mxu0
      %886 = vdwg.mxu0
      %888 = vrot.lane.b32.xlu0 %v882, 8
      %v889 = vpop.permute.xlu0 %888
      %vm891 = vcmask 130112
      %892 = vst.msk [vmem:[#allocation2] sm:$0xff] %vm891, %v889
      %893 = vrot.lane.b32.xlu0 %v661, 112
      %v894 = vpop.permute.xlu0 %893
      %895 = vrot.lane.b32.xlu0 %v662, 112
      %v896 = vpop.permute.xlu0 %895
      %v898 = vsel %vm663, %v894, 0
      %v901 = vsel %vm663, %v896, 0
      %903 = vmatprep.subr.bf16.mxu0 0
      %904 = vmatpush1.bf16.xpose.msra.mxu0 %v901
      %905 = vmatprep.subr.bf16.mxu0 0
      %906 = vmatpush1.bf16.xpose.msra.mxu0 0
      %907 = vmatprep.subr.bf16.mxu0 0
      %908 = vmatpush1.bf16.xpose.msra.mxu0 0
      %909 = vmatprep.subr.bf16.mxu0 0
      %910 = vmatpush1.bf16.xpose.msra.mxu0 0
      %911 = vmatprep.subr.bf16.mxu0 0
      %912 = vmatpush1.bf16.xpose.msra.mxu0 0
      %913 = vmatprep.subr.bf16.mxu0 0
      %914 = vmatpush1.bf16.xpose.msra.mxu0 0
      %915 = vmatprep.subr.bf16.mxu0 0
      %916 = vmatpush1.bf16.xpose.msra.mxu0 0
      %917 = vmatprep.subr.bf16.mxu0 0
      %918 = vmatpush1.bf16.xpose.msra.mxu0 0
      %919 = vmatprep.subr.bf16.mxu0 0
      %920 = vmatpush1.bf16.xpose.msra.mxu0 0
      %921 = vmatprep.subr.bf16.mxu0 0
      %922 = vmatpush1.bf16.xpose.msra.mxu0 0
      %923 = vmatprep.subr.bf16.mxu0 0
      %924 = vmatpush1.bf16.xpose.msra.mxu0 0
      %925 = vmatprep.subr.bf16.mxu0 0
      %926 = vmatpush1.bf16.xpose.msra.mxu0 0
      %927 = vmatprep.subr.bf16.mxu0 0
      %928 = vmatpush1.bf16.xpose.msra.mxu0 0
      %929 = vmatprep.subr.bf16.mxu0 0
      %930 = vmatpush1.bf16.xpose.msra.mxu0 0
      %931 = vmatprep.subr.bf16.mxu0 0
      %932 = vmatpush1.bf16.xpose.msra.mxu0 0
      %933 = vmatprep.subr.bf16.mxu0 0
      %934 = vmatpush1.bf16.xpose.msra.mxu0 0
      %935 = vmatprep.mubr.bf16.mxu0 0
      %936 = vmatmul.mubr.bf16.gmra.mrb[0].mxu0 %v898
      %v937 = vpop.f32.mrb[0].mxu0
      %v938 = vadd.f32 0.0, %v937
      %v939 = vpop.f32.mrb[0].mxu0
      %v940 = vpop.f32.mrb[0].mxu0
      %v941 = vpop.f32.mrb[0].mxu0
      %942 = vdwg.mxu0
      %v943 = vsel %vm710, %v938, -1e+10
      %v944 = vsel %vm663, %v943, -inf
      %945 = vmax.xlane.f32.xlu0 %v944
      %v946 = vpop.xlane.xlu0 %945
      %v947 = vsub.f32 %v943, %v946
      %v948 = vmul.f32 %v947, 1.442695
      %v949 = vpow.pop %v948
      %v950 = vsel %vm663, %v949, 0.0
      %951 = vadd.xlane.f32.xlu0 %v950
      %v952 = vpop.xlane.xlu0 %951
      %v953 = vrcp.pop %v952
      %v954 = vmul.f32 %v949, %v953
      %v955 = vpack.c.bf16 %v954, %v954
      %956 = vrot.lane.b32.xlu0 %v662, 80
      %v957 = vpop.permute.xlu0 %956
      %v959 = vsel %vm663, %v955, 0
      %v962 = vsel %vm730, %v957, 0
      %964 = vmatprep.subr.bf16.mxu0 0
      %965 = vmatpush1.bf16.msra.mxu0 %v962
      %966 = vmatprep.subr.bf16.mxu0 0
      %967 = vmatpush1.bf16.msra.mxu0 0
      %968 = vmatprep.subr.bf16.mxu0 0
      %969 = vmatpush1.bf16.msra.mxu0 0
      %970 = vmatprep.subr.bf16.mxu0 0
      %971 = vmatpush1.bf16.msra.mxu0 0
      %972 = vmatprep.subr.bf16.mxu0 0
      %973 = vmatpush1.bf16.msra.mxu0 0
      %974 = vmatprep.subr.bf16.mxu0 0
      %975 = vmatpush1.bf16.msra.mxu0 0
      %976 = vmatprep.subr.bf16.mxu0 0
      %977 = vmatpush1.bf16.msra.mxu0 0
      %978 = vmatprep.subr.bf16.mxu0 0
      %979 = vmatpush1.bf16.msra.mxu0 0
      %980 = vmatprep.subr.bf16.mxu0 0
      %981 = vmatpush1.bf16.msra.mxu0 0
      %982 = vmatprep.subr.bf16.mxu0 0
      %983 = vmatpush1.bf16.msra.mxu0 0
      %984 = vmatprep.subr.bf16.mxu0 0
      %985 = vmatpush1.bf16.msra.mxu0 0
      %986 = vmatprep.subr.bf16.mxu0 0
      %987 = vmatpush1.bf16.msra.mxu0 0
      %988 = vmatprep.subr.bf16.mxu0 0
      %989 = vmatpush1.bf16.msra.mxu0 0
      %990 = vmatprep.subr.bf16.mxu0 0
      %991 = vmatpush1.bf16.msra.mxu0 0
      %992 = vmatprep.subr.bf16.mxu0 0
      %993 = vmatpush1.bf16.msra.mxu0 0
      %994 = vmatprep.subr.bf16.mxu0 0
      %995 = vmatpush1.bf16.msra.mxu0 0
      %996 = vmatprep.mubr.bf16.mxu0 0
      %997 = vmatmul.mubr.bf16.gmra.mrb[0].mxu0 %v959
      %v998 = vpop.f32.mrb[0].mxu0
      %v999 = vadd.f32 0.0, %v998
      %v1000 = vpop.f32.mrb[0].mxu0
      %v1001 = vpop.f32.mrb[0].mxu0
      %v1002 = vpop.f32.mrb[0].mxu0
      %1003 = vdwg.mxu0
      %1005 = vrot.lane.b32.xlu0 %v999, 16
      %v1006 = vpop.permute.xlu0 %1005
      %vm1008 = vcmask 195712
      %1009 = vst.msk [vmem:[#allocation2] sm:$0xff] %vm1008, %v1006
      %1010 = vrot.lane.b32.xlu0 %v661, 104
      %v1011 = vpop.permute.xlu0 %1010
      %1012 = vrot.lane.b32.xlu0 %v662, 104
      %v1013 = vpop.permute.xlu0 %1012
      %v1015 = vsel %vm663, %v1011, 0
      %v1018 = vsel %vm663, %v1013, 0
      %1020 = vmatprep.subr.bf16.mxu0 0
      %1021 = vmatpush1.bf16.xpose.msra.mxu0 %v1018
      %1022 = vmatprep.subr.bf16.mxu0 0
      %1023 = vmatpush1.bf16.xpose.msra.mxu0 0
      %1024 = vmatprep.subr.bf16.mxu0 0
      %1025 = vmatpush1.bf16.xpose.msra.mxu0 0
      %1026 = vmatprep.subr.bf16.mxu0 0
      %1027 = vmatpush1.bf16.xpose.msra.mxu0 0
      %1028 = vmatprep.subr.bf16.mxu0 0
      %1029 = vmatpush1.bf16.xpose.msra.mxu0 0
      %1030 = vmatprep.subr.bf16.mxu0 0
      %1031 = vmatpush1.bf16.xpose.msra.mxu0 0
      %1032 = vmatprep.subr.bf16.mxu0 0
      %1033 = vmatpush1.bf16.xpose.msra.mxu0 0
      %1034 = vmatprep.subr.bf16.mxu0 0
      %1035 = vmatpush1.bf16.xpose.msra.mxu0 0
      %1036 = vmatprep.subr.bf16.mxu0 0
      %1037 = vmatpush1.bf16.xpose.msra.mxu0 0
      %1038 = vmatprep.subr.bf16.mxu0 0
      %1039 = vmatpush1.bf16.xpose.msra.mxu0 0
      %1040 = vmatprep.subr.bf16.mxu0 0
      %1041 = vmatpush1.bf16.xpose.msra.mxu0 0
      %1042 = vmatprep.subr.bf16.mxu0 0
      %1043 = vmatpush1.bf16.xpose.msra.mxu0 0
      %1044 = vmatprep.subr.bf16.mxu0 0
      %1045 = vmatpush1.bf16.xpose.msra.mxu0 0
      %1046 = vmatprep.subr.bf16.mxu0 0
      %1047 = vmatpush1.bf16.xpose.msra.mxu0 0
      %1048 = vmatprep.subr.bf16.mxu0 0
      %1049 = vmatpush1.bf16.xpose.msra.mxu0 0
      %1050 = vmatprep.subr.bf16.mxu0 0
      %1051 = vmatpush1.bf16.xpose.msra.mxu0 0
      %1052 = vmatprep.mubr.bf16.mxu0 0
      %1053 = vmatmul.mubr.bf16.gmra.mrb[0].mxu0 %v1015
      %v1054 = vpop.f32.mrb[0].mxu0
      %v1055 = vadd.f32 0.0, %v1054
      %v1056 = vpop.f32.mrb[0].mxu0
      %v1057 = vpop.f32.mrb[0].mxu0
      %v1058 = vpop.f32.mrb[0].mxu0
      %1059 = vdwg.mxu0
      %v1060 = vsel %vm710, %v1055, -1e+10
      %v1061 = vsel %vm663, %v1060, -inf
      %1062 = vmax.xlane.f32.xlu0 %v1061
      %v1063 = vpop.xlane.xlu0 %1062
      %v1064 = vsub.f32 %v1060, %v1063
      %v1065 = vmul.f32 %v1064, 1.442695
      %v1066 = vpow.pop %v1065
      %v1067 = vsel %vm663, %v1066, 0.0
      %1068 = vadd.xlane.f32.xlu0 %v1067
      %v1069 = vpop.xlane.xlu0 %1068
      %v1070 = vrcp.pop %v1069
      %v1071 = vmul.f32 %v1066, %v1070
      %v1072 = vpack.c.bf16 %v1071, %v1071
      %1073 = vrot.lane.b32.xlu0 %v662, 72
      %v1074 = vpop.permute.xlu0 %1073
      %v1076 = vsel %vm663, %v1072, 0
      %v1079 = vsel %vm730, %v1074, 0
      %1081 = vmatprep.subr.bf16.mxu0 0
      %1082 = vmatpush1.bf16.msra.mxu0 %v1079
      %1083 = vmatprep.subr.bf16.mxu0 0
      %1084 = vmatpush1.bf16.msra.mxu0 0
      %1085 = vmatprep.subr.bf16.mxu0 0
      %1086 = vmatpush1.bf16.msra.mxu0 0
      %1087 = vmatprep.subr.bf16.mxu0 0
      %1088 = vmatpush1.bf16.msra.mxu0 0
      %1089 = vmatprep.subr.bf16.mxu0 0
      %1090 = vmatpush1.bf16.msra.mxu0 0
      %1091 = vmatprep.subr.bf16.mxu0 0
      %1092 = vmatpush1.bf16.msra.mxu0 0
      %1093 = vmatprep.subr.bf16.mxu0 0
      %1094 = vmatpush1.bf16.msra.mxu0 0
      %1095 = vmatprep.subr.bf16.mxu0 0
      %1096 = vmatpush1.bf16.msra.mxu0 0
      %1097 = vmatprep.subr.bf16.mxu0 0
      %1098 = vmatpush1.bf16.msra.mxu0 0
      %1099 = vmatprep.subr.bf16.mxu0 0
      %1100 = vmatpush1.bf16.msra.mxu0 0
      %1101 = vmatprep.subr.bf16.mxu0 0
      %1102 = vmatpush1.bf16.msra.mxu0 0
      %1103 = vmatprep.subr.bf16.mxu0 0
      %1104 = vmatpush1.bf16.msra.mxu0 0
      %1105 = vmatprep.subr.bf16.mxu0 0
      %1106 = vmatpush1.bf16.msra.mxu0 0
      %1107 = vmatprep.subr.bf16.mxu0 0
      %1108 = vmatpush1.bf16.msra.mxu0 0
      %1109 = vmatprep.subr.bf16.mxu0 0
      %1110 = vmatpush1.bf16.msra.mxu0 0
      %1111 = vmatprep.subr.bf16.mxu0 0
      %1112 = vmatpush1.bf16.msra.mxu0 0
      %1113 = vmatprep.mubr.bf16.mxu0 0
      %1114 = vmatmul.mubr.bf16.gmra.mrb[0].mxu0 %v1076
      %v1115 = vpop.f32.mrb[0].mxu0
      %v1116 = vadd.f32 0.0, %v1115
      %v1117 = vpop.f32.mrb[0].mxu0
      %v1118 = vpop.f32.mrb[0].mxu0
      %v1119 = vpop.f32.mrb[0].mxu0
      %1120 = vdwg.mxu0
      %1122 = vrot.lane.b32.xlu0 %v1116, 24
      %v1123 = vpop.permute.xlu0 %1122
      %vm1125 = vcmask 261312
      %1126 = vst.msk [vmem:[#allocation2] sm:$0xff] %vm1125, %v1123
      %v1127 = vld [vmem:[#allocation2] sm:$0xff]
      %v1128 = vpack.c.bf16 %v1127, %v1127
      %v1129 = vld [vmem:[%s6] sm:$0xf]
      %v1130 = vld [vmem:[%s6 + $0x4] sm:$0xf]
      %v1131 = vld [vmem:[%s6 + $0x8] sm:$0xf]
      %v1132 = vld [vmem:[%s6 + $0xc] sm:$0xf]
      %v1133 = vld [vmem:[%s7] sm:$0x1]
      %v1135 = vlaneseq
      %v1136 = vshrl.u32 %v1135, 7
      %v1137 = vsub.s32 0, %v1136
      %v1138 = vrot.slane %v1133, %v1137
      %v1144 = vunpack.c.l.b16 %v1129
      %v1145 = vunpack.c.l.b16 %v1130
      %v1146 = vunpack.c.l.b16 %v1131
      %v1147 = vunpack.c.l.b16 %v1132
      %v1148 = vpack.c.b16 %v1145, %v1144
      %v1149 = vpack.c.b16 %v1147, %v1146
      %v1153 = vsel %vm525, %v1128, 0
      %1155 = vmatprep.subr.bf16.mxu0 0
      %1156 = vmatpush1.bf16.msra.mxu0 %v1148
      %1157 = vmatprep.subr.bf16.mxu0 0
      %1158 = vmatpush1.bf16.msra.mxu0 %v1149
      %1159 = vmatprep.subr.bf16.mxu0 0
      %1160 = vmatpush1.bf16.msra.mxu0 0
      %1161 = vmatprep.subr.bf16.mxu0 0
      %1162 = vmatpush1.bf16.msra.mxu0 0
      %1163 = vmatprep.subr.bf16.mxu0 0
      %1164 = vmatpush1.bf16.msra.mxu0 0
      %1165 = vmatprep.subr.bf16.mxu0 0
      %1166 = vmatpush1.bf16.msra.mxu0 0
      %1167 = vmatprep.subr.bf16.mxu0 0
      %1168 = vmatpush1.bf16.msra.mxu0 0
      %1169 = vmatprep.subr.bf16.mxu0 0
      %1170 = vmatpush1.bf16.msra.mxu0 0
      %1171 = vmatprep.subr.bf16.mxu0 0
      %1172 = vmatpush1.bf16.msra.mxu0 0
      %1173 = vmatprep.subr.bf16.mxu0 0
      %1174 = vmatpush1.bf16.msra.mxu0 0
      %1175 = vmatprep.subr.bf16.mxu0 0
      %1176 = vmatpush1.bf16.msra.mxu0 0
      %1177 = vmatprep.subr.bf16.mxu0 0
      %1178 = vmatpush1.bf16.msra.mxu0 0
      %1179 = vmatprep.subr.bf16.mxu0 0
      %1180 = vmatpush1.bf16.msra.mxu0 0
      %1181 = vmatprep.subr.bf16.mxu0 0
      %1182 = vmatpush1.bf16.msra.mxu0 0
      %1183 = vmatprep.subr.bf16.mxu0 0
      %1184 = vmatpush1.bf16.msra.mxu0 0
      %1185 = vmatprep.subr.bf16.mxu0 0
      %1186 = vmatpush1.bf16.msra.mxu0 0
      %1187 = vmatprep.mubr.bf16.mxu0 0
      %1188 = vmatmul.mubr.bf16.gmra.mrb[0].mxu0 %v1153
      %v1189 = vpop.f32.mrb[0].mxu0
      %v1190 = vadd.f32 %v1138, %v1189
      %v1191 = vpop.f32.mrb[0].mxu0
      %v1192 = vpop.f32.mrb[0].mxu0
      %v1193 = vpop.f32.mrb[0].mxu0
      %1194 = vdwg.mxu0
      %v1195 = vunpack.c.l.bf16 %v500
      %v1196 = vadd.f32 %v1195, %v1190
      %v1197 = vld [vmem:[%s10] sm:$0x1]
      %v1198 = vld [vmem:[%s11] sm:$0x1]
      %v1199 = vsel %vm525, %v1196, 0.0
      %1200 = vadd.xlane.f32.xlu0 %v1199
      %v1201 = vpop.xlane.xlu0 %1200
      %v1202 = vrcp.pop 32.0
      %v1203 = vmul.f32 %v1201, %v1202
      %v1204 = vsub.f32 %v1196, %v1203
      %v1205 = vmul.f32 %v1204, %v1204
      %v1206 = vsel %vm525, %v1205, 0.0
      %1207 = vadd.xlane.f32.xlu0 %v1206
      %v1208 = vpop.xlane.xlu0 %1207
      %v1209 = vmul.f32 %v1208, %v1202
      %v1210 = vadd.f32 %v1209, 1e-05
      %v1211 = vrsqrt.pop %v1210
      %v1212 = vmul.f32 %v1204, %v1211
      %v1214 = vlaneseq
      %v1215 = vshrl.u32 %v1214, 7
      %v1216 = vsub.s32 0, %v1215
      %v1217 = vrot.slane %v1197, %v1216
      %v1219 = vmul.f32 %v1212, %v1217
      %v1221 = vlaneseq
      %v1222 = vshrl.u32 %v1221, 7
      %v1223 = vsub.s32 0, %v1222
      %v1224 = vrot.slane %v1198, %v1223
      %v1226 = vadd.f32 %v1219, %v1224
      %v1227 = vpack.c.bf16 %v1226, %v1226
      %vm1228 = vcmask 257024
      %1229 = vst.msk [vmem:[%s498] sm:$0xf] %vm1228, %v1227
      %p1230 = scmp.lt.s32.totalorder %s27, 1
      %s1231 = scalar_select %p1230, %s27, 1
      %p1232 = scmp.lt.s32.totalorder %s28, 0
      %s1233 = scalar_select %p1232, %s28, 0
      %s1234 = sadd.s32 %s1233, %s1231
      %s1235 = smul.addr %s1234, 4
      %s1236 = scalar_lea.vmem %s12, %s1235
      // Predicated region
      $region69: #{transformer_forward.15} parent=67 // pred_check
        %p1237 = pneg %p331
      $region70: #{transformer_forward.15} parent=67 // pred_check_branch
        %1239 = sbr.rel (%p1237) target = $region72
      $region71: #{transformer_forward.15} parent=67 // pred_region
        _
      $region72: #{transformer_forward.15} parent=67 // pred_fallthru
        _
    $region68: #{transformer_forward.15} parent=5 // pred_fallthru
      _
    %p1240 = scmp.le.s32.totalorder 2, %s18
    // Predicated region
    $region73: #{transformer_forward.15} parent=5 // pred_check
      %p1241 = pneg %p1240
    $region74: #{transformer_forward.15} parent=5 // pred_check_branch
      %1243 = sbr.rel (%p1241) target = $region76
    $region75: #{transformer_forward.15} parent=5 // pred_region
      %s1244 = ssub.s32 %s18, 2
      // Predicated region
      $region77: #{transformer_forward.15} parent=75 // pred_check
        %p1245 = pneg %p337
      $region78: #{transformer_forward.15} parent=75 // pred_check_branch
        %1247 = sbr.rel (%p1245) target = $region80
      $region79: #{transformer_forward.15} parent=75 // pred_region
        %p1248 = scmp.lt.s32.totalorder %s29, 1
        %s1249 = scalar_select %p1248, %s29, 1
        %p1250 = scmp.lt.s32.totalorder %s30, 0
        %s1251 = scalar_select %p1250, %s30, 0
        %s1252 = sadd.s32 %s1251, %s1249
        %s1253 = smul.addr %s1252, 4
        %s1254 = scalar_lea.vmem %s12, %s1253
      $region80: #{transformer_forward.15} parent=75 // pred_fallthru
        _
    $region76: #{transformer_forward.15} parent=5 // pred_fallthru
      _
  $region6: #{transformer_forward.15} parent=0 // loop_footer
    %s22 = sadd.s32 1, %s18
  $region7: #{transformer_forward.15} parent=0 // loop_footer_branch
    %17 = sbr.rel target = $region3
  $region8: #{transformer_forward.15} parent=0 // loop_exit
    _

</llo_original>
